<compile_context>
chip_gen: v6e
topology: v6e:2x2x1
jax: 0.10.0
libtpu: 0.0.40
codegen_flags: <defaults>
</compile_context>

<pallas_src>
import functools
import math

import jax
import jax.numpy as jnp
from jax.experimental import pallas as pl
from jax.experimental.pallas import tpu as pltpu

D_MODEL = 128
NUM_HEADS = 4
D_K = D_MODEL // NUM_HEADS
D_FF = 256
NUM_LAYERS = 2
NUM_CLASSES = 4
LOGIT_PAD = 128            # lane-dense padded classifier output
MAX_SEQ = 512
VOCAB = 1000               # synthetic stand-in for distilbert's 30522-token vocab
PAD_ID = 0
LN_EPS = 1e-5


def _layer_norm(x, g, b):
    mu = jnp.mean(x, axis=-1, keepdims=True)
    xc = x - mu
    var = jnp.mean(xc * xc, axis=-1, keepdims=True)
    return xc * jax.lax.rsqrt(var + LN_EPS) * g + b


def _batch_tile(B):
    for bb in (8, 4, 2, 1):
        if B % bb == 0:
            return bb
    return 1


# ----------------------------------------------------------------------------
# Fully fused kernel: 2 encoder layers + masked mean pool + classifier head.
# Grid = (B // BB,); each program handles BB sequences end-to-end.
# ----------------------------------------------------------------------------
def fused_transformer_kernel(x_ref, mask_ref,
                             wqkv_ref, bqkv_ref, wo_ref, bo_ref,
                             g1_ref, be1_ref, w1_ref, b1_ref,
                             w2_ref, b2_ref, g2_ref, be2_ref,
                             wc_ref, bc_ref, o_ref, *, bb, seq):
    S = seq
    # Flatten the batch tile into the matmul M dimension (lane dim unchanged).
    x = x_ref[...].reshape(bb * S, D_MODEL)            # (BB*S, D) f32
    mask = mask_ref[...].reshape(bb, S)                 # (BB, S) 1/0 float
    kbias = (mask - 1.0) * 1e9                          # additive key-pad bias

    for l in range(NUM_LAYERS):                         # static unroll, 2 layers
        # ---- fused QKV projection over the whole batch tile ----
        xb = x.astype(jnp.bfloat16)
        qkv = jnp.dot(xb, wqkv_ref[l],
                      preferred_element_type=jnp.float32) + bqkv_ref[l]  # (BB*S, 3D)
        q = qkv[:, :D_MODEL]
        k = qkv[:, D_MODEL:2 * D_MODEL]
        v = qkv[:, 2 * D_MODEL:]

        # ---- multi-head attention; 1/sqrt(d_k) folded into Wq/bq ----
        # TODO(synk): head split kept as a static (batch, head) unroll with
        # static slices; a (H,S,d_k) batched einsum needs a lane-splitting
        # reshape with uncertain Mosaic lowering, so the proven form is kept.
        attn_rows = []
        for bi in range(bb):
            r0, r1 = bi * S, (bi + 1) * S
            kb = kbias[bi:bi + 1, :]                    # (1, S)
            heads = []
            for h in range(NUM_HEADS):
                lo = h * D_K
                qh = q[r0:r1, lo:lo + D_K].astype(jnp.bfloat16)
                kh = k[r0:r1, lo:lo + D_K].astype(jnp.bfloat16)
                vh = v[r0:r1, lo:lo + D_K].astype(jnp.bfloat16)
                s = jax.lax.dot_general(qh, kh, (((1,), (1,)), ((), ())),
                                        preferred_element_type=jnp.float32)  # (S,S)
                s = s + kb                               # additive pad mask
                s = s - jnp.max(s, axis=-1, keepdims=True)
                p = jnp.exp(s)
                p = p * pl.reciprocal(jnp.sum(p, axis=-1, keepdims=True),
                                      approx=True)
                heads.append(jnp.dot(p.astype(jnp.bfloat16), vh,
                                     preferred_element_type=jnp.float32))
            attn_rows.append(jnp.concatenate(heads, axis=-1))        # (S, D)
        attn = jnp.concatenate(attn_rows, axis=0) if bb > 1 else attn_rows[0]
        attn = jnp.dot(attn.astype(jnp.bfloat16), wo_ref[l],
                       preferred_element_type=jnp.float32) + bo_ref[l]

        x = _layer_norm(x + attn, g1_ref[l], be1_ref[l])

        # ---- feed-forward (whole batch tile at once) ----
        h1 = jnp.maximum(
            jnp.dot(x.astype(jnp.bfloat16), w1_ref[l],
                    preferred_element_type=jnp.float32) + b1_ref[l], 0.0)
        ff = jnp.dot(h1.astype(jnp.bfloat16), w2_ref[l],
                     preferred_element_type=jnp.float32) + b2_ref[l]
        x = _layer_norm(x + ff, g2_ref[l], be2_ref[l])

    # ---- masked mean pooling via MXU: (1,S) @ (S,D) per sequence ----
    pooled_rows = []
    for bi in range(bb):
        pm = mask[bi:bi + 1, :]                                        # (1, S)
        pr = jnp.dot(pm, x[bi * S:(bi + 1) * S, :],
                     preferred_element_type=jnp.float32)               # (1, D)
        cnt = jnp.maximum(jnp.sum(pm, axis=-1, keepdims=True), 1.0)    # no div-by-0
        pooled_rows.append(pr / cnt)
    pooled = jnp.concatenate(pooled_rows, axis=0) if bb > 1 else pooled_rows[0]

    # ---- classifier head, lane-dense padded output (BB, 128) ----
    logits = jnp.dot(pooled.astype(jnp.bfloat16), wc_ref[...],
                     preferred_element_type=jnp.float32) + bc_ref[...]
    o_ref[...] = logits.reshape(bb, 1, LOGIT_PAD)


def fused_transformer_call(x_emb, maskf, P):
    B, S, D = x_emb.shape
    L = NUM_LAYERS
    BB = _batch_tile(B)

    def rep(shape):
        # whole-array replicated weight (block == full array, constant index map)
        return pl.BlockSpec(shape, lambda b, _n=len(shape): (0,) * _n)

    in_specs = [
        pl.BlockSpec((BB, S, D), lambda b: (b, 0, 0)),       # x (batch tile)
        pl.BlockSpec((BB, 1, S), lambda b: (b, 0, 0)),       # attention mask (float)
        rep((L, D, 3 * D)), rep((L, 1, 3 * D)),              # Wqkv (bf16), bqkv
        rep((L, D, D)), rep((L, 1, D)),                      # Wo (bf16), bo
        rep((L, 1, D)), rep((L, 1, D)),                      # LN1 gamma, beta
        rep((L, D, D_FF)), rep((L, 1, D_FF)),                # W1 (bf16), b1
        rep((L, D_FF, D)), rep((L, 1, D)),                   # W2 (bf16), b2
        rep((L, 1, D)), rep((L, 1, D)),                      # LN2 gamma, beta
        rep((D, LOGIT_PAD)), rep((1, LOGIT_PAD)),            # classifier (padded)
    ]
    kernel = functools.partial(fused_transformer_kernel, bb=BB, seq=S)
    out = pl.pallas_call(
        kernel,
        out_shape=jax.ShapeDtypeStruct((B, 1, LOGIT_PAD), jnp.float32),
        grid=(B // BB,),
        in_specs=in_specs,
        out_specs=pl.BlockSpec((BB, 1, LOGIT_PAD), lambda b: (b, 0, 0)),
        compiler_params=pltpu.CompilerParams(dimension_semantics=("parallel",)),
    )(x_emb, maskf,
      P["wqkv"], P["bqkv"], P["wo"], P["bo"],
      P["g1"], P["be1"], P["w1"], P["b1"],
      P["w2"], P["b2"], P["g2"], P["be2"],
      P["wc"], P["bc"])
    return out[:, 0, :NUM_CLASSES]


# ----------------------------------------------------------------------------
# Parameter setup / glue (plain JAX)
# ----------------------------------------------------------------------------
def positional_encoding(max_len, d_model):
    pos = jnp.arange(max_len, dtype=jnp.float32)[:, None]
    div = jnp.exp(jnp.arange(0, d_model, 2, dtype=jnp.float32)
                  * (-math.log(10000.0) / d_model))
    pe = jnp.zeros((max_len, d_model), jnp.float32)
    pe = pe.at[:, 0::2].set(jnp.sin(pos * div))
    pe = pe.at[:, 1::2].set(jnp.cos(pos * div))
    return pe


def init_params(key):
    def lin(k, fan_in, fan_out):
        bound = 1.0 / math.sqrt(fan_in)
        kw, kb = jax.random.split(k)
        w = jax.random.uniform(kw, (fan_in, fan_out), jnp.float32, -bound, bound)
        b = jax.random.uniform(kb, (1, fan_out), jnp.float32, -bound, bound)
        return w, b

    keys = jax.random.split(key, 2 + NUM_LAYERS)
    emb = jax.random.normal(keys[0], (VOCAB, D_MODEL), jnp.float32)
    emb = emb.at[PAD_ID].set(0.0)        # padding_idx row zeroed

    scale = 1.0 / math.sqrt(D_K)
    acc = {n: [] for n in ("wqkv", "bqkv", "wo", "bo", "g1", "be1",
                           "w1", "b1", "w2", "b2", "g2", "be2")}
    for l in range(NUM_LAYERS):
        lk = jax.random.split(keys[1 + l], 6)
        wq, bq = lin(lk[0], D_MODEL, D_MODEL)
        wk, bk = lin(lk[1], D_MODEL, D_MODEL)
        wv, bv = lin(lk[2], D_MODEL, D_MODEL)
        wo, bo = lin(lk[3], D_MODEL, D_MODEL)
        w1, b1 = lin(lk[4], D_MODEL, D_FF)
        w2, b2 = lin(lk[5], D_FF, D_MODEL)
        # fuse Q/K/V and fold the 1/sqrt(d_k) score scale into the Q columns
        acc["wqkv"].append(jnp.concatenate([wq * scale, wk, wv], axis=1))
        acc["bqkv"].append(jnp.concatenate([bq * scale, bk, bv], axis=1))
        acc["wo"].append(wo); acc["bo"].append(bo)
        acc["w1"].append(w1); acc["b1"].append(b1)
        acc["w2"].append(w2); acc["b2"].append(b2)
        acc["g1"].append(jnp.ones((1, D_MODEL), jnp.float32))
        acc["be1"].append(jnp.zeros((1, D_MODEL), jnp.float32))
        acc["g2"].append(jnp.ones((1, D_MODEL), jnp.float32))
        acc["be2"].append(jnp.zeros((1, D_MODEL), jnp.float32))

    wc, bc = lin(keys[1 + NUM_LAYERS], D_MODEL, NUM_CLASSES)
    wc_pad = jnp.zeros((D_MODEL, LOGIT_PAD), jnp.float32).at[:, :NUM_CLASSES].set(wc)
    bc_pad = jnp.zeros((1, LOGIT_PAD), jnp.float32).at[:, :NUM_CLASSES].set(bc)

    bf = jnp.bfloat16
    P = dict(
        wqkv=jnp.stack(acc["wqkv"]).astype(bf), bqkv=jnp.stack(acc["bqkv"]),
        wo=jnp.stack(acc["wo"]).astype(bf),     bo=jnp.stack(acc["bo"]),
        g1=jnp.stack(acc["g1"]),                be1=jnp.stack(acc["be1"]),
        w1=jnp.stack(acc["w1"]).astype(bf),     b1=jnp.stack(acc["b1"]),
        w2=jnp.stack(acc["w2"]).astype(bf),     b2=jnp.stack(acc["b2"]),
        g2=jnp.stack(acc["g2"]),                be2=jnp.stack(acc["be2"]),
        wc=wc_pad.astype(bf),                   bc=bc_pad)
    return emb, P


def transformer_classifier(input_ids, attention_mask, emb, pe, P):
    # TODO(synk): embedding gather has no clean rectangular BlockSpec
    # equivalent; it stays as plain-JAX glue outside the kernel.
    x = jnp.take(emb, input_ids, axis=0)                    # (B, S, D)
    S = input_ids.shape[1]
    x = x + pe[None, :S, :]
    maskf = attention_mask.astype(jnp.float32)[:, None, :]  # (B, 1, S) 1/0
    return fused_transformer_call(x, maskf, P)              # (B, NUM_CLASSES)


if __name__ == "__main__":
    key = jax.random.PRNGKey(0)
    kp, kid = jax.random.split(key)
    emb, P = init_params(kp)
    pe = positional_encoding(MAX_SEQ, D_MODEL)

    B, S = 2, 8
    input_ids = jax.random.randint(kid, (B, S), 1, VOCAB, dtype=jnp.int32)
    attention_mask = jnp.array([[1] * S, [1] * 5 + [0] * (S - 5)], dtype=jnp.int32)
    input_ids = jnp.where(attention_mask == 1, input_ids, PAD_ID)

    logits = transformer_classifier(input_ids, attention_mask, emb, pe, P)
    logits = jax.block_until_ready(logits)
    assert logits.shape == (B, NUM_CLASSES)
    assert bool(jnp.all(jnp.isfinite(logits)))
    print("KERNEL_OK")
</pallas_src>

<mosaic_0001>
module attributes {stable_mosaic.version = 11 : i64} {
  func.func @fused_transformer_kernel(%arg0: i32, %arg1: memref<2x8x128xf32, #tpu.memory_space<vmem>>, %arg2: memref<2x1x8xf32, #tpu.memory_space<vmem>>, %arg3: memref<2x128x384xbf16, #tpu.memory_space<vmem>>, %arg4: memref<2x1x384xf32, #tpu.memory_space<vmem>>, %arg5: memref<2x128x128xbf16, #tpu.memory_space<vmem>>, %arg6: memref<2x1x128xf32, #tpu.memory_space<vmem>>, %arg7: memref<2x1x128xf32, #tpu.memory_space<vmem>>, %arg8: memref<2x1x128xf32, #tpu.memory_space<vmem>>, %arg9: memref<2x128x256xbf16, #tpu.memory_space<vmem>>, %arg10: memref<2x1x256xf32, #tpu.memory_space<vmem>>, %arg11: memref<2x256x128xbf16, #tpu.memory_space<vmem>>, %arg12: memref<2x1x128xf32, #tpu.memory_space<vmem>>, %arg13: memref<2x1x128xf32, #tpu.memory_space<vmem>>, %arg14: memref<2x1x128xf32, #tpu.memory_space<vmem>>, %arg15: memref<128x128xbf16, #tpu.memory_space<vmem>>, %arg16: memref<1x128xf32, #tpu.memory_space<vmem>>, %arg17: memref<2x1x128xf32, #tpu.memory_space<vmem>>) attributes {dimension_semantics = [#tpu.dimension_semantics<parallel>], iteration_bounds = array<i64: 1>, scalar_prefetch = 0 : i64, scratch_operands = 0 : i64, tpu.core_type = #tpu.core_type<tc>, window_params = [{transform_indices = @transform_0, window_bounds = array<i64: 2, 8, 128>}, {transform_indices = @transform_1, window_bounds = array<i64: 2, 1, 8>}, {pipeline_mode = #tpu.pipeline_mode<synchronous>, transform_indices = @transform_2, window_bounds = array<i64: 2, 128, 384>}, {pipeline_mode = #tpu.pipeline_mode<synchronous>, transform_indices = @transform_3, window_bounds = array<i64: 2, 1, 384>}, {pipeline_mode = #tpu.pipeline_mode<synchronous>, transform_indices = @transform_4, window_bounds = array<i64: 2, 128, 128>}, {pipeline_mode = #tpu.pipeline_mode<synchronous>, transform_indices = @transform_5, window_bounds = array<i64: 2, 1, 128>}, {pipeline_mode = #tpu.pipeline_mode<synchronous>, transform_indices = @transform_6, window_bounds = array<i64: 2, 1, 128>}, {pipeline_mode = #tpu.pipeline_mode<synchronous>, transform_indices = @transform_7, window_bounds = array<i64: 2, 1, 128>}, {pipeline_mode = #tpu.pipeline_mode<synchronous>, transform_indices = @transform_8, window_bounds = array<i64: 2, 128, 256>}, {pipeline_mode = #tpu.pipeline_mode<synchronous>, transform_indices = @transform_9, window_bounds = array<i64: 2, 1, 256>}, {pipeline_mode = #tpu.pipeline_mode<synchronous>, transform_indices = @transform_10, window_bounds = array<i64: 2, 256, 128>}, {pipeline_mode = #tpu.pipeline_mode<synchronous>, transform_indices = @transform_11, window_bounds = array<i64: 2, 1, 128>}, {pipeline_mode = #tpu.pipeline_mode<synchronous>, transform_indices = @transform_12, window_bounds = array<i64: 2, 1, 128>}, {pipeline_mode = #tpu.pipeline_mode<synchronous>, transform_indices = @transform_13, window_bounds = array<i64: 2, 1, 128>}, {pipeline_mode = #tpu.pipeline_mode<synchronous>, transform_indices = @transform_14, window_bounds = array<i64: 128, 128>}, {pipeline_mode = #tpu.pipeline_mode<synchronous>, transform_indices = @transform_15, window_bounds = array<i64: 1, 128>}, {transform_indices = @transform_16, window_bounds = array<i64: 2, 1, 128>}]} {
    %c0 = arith.constant 0 : index
    %c0_0 = arith.constant 0 : index
    %c0_1 = arith.constant 0 : index
    %0 = vector.load %arg1[%c0, %c0_0, %c0_1] : memref<2x8x128xf32, #tpu.memory_space<vmem>>, vector<2x8x128xf32>
    %1 = vector.shape_cast %0 : vector<2x8x128xf32> to vector<16x128xf32>
    %c0_2 = arith.constant 0 : index
    %c0_3 = arith.constant 0 : index
    %c0_4 = arith.constant 0 : index
    %2 = vector.load %arg2[%c0_2, %c0_3, %c0_4] : memref<2x1x8xf32, #tpu.memory_space<vmem>>, vector<2x1x8xf32>
    %3 = vector.shape_cast %2 : vector<2x1x8xf32> to vector<2x8xf32>
    %cst = arith.constant 1.000000e+00 : f32
    %4 = vector.broadcast %cst : f32 to vector<2x8xf32>
    %5 = arith.subf %3, %4 : vector<2x8xf32>
    %cst_5 = arith.constant 1.000000e+09 : f32
    %6 = vector.broadcast %cst_5 : f32 to vector<2x8xf32>
    %7 = arith.mulf %5, %6 : vector<2x8xf32>
    %8 = arith.truncf %1 : vector<16x128xf32> to vector<16x128xbf16>
    %c0_6 = arith.constant 0 : index
    %c0_7 = arith.constant 0 : index
    %c0_8 = arith.constant 0 : index
    %9 = vector.load %arg3[%c0_6, %c0_7, %c0_8] : memref<2x128x384xbf16, #tpu.memory_space<vmem>>, vector<1x128x384xbf16>
    %10 = vector.shape_cast %9 : vector<1x128x384xbf16> to vector<128x384xbf16>
    %cst_9 = arith.constant dense<0.000000e+00> : vector<16x384xf32>
    %11 = tpu.matmul %8, %10, %cst_9 {dimension_numbers = #tpu.dot_dimension_numbers<[1], [0], [0], [1], [0, 0, 1, 1], [], []>} : vector<16x128xbf16>, vector<128x384xbf16>, vector<16x384xf32> -> vector<16x384xf32>
    %c0_10 = arith.constant 0 : index
    %c0_11 = arith.constant 0 : index
    %c0_12 = arith.constant 0 : index
    %12 = vector.load %arg4[%c0_10, %c0_11, %c0_12] : memref<2x1x384xf32, #tpu.memory_space<vmem>>, vector<1x1x384xf32>
    %13 = vector.shape_cast %12 : vector<1x1x384xf32> to vector<1x384xf32>
    %14 = vector.broadcast %13 : vector<1x384xf32> to vector<16x384xf32>
    %15 = arith.addf %11, %14 : vector<16x384xf32>
    %16 = vector.extract_strided_slice %15 {offsets = [0, 0], sizes = [16, 128], strides = [1, 1]} : vector<16x384xf32> to vector<16x128xf32>
    %17 = vector.extract_strided_slice %15 {offsets = [0, 128], sizes = [16, 128], strides = [1, 1]} : vector<16x384xf32> to vector<16x128xf32>
    %18 = vector.extract_strided_slice %15 {offsets = [0, 256], sizes = [16, 128], strides = [1, 1]} : vector<16x384xf32> to vector<16x128xf32>
    %19 = vector.extract_strided_slice %7 {offsets = [0, 0], sizes = [1, 8], strides = [1, 1]} : vector<2x8xf32> to vector<1x8xf32>
    %20 = vector.extract_strided_slice %16 {offsets = [0, 0], sizes = [8, 32], strides = [1, 1]} : vector<16x128xf32> to vector<8x32xf32>
    %21 = arith.truncf %20 : vector<8x32xf32> to vector<8x32xbf16>
    %22 = vector.extract_strided_slice %17 {offsets = [0, 0], sizes = [8, 32], strides = [1, 1]} : vector<16x128xf32> to vector<8x32xf32>
    %23 = arith.truncf %22 : vector<8x32xf32> to vector<8x32xbf16>
    %24 = vector.extract_strided_slice %18 {offsets = [0, 0], sizes = [8, 32], strides = [1, 1]} : vector<16x128xf32> to vector<8x32xf32>
    %25 = arith.truncf %24 : vector<8x32xf32> to vector<8x32xbf16>
    %cst_13 = arith.constant dense<0.000000e+00> : vector<8x8xf32>
    %26 = tpu.matmul %21, %23, %cst_13 {dimension_numbers = #tpu.dot_dimension_numbers<[1], [1], [0], [0], [0, 0, 1, 0], [], []>} : vector<8x32xbf16>, vector<8x32xbf16>, vector<8x8xf32> -> vector<8x8xf32>
    %27 = vector.broadcast %19 : vector<1x8xf32> to vector<8x8xf32>
    %28 = arith.addf %26, %27 : vector<8x8xf32>
    %cst_14 = arith.constant dense<0xFF800000> : vector<8xf32>
    %29 = vector.multi_reduction <maximumf>, %28, %cst_14 [1] : vector<8x8xf32> to vector<8xf32>
    %30 = vector.shape_cast %29 : vector<8xf32> to vector<8x1xf32>
    %31 = vector.broadcast %30 : vector<8x1xf32> to vector<8x8xf32>
    %32 = arith.subf %28, %31 : vector<8x8xf32>
    %33 = math.exp %32 : vector<8x8xf32>
    %cst_15 = arith.constant dense<0.000000e+00> : vector<8xf32>
    %34 = vector.multi_reduction <add>, %33, %cst_15 [1] : vector<8x8xf32> to vector<8xf32>
    %35 = vector.shape_cast %34 : vector<8xf32> to vector<8x1xf32>
    %36 = tpu.reciprocal %35 {approx = true} : vector<8x1xf32> -> vector<8x1xf32>
    %37 = vector.broadcast %36 : vector<8x1xf32> to vector<8x8xf32>
    %38 = arith.mulf %33, %37 : vector<8x8xf32>
    %39 = arith.truncf %38 : vector<8x8xf32> to vector<8x8xbf16>
    %cst_16 = arith.constant dense<0.000000e+00> : vector<8x32xf32>
    %40 = tpu.matmul %39, %25, %cst_16 {dimension_numbers = #tpu.dot_dimension_numbers<[1], [0], [0], [1], [0, 0, 1, 1], [], []>} : vector<8x8xbf16>, vector<8x32xbf16>, vector<8x32xf32> -> vector<8x32xf32>
    %41 = vector.extract_strided_slice %16 {offsets = [0, 32], sizes = [8, 32], strides = [1, 1]} : vector<16x128xf32> to vector<8x32xf32>
    %42 = arith.truncf %41 : vector<8x32xf32> to vector<8x32xbf16>
    %43 = vector.extract_strided_slice %17 {offsets = [0, 32], sizes = [8, 32], strides = [1, 1]} : vector<16x128xf32> to vector<8x32xf32>
    %44 = arith.truncf %43 : vector<8x32xf32> to vector<8x32xbf16>
    %45 = vector.extract_strided_slice %18 {offsets = [0, 32], sizes = [8, 32], strides = [1, 1]} : vector<16x128xf32> to vector<8x32xf32>
    %46 = arith.truncf %45 : vector<8x32xf32> to vector<8x32xbf16>
    %cst_17 = arith.constant dense<0.000000e+00> : vector<8x8xf32>
    %47 = tpu.matmul %42, %44, %cst_17 {dimension_numbers = #tpu.dot_dimension_numbers<[1], [1], [0], [0], [0, 0, 1, 0], [], []>} : vector<8x32xbf16>, vector<8x32xbf16>, vector<8x8xf32> -> vector<8x8xf32>
    %48 = vector.broadcast %19 : vector<1x8xf32> to vector<8x8xf32>
    %49 = arith.addf %47, %48 : vector<8x8xf32>
    %cst_18 = arith.constant dense<0xFF800000> : vector<8xf32>
    %50 = vector.multi_reduction <maximumf>, %49, %cst_18 [1] : vector<8x8xf32> to vector<8xf32>
    %51 = vector.shape_cast %50 : vector<8xf32> to vector<8x1xf32>
    %52 = vector.broadcast %51 : vector<8x1xf32> to vector<8x8xf32>
    %53 = arith.subf %49, %52 : vector<8x8xf32>
    %54 = math.exp %53 : vector<8x8xf32>
    %cst_19 = arith.constant dense<0.000000e+00> : vector<8xf32>
    %55 = vector.multi_reduction <add>, %54, %cst_19 [1] : vector<8x8xf32> to vector<8xf32>
    %56 = vector.shape_cast %55 : vector<8xf32> to vector<8x1xf32>
    %57 = tpu.reciprocal %56 {approx = true} : vector<8x1xf32> -> vector<8x1xf32>
    %58 = vector.broadcast %57 : vector<8x1xf32> to vector<8x8xf32>
    %59 = arith.mulf %54, %58 : vector<8x8xf32>
    %60 = arith.truncf %59 : vector<8x8xf32> to vector<8x8xbf16>
    %cst_20 = arith.constant dense<0.000000e+00> : vector<8x32xf32>
    %61 = tpu.matmul %60, %46, %cst_20 {dimension_numbers = #tpu.dot_dimension_numbers<[1], [0], [0], [1], [0, 0, 1, 1], [], []>} : vector<8x8xbf16>, vector<8x32xbf16>, vector<8x32xf32> -> vector<8x32xf32>
    %62 = vector.extract_strided_slice %16 {offsets = [0, 64], sizes = [8, 32], strides = [1, 1]} : vector<16x128xf32> to vector<8x32xf32>
    %63 = arith.truncf %62 : vector<8x32xf32> to vector<8x32xbf16>
    %64 = vector.extract_strided_slice %17 {offsets = [0, 64], sizes = [8, 32], strides = [1, 1]} : vector<16x128xf32> to vector<8x32xf32>
    %65 = arith.truncf %64 : vector<8x32xf32> to vector<8x32xbf16>
    %66 = vector.extract_strided_slice %18 {offsets = [0, 64], sizes = [8, 32], strides = [1, 1]} : vector<16x128xf32> to vector<8x32xf32>
    %67 = arith.truncf %66 : vector<8x32xf32> to vector<8x32xbf16>
    %cst_21 = arith.constant dense<0.000000e+00> : vector<8x8xf32>
    %68 = tpu.matmul %63, %65, %cst_21 {dimension_numbers = #tpu.dot_dimension_numbers<[1], [1], [0], [0], [0, 0, 1, 0], [], []>} : vector<8x32xbf16>, vector<8x32xbf16>, vector<8x8xf32> -> vector<8x8xf32>
    %69 = vector.broadcast %19 : vector<1x8xf32> to vector<8x8xf32>
    %70 = arith.addf %68, %69 : vector<8x8xf32>
    %cst_22 = arith.constant dense<0xFF800000> : vector<8xf32>
    %71 = vector.multi_reduction <maximumf>, %70, %cst_22 [1] : vector<8x8xf32> to vector<8xf32>
    %72 = vector.shape_cast %71 : vector<8xf32> to vector<8x1xf32>
    %73 = vector.broadcast %72 : vector<8x1xf32> to vector<8x8xf32>
    %74 = arith.subf %70, %73 : vector<8x8xf32>
    %75 = math.exp %74 : vector<8x8xf32>
    %cst_23 = arith.constant dense<0.000000e+00> : vector<8xf32>
    %76 = vector.multi_reduction <add>, %75, %cst_23 [1] : vector<8x8xf32> to vector<8xf32>
    %77 = vector.shape_cast %76 : vector<8xf32> to vector<8x1xf32>
    %78 = tpu.reciprocal %77 {approx = true} : vector<8x1xf32> -> vector<8x1xf32>
    %79 = vector.broadcast %78 : vector<8x1xf32> to vector<8x8xf32>
    %80 = arith.mulf %75, %79 : vector<8x8xf32>
    %81 = arith.truncf %80 : vector<8x8xf32> to vector<8x8xbf16>
    %cst_24 = arith.constant dense<0.000000e+00> : vector<8x32xf32>
    %82 = tpu.matmul %81, %67, %cst_24 {dimension_numbers = #tpu.dot_dimension_numbers<[1], [0], [0], [1], [0, 0, 1, 1], [], []>} : vector<8x8xbf16>, vector<8x32xbf16>, vector<8x32xf32> -> vector<8x32xf32>
    %83 = vector.extract_strided_slice %16 {offsets = [0, 96], sizes = [8, 32], strides = [1, 1]} : vector<16x128xf32> to vector<8x32xf32>
    %84 = arith.truncf %83 : vector<8x32xf32> to vector<8x32xbf16>
    %85 = vector.extract_strided_slice %17 {offsets = [0, 96], sizes = [8, 32], strides = [1, 1]} : vector<16x128xf32> to vector<8x32xf32>
    %86 = arith.truncf %85 : vector<8x32xf32> to vector<8x32xbf16>
    %87 = vector.extract_strided_slice %18 {offsets = [0, 96], sizes = [8, 32], strides = [1, 1]} : vector<16x128xf32> to vector<8x32xf32>
    %88 = arith.truncf %87 : vector<8x32xf32> to vector<8x32xbf16>
    %cst_25 = arith.constant dense<0.000000e+00> : vector<8x8xf32>
    %89 = tpu.matmul %84, %86, %cst_25 {dimension_numbers = #tpu.dot_dimension_numbers<[1], [1], [0], [0], [0, 0, 1, 0], [], []>} : vector<8x32xbf16>, vector<8x32xbf16>, vector<8x8xf32> -> vector<8x8xf32>
    %90 = vector.broadcast %19 : vector<1x8xf32> to vector<8x8xf32>
    %91 = arith.addf %89, %90 : vector<8x8xf32>
    %cst_26 = arith.constant dense<0xFF800000> : vector<8xf32>
    %92 = vector.multi_reduction <maximumf>, %91, %cst_26 [1] : vector<8x8xf32> to vector<8xf32>
    %93 = vector.shape_cast %92 : vector<8xf32> to vector<8x1xf32>
    %94 = vector.broadcast %93 : vector<8x1xf32> to vector<8x8xf32>
    %95 = arith.subf %91, %94 : vector<8x8xf32>
    %96 = math.exp %95 : vector<8x8xf32>
    %cst_27 = arith.constant dense<0.000000e+00> : vector<8xf32>
    %97 = vector.multi_reduction <add>, %96, %cst_27 [1] : vector<8x8xf32> to vector<8xf32>
    %98 = vector.shape_cast %97 : vector<8xf32> to vector<8x1xf32>
    %99 = tpu.reciprocal %98 {approx = true} : vector<8x1xf32> -> vector<8x1xf32>
    %100 = vector.broadcast %99 : vector<8x1xf32> to vector<8x8xf32>
    %101 = arith.mulf %96, %100 : vector<8x8xf32>
    %102 = arith.truncf %101 : vector<8x8xf32> to vector<8x8xbf16>
    %cst_28 = arith.constant dense<0.000000e+00> : vector<8x32xf32>
    %103 = tpu.matmul %102, %88, %cst_28 {dimension_numbers = #tpu.dot_dimension_numbers<[1], [0], [0], [1], [0, 0, 1, 1], [], []>} : vector<8x8xbf16>, vector<8x32xbf16>, vector<8x32xf32> -> vector<8x32xf32>
    %104 = tpu.concatenate %40, %61, %82, %103 in 1 : vector<8x32xf32>, vector<8x32xf32>, vector<8x32xf32>, vector<8x32xf32> -> vector<8x128xf32>
    %105 = vector.extract_strided_slice %7 {offsets = [1, 0], sizes = [1, 8], strides = [1, 1]} : vector<2x8xf32> to vector<1x8xf32>
    %106 = vector.extract_strided_slice %16 {offsets = [8, 0], sizes = [8, 32], strides = [1, 1]} : vector<16x128xf32> to vector<8x32xf32>
    %107 = arith.truncf %106 : vector<8x32xf32> to vector<8x32xbf16>
    %108 = vector.extract_strided_slice %17 {offsets = [8, 0], sizes = [8, 32], strides = [1, 1]} : vector<16x128xf32> to vector<8x32xf32>
    %109 = arith.truncf %108 : vector<8x32xf32> to vector<8x32xbf16>
    %110 = vector.extract_strided_slice %18 {offsets = [8, 0], sizes = [8, 32], strides = [1, 1]} : vector<16x128xf32> to vector<8x32xf32>
    %111 = arith.truncf %110 : vector<8x32xf32> to vector<8x32xbf16>
    %cst_29 = arith.constant dense<0.000000e+00> : vector<8x8xf32>
    %112 = tpu.matmul %107, %109, %cst_29 {dimension_numbers = #tpu.dot_dimension_numbers<[1], [1], [0], [0], [0, 0, 1, 0], [], []>} : vector<8x32xbf16>, vector<8x32xbf16>, vector<8x8xf32> -> vector<8x8xf32>
    %113 = vector.broadcast %105 : vector<1x8xf32> to vector<8x8xf32>
    %114 = arith.addf %112, %113 : vector<8x8xf32>
    %cst_30 = arith.constant dense<0xFF800000> : vector<8xf32>
    %115 = vector.multi_reduction <maximumf>, %114, %cst_30 [1] : vector<8x8xf32> to vector<8xf32>
    %116 = vector.shape_cast %115 : vector<8xf32> to vector<8x1xf32>
    %117 = vector.broadcast %116 : vector<8x1xf32> to vector<8x8xf32>
    %118 = arith.subf %114, %117 : vector<8x8xf32>
    %119 = math.exp %118 : vector<8x8xf32>
    %cst_31 = arith.constant dense<0.000000e+00> : vector<8xf32>
    %120 = vector.multi_reduction <add>, %119, %cst_31 [1] : vector<8x8xf32> to vector<8xf32>
    %121 = vector.shape_cast %120 : vector<8xf32> to vector<8x1xf32>
    %122 = tpu.reciprocal %121 {approx = true} : vector<8x1xf32> -> vector<8x1xf32>
    %123 = vector.broadcast %122 : vector<8x1xf32> to vector<8x8xf32>
    %124 = arith.mulf %119, %123 : vector<8x8xf32>
    %125 = arith.truncf %124 : vector<8x8xf32> to vector<8x8xbf16>
    %cst_32 = arith.constant dense<0.000000e+00> : vector<8x32xf32>
    %126 = tpu.matmul %125, %111, %cst_32 {dimension_numbers = #tpu.dot_dimension_numbers<[1], [0], [0], [1], [0, 0, 1, 1], [], []>} : vector<8x8xbf16>, vector<8x32xbf16>, vector<8x32xf32> -> vector<8x32xf32>
    %127 = vector.extract_strided_slice %16 {offsets = [8, 32], sizes = [8, 32], strides = [1, 1]} : vector<16x128xf32> to vector<8x32xf32>
    %128 = arith.truncf %127 : vector<8x32xf32> to vector<8x32xbf16>
    %129 = vector.extract_strided_slice %17 {offsets = [8, 32], sizes = [8, 32], strides = [1, 1]} : vector<16x128xf32> to vector<8x32xf32>
    %130 = arith.truncf %129 : vector<8x32xf32> to vector<8x32xbf16>
    %131 = vector.extract_strided_slice %18 {offsets = [8, 32], sizes = [8, 32], strides = [1, 1]} : vector<16x128xf32> to vector<8x32xf32>
    %132 = arith.truncf %131 : vector<8x32xf32> to vector<8x32xbf16>
    %cst_33 = arith.constant dense<0.000000e+00> : vector<8x8xf32>
    %133 = tpu.matmul %128, %130, %cst_33 {dimension_numbers = #tpu.dot_dimension_numbers<[1], [1], [0], [0], [0, 0, 1, 0], [], []>} : vector<8x32xbf16>, vector<8x32xbf16>, vector<8x8xf32> -> vector<8x8xf32>
    %134 = vector.broadcast %105 : vector<1x8xf32> to vector<8x8xf32>
    %135 = arith.addf %133, %134 : vector<8x8xf32>
    %cst_34 = arith.constant dense<0xFF800000> : vector<8xf32>
    %136 = vector.multi_reduction <maximumf>, %135, %cst_34 [1] : vector<8x8xf32> to vector<8xf32>
    %137 = vector.shape_cast %136 : vector<8xf32> to vector<8x1xf32>
    %138 = vector.broadcast %137 : vector<8x1xf32> to vector<8x8xf32>
    %139 = arith.subf %135, %138 : vector<8x8xf32>
    %140 = math.exp %139 : vector<8x8xf32>
    %cst_35 = arith.constant dense<0.000000e+00> : vector<8xf32>
    %141 = vector.multi_reduction <add>, %140, %cst_35 [1] : vector<8x8xf32> to vector<8xf32>
    %142 = vector.shape_cast %141 : vector<8xf32> to vector<8x1xf32>
    %143 = tpu.reciprocal %142 {approx = true} : vector<8x1xf32> -> vector<8x1xf32>
    %144 = vector.broadcast %143 : vector<8x1xf32> to vector<8x8xf32>
    %145 = arith.mulf %140, %144 : vector<8x8xf32>
    %146 = arith.truncf %145 : vector<8x8xf32> to vector<8x8xbf16>
    %cst_36 = arith.constant dense<0.000000e+00> : vector<8x32xf32>
    %147 = tpu.matmul %146, %132, %cst_36 {dimension_numbers = #tpu.dot_dimension_numbers<[1], [0], [0], [1], [0, 0, 1, 1], [], []>} : vector<8x8xbf16>, vector<8x32xbf16>, vector<8x32xf32> -> vector<8x32xf32>
    %148 = vector.extract_strided_slice %16 {offsets = [8, 64], sizes = [8, 32], strides = [1, 1]} : vector<16x128xf32> to vector<8x32xf32>
    %149 = arith.truncf %148 : vector<8x32xf32> to vector<8x32xbf16>
    %150 = vector.extract_strided_slice %17 {offsets = [8, 64], sizes = [8, 32], strides = [1, 1]} : vector<16x128xf32> to vector<8x32xf32>
    %151 = arith.truncf %150 : vector<8x32xf32> to vector<8x32xbf16>
    %152 = vector.extract_strided_slice %18 {offsets = [8, 64], sizes = [8, 32], strides = [1, 1]} : vector<16x128xf32> to vector<8x32xf32>
    %153 = arith.truncf %152 : vector<8x32xf32> to vector<8x32xbf16>
    %cst_37 = arith.constant dense<0.000000e+00> : vector<8x8xf32>
    %154 = tpu.matmul %149, %151, %cst_37 {dimension_numbers = #tpu.dot_dimension_numbers<[1], [1], [0], [0], [0, 0, 1, 0], [], []>} : vector<8x32xbf16>, vector<8x32xbf16>, vector<8x8xf32> -> vector<8x8xf32>
    %155 = vector.broadcast %105 : vector<1x8xf32> to vector<8x8xf32>
    %156 = arith.addf %154, %155 : vector<8x8xf32>
    %cst_38 = arith.constant dense<0xFF800000> : vector<8xf32>
    %157 = vector.multi_reduction <maximumf>, %156, %cst_38 [1] : vector<8x8xf32> to vector<8xf32>
    %158 = vector.shape_cast %157 : vector<8xf32> to vector<8x1xf32>
    %159 = vector.broadcast %158 : vector<8x1xf32> to vector<8x8xf32>
    %160 = arith.subf %156, %159 : vector<8x8xf32>
    %161 = math.exp %160 : vector<8x8xf32>
    %cst_39 = arith.constant dense<0.000000e+00> : vector<8xf32>
    %162 = vector.multi_reduction <add>, %161, %cst_39 [1] : vector<8x8xf32> to vector<8xf32>
    %163 = vector.shape_cast %162 : vector<8xf32> to vector<8x1xf32>
    %164 = tpu.reciprocal %163 {approx = true} : vector<8x1xf32> -> vector<8x1xf32>
    %165 = vector.broadcast %164 : vector<8x1xf32> to vector<8x8xf32>
    %166 = arith.mulf %161, %165 : vector<8x8xf32>
    %167 = arith.truncf %166 : vector<8x8xf32> to vector<8x8xbf16>
    %cst_40 = arith.constant dense<0.000000e+00> : vector<8x32xf32>
    %168 = tpu.matmul %167, %153, %cst_40 {dimension_numbers = #tpu.dot_dimension_numbers<[1], [0], [0], [1], [0, 0, 1, 1], [], []>} : vector<8x8xbf16>, vector<8x32xbf16>, vector<8x32xf32> -> vector<8x32xf32>
    %169 = vector.extract_strided_slice %16 {offsets = [8, 96], sizes = [8, 32], strides = [1, 1]} : vector<16x128xf32> to vector<8x32xf32>
    %170 = arith.truncf %169 : vector<8x32xf32> to vector<8x32xbf16>
    %171 = vector.extract_strided_slice %17 {offsets = [8, 96], sizes = [8, 32], strides = [1, 1]} : vector<16x128xf32> to vector<8x32xf32>
    %172 = arith.truncf %171 : vector<8x32xf32> to vector<8x32xbf16>
    %173 = vector.extract_strided_slice %18 {offsets = [8, 96], sizes = [8, 32], strides = [1, 1]} : vector<16x128xf32> to vector<8x32xf32>
    %174 = arith.truncf %173 : vector<8x32xf32> to vector<8x32xbf16>
    %cst_41 = arith.constant dense<0.000000e+00> : vector<8x8xf32>
    %175 = tpu.matmul %170, %172, %cst_41 {dimension_numbers = #tpu.dot_dimension_numbers<[1], [1], [0], [0], [0, 0, 1, 0], [], []>} : vector<8x32xbf16>, vector<8x32xbf16>, vector<8x8xf32> -> vector<8x8xf32>
    %176 = vector.broadcast %105 : vector<1x8xf32> to vector<8x8xf32>
    %177 = arith.addf %175, %176 : vector<8x8xf32>
    %cst_42 = arith.constant dense<0xFF800000> : vector<8xf32>
    %178 = vector.multi_reduction <maximumf>, %177, %cst_42 [1] : vector<8x8xf32> to vector<8xf32>
    %179 = vector.shape_cast %178 : vector<8xf32> to vector<8x1xf32>
    %180 = vector.broadcast %179 : vector<8x1xf32> to vector<8x8xf32>
    %181 = arith.subf %177, %180 : vector<8x8xf32>
    %182 = math.exp %181 : vector<8x8xf32>
    %cst_43 = arith.constant dense<0.000000e+00> : vector<8xf32>
    %183 = vector.multi_reduction <add>, %182, %cst_43 [1] : vector<8x8xf32> to vector<8xf32>
    %184 = vector.shape_cast %183 : vector<8xf32> to vector<8x1xf32>
    %185 = tpu.reciprocal %184 {approx = true} : vector<8x1xf32> -> vector<8x1xf32>
    %186 = vector.broadcast %185 : vector<8x1xf32> to vector<8x8xf32>
    %187 = arith.mulf %182, %186 : vector<8x8xf32>
    %188 = arith.truncf %187 : vector<8x8xf32> to vector<8x8xbf16>
    %cst_44 = arith.constant dense<0.000000e+00> : vector<8x32xf32>
    %189 = tpu.matmul %188, %174, %cst_44 {dimension_numbers = #tpu.dot_dimension_numbers<[1], [0], [0], [1], [0, 0, 1, 1], [], []>} : vector<8x8xbf16>, vector<8x32xbf16>, vector<8x32xf32> -> vector<8x32xf32>
    %190 = tpu.concatenate %126, %147, %168, %189 in 1 : vector<8x32xf32>, vector<8x32xf32>, vector<8x32xf32>, vector<8x32xf32> -> vector<8x128xf32>
    %191 = tpu.concatenate %104, %190 in 0 : vector<8x128xf32>, vector<8x128xf32> -> vector<16x128xf32>
    %192 = arith.truncf %191 : vector<16x128xf32> to vector<16x128xbf16>
    %c0_45 = arith.constant 0 : index
    %c0_46 = arith.constant 0 : index
    %c0_47 = arith.constant 0 : index
    %193 = vector.load %arg5[%c0_45, %c0_46, %c0_47] : memref<2x128x128xbf16, #tpu.memory_space<vmem>>, vector<1x128x128xbf16>
    %194 = vector.shape_cast %193 : vector<1x128x128xbf16> to vector<128x128xbf16>
    %cst_48 = arith.constant dense<0.000000e+00> : vector<16x128xf32>
    %195 = tpu.matmul %192, %194, %cst_48 {dimension_numbers = #tpu.dot_dimension_numbers<[1], [0], [0], [1], [0, 0, 1, 1], [], []>} : vector<16x128xbf16>, vector<128x128xbf16>, vector<16x128xf32> -> vector<16x128xf32>
    %c0_49 = arith.constant 0 : index
    %c0_50 = arith.constant 0 : index
    %c0_51 = arith.constant 0 : index
    %196 = vector.load %arg6[%c0_49, %c0_50, %c0_51] : memref<2x1x128xf32, #tpu.memory_space<vmem>>, vector<1x1x128xf32>
    %197 = vector.shape_cast %196 : vector<1x1x128xf32> to vector<1x128xf32>
    %198 = vector.broadcast %197 : vector<1x128xf32> to vector<16x128xf32>
    %199 = arith.addf %195, %198 : vector<16x128xf32>
    %200 = arith.addf %1, %199 : vector<16x128xf32>
    %c0_52 = arith.constant 0 : index
    %c0_53 = arith.constant 0 : index
    %c0_54 = arith.constant 0 : index
    %201 = vector.load %arg7[%c0_52, %c0_53, %c0_54] : memref<2x1x128xf32, #tpu.memory_space<vmem>>, vector<1x1x128xf32>
    %202 = vector.shape_cast %201 : vector<1x1x128xf32> to vector<1x128xf32>
    %c0_55 = arith.constant 0 : index
    %c0_56 = arith.constant 0 : index
    %c0_57 = arith.constant 0 : index
    %203 = vector.load %arg8[%c0_55, %c0_56, %c0_57] : memref<2x1x128xf32, #tpu.memory_space<vmem>>, vector<1x1x128xf32>
    %204 = vector.shape_cast %203 : vector<1x1x128xf32> to vector<1x128xf32>
    %cst_58 = arith.constant dense<0.000000e+00> : vector<16xf32>
    %205 = vector.multi_reduction <add>, %200, %cst_58 [1] : vector<16x128xf32> to vector<16xf32>
    %206 = vector.shape_cast %205 : vector<16xf32> to vector<16x1xf32>
    %cst_59 = arith.constant 1.280000e+02 : f32
    %207 = vector.broadcast %cst_59 : f32 to vector<16x1xf32>
    %208 = arith.divf %206, %207 : vector<16x1xf32>
    %209 = vector.broadcast %208 : vector<16x1xf32> to vector<16x128xf32>
    %210 = arith.subf %200, %209 : vector<16x128xf32>
    %211 = arith.mulf %210, %210 : vector<16x128xf32>
    %cst_60 = arith.constant dense<0.000000e+00> : vector<16xf32>
    %212 = vector.multi_reduction <add>, %211, %cst_60 [1] : vector<16x128xf32> to vector<16xf32>
    %213 = vector.shape_cast %212 : vector<16xf32> to vector<16x1xf32>
    %cst_61 = arith.constant 1.280000e+02 : f32
    %214 = vector.broadcast %cst_61 : f32 to vector<16x1xf32>
    %215 = arith.divf %213, %214 : vector<16x1xf32>
    %cst_62 = arith.constant 9.99999974E-6 : f32
    %216 = vector.broadcast %cst_62 : f32 to vector<16x1xf32>
    %217 = arith.addf %215, %216 : vector<16x1xf32>
    %218 = math.rsqrt %217 : vector<16x1xf32>
    %219 = vector.broadcast %218 : vector<16x1xf32> to vector<16x128xf32>
    %220 = arith.mulf %210, %219 : vector<16x128xf32>
    %221 = vector.broadcast %202 : vector<1x128xf32> to vector<16x128xf32>
    %222 = arith.mulf %220, %221 : vector<16x128xf32>
    %223 = vector.broadcast %204 : vector<1x128xf32> to vector<16x128xf32>
    %224 = arith.addf %222, %223 : vector<16x128xf32>
    %225 = arith.truncf %224 : vector<16x128xf32> to vector<16x128xbf16>
    %c0_63 = arith.constant 0 : index
    %c0_64 = arith.constant 0 : index
    %c0_65 = arith.constant 0 : index
    %226 = vector.load %arg9[%c0_63, %c0_64, %c0_65] : memref<2x128x256xbf16, #tpu.memory_space<vmem>>, vector<1x128x256xbf16>
    %227 = vector.shape_cast %226 : vector<1x128x256xbf16> to vector<128x256xbf16>
    %cst_66 = arith.constant dense<0.000000e+00> : vector<16x256xf32>
    %228 = tpu.matmul %225, %227, %cst_66 {dimension_numbers = #tpu.dot_dimension_numbers<[1], [0], [0], [1], [0, 0, 1, 1], [], []>} : vector<16x128xbf16>, vector<128x256xbf16>, vector<16x256xf32> -> vector<16x256xf32>
    %c0_67 = arith.constant 0 : index
    %c0_68 = arith.constant 0 : index
    %c0_69 = arith.constant 0 : index
    %229 = vector.load %arg10[%c0_67, %c0_68, %c0_69] : memref<2x1x256xf32, #tpu.memory_space<vmem>>, vector<1x1x256xf32>
    %230 = vector.shape_cast %229 : vector<1x1x256xf32> to vector<1x256xf32>
    %231 = vector.broadcast %230 : vector<1x256xf32> to vector<16x256xf32>
    %232 = arith.addf %228, %231 : vector<16x256xf32>
    %cst_70 = arith.constant 0.000000e+00 : f32
    %233 = vector.broadcast %cst_70 : f32 to vector<16x256xf32>
    %234 = arith.maximumf %232, %233 : vector<16x256xf32>
    %235 = arith.truncf %234 : vector<16x256xf32> to vector<16x256xbf16>
    %c0_71 = arith.constant 0 : index
    %c0_72 = arith.constant 0 : index
    %c0_73 = arith.constant 0 : index
    %236 = vector.load %arg11[%c0_71, %c0_72, %c0_73] : memref<2x256x128xbf16, #tpu.memory_space<vmem>>, vector<1x256x128xbf16>
    %237 = vector.shape_cast %236 : vector<1x256x128xbf16> to vector<256x128xbf16>
    %cst_74 = arith.constant dense<0.000000e+00> : vector<16x128xf32>
    %238 = tpu.matmul %235, %237, %cst_74 {dimension_numbers = #tpu.dot_dimension_numbers<[1], [0], [0], [1], [0, 0, 1, 1], [], []>} : vector<16x256xbf16>, vector<256x128xbf16>, vector<16x128xf32> -> vector<16x128xf32>
    %c0_75 = arith.constant 0 : index
    %c0_76 = arith.constant 0 : index
    %c0_77 = arith.constant 0 : index
    %239 = vector.load %arg12[%c0_75, %c0_76, %c0_77] : memref<2x1x128xf32, #tpu.memory_space<vmem>>, vector<1x1x128xf32>
    %240 = vector.shape_cast %239 : vector<1x1x128xf32> to vector<1x128xf32>
    %241 = vector.broadcast %240 : vector<1x128xf32> to vector<16x128xf32>
    %242 = arith.addf %238, %241 : vector<16x128xf32>
    %243 = arith.addf %224, %242 : vector<16x128xf32>
    %c0_78 = arith.constant 0 : index
    %c0_79 = arith.constant 0 : index
    %c0_80 = arith.constant 0 : index
    %244 = vector.load %arg13[%c0_78, %c0_79, %c0_80] : memref<2x1x128xf32, #tpu.memory_space<vmem>>, vector<1x1x128xf32>
    %245 = vector.shape_cast %244 : vector<1x1x128xf32> to vector<1x128xf32>
    %c0_81 = arith.constant 0 : index
    %c0_82 = arith.constant 0 : index
    %c0_83 = arith.constant 0 : index
    %246 = vector.load %arg14[%c0_81, %c0_82, %c0_83] : memref<2x1x128xf32, #tpu.memory_space<vmem>>, vector<1x1x128xf32>
    %247 = vector.shape_cast %246 : vector<1x1x128xf32> to vector<1x128xf32>
    %cst_84 = arith.constant dense<0.000000e+00> : vector<16xf32>
    %248 = vector.multi_reduction <add>, %243, %cst_84 [1] : vector<16x128xf32> to vector<16xf32>
    %249 = vector.shape_cast %248 : vector<16xf32> to vector<16x1xf32>
    %cst_85 = arith.constant 1.280000e+02 : f32
    %250 = vector.broadcast %cst_85 : f32 to vector<16x1xf32>
    %251 = arith.divf %249, %250 : vector<16x1xf32>
    %252 = vector.broadcast %251 : vector<16x1xf32> to vector<16x128xf32>
    %253 = arith.subf %243, %252 : vector<16x128xf32>
    %254 = arith.mulf %253, %253 : vector<16x128xf32>
    %cst_86 = arith.constant dense<0.000000e+00> : vector<16xf32>
    %255 = vector.multi_reduction <add>, %254, %cst_86 [1] : vector<16x128xf32> to vector<16xf32>
    %256 = vector.shape_cast %255 : vector<16xf32> to vector<16x1xf32>
    %cst_87 = arith.constant 1.280000e+02 : f32
    %257 = vector.broadcast %cst_87 : f32 to vector<16x1xf32>
    %258 = arith.divf %256, %257 : vector<16x1xf32>
    %cst_88 = arith.constant 9.99999974E-6 : f32
    %259 = vector.broadcast %cst_88 : f32 to vector<16x1xf32>
    %260 = arith.addf %258, %259 : vector<16x1xf32>
    %261 = math.rsqrt %260 : vector<16x1xf32>
    %262 = vector.broadcast %261 : vector<16x1xf32> to vector<16x128xf32>
    %263 = arith.mulf %253, %262 : vector<16x128xf32>
    %264 = vector.broadcast %245 : vector<1x128xf32> to vector<16x128xf32>
    %265 = arith.mulf %263, %264 : vector<16x128xf32>
    %266 = vector.broadcast %247 : vector<1x128xf32> to vector<16x128xf32>
    %267 = arith.addf %265, %266 : vector<16x128xf32>
    %268 = arith.truncf %267 : vector<16x128xf32> to vector<16x128xbf16>
    %c1 = arith.constant 1 : index
    %c0_89 = arith.constant 0 : index
    %c0_90 = arith.constant 0 : index
    %269 = vector.load %arg3[%c1, %c0_89, %c0_90] : memref<2x128x384xbf16, #tpu.memory_space<vmem>>, vector<1x128x384xbf16>
    %270 = vector.shape_cast %269 : vector<1x128x384xbf16> to vector<128x384xbf16>
    %cst_91 = arith.constant dense<0.000000e+00> : vector<16x384xf32>
    %271 = tpu.matmul %268, %270, %cst_91 {dimension_numbers = #tpu.dot_dimension_numbers<[1], [0], [0], [1], [0, 0, 1, 1], [], []>} : vector<16x128xbf16>, vector<128x384xbf16>, vector<16x384xf32> -> vector<16x384xf32>
    %c1_92 = arith.constant 1 : index
    %c0_93 = arith.constant 0 : index
    %c0_94 = arith.constant 0 : index
    %272 = vector.load %arg4[%c1_92, %c0_93, %c0_94] : memref<2x1x384xf32, #tpu.memory_space<vmem>>, vector<1x1x384xf32>
    %273 = vector.shape_cast %272 : vector<1x1x384xf32> to vector<1x384xf32>
    %274 = vector.broadcast %273 : vector<1x384xf32> to vector<16x384xf32>
    %275 = arith.addf %271, %274 : vector<16x384xf32>
    %276 = vector.extract_strided_slice %275 {offsets = [0, 0], sizes = [16, 128], strides = [1, 1]} : vector<16x384xf32> to vector<16x128xf32>
    %277 = vector.extract_strided_slice %275 {offsets = [0, 128], sizes = [16, 128], strides = [1, 1]} : vector<16x384xf32> to vector<16x128xf32>
    %278 = vector.extract_strided_slice %275 {offsets = [0, 256], sizes = [16, 128], strides = [1, 1]} : vector<16x384xf32> to vector<16x128xf32>
    %279 = vector.extract_strided_slice %7 {offsets = [0, 0], sizes = [1, 8], strides = [1, 1]} : vector<2x8xf32> to vector<1x8xf32>
    %280 = vector.extract_strided_slice %276 {offsets = [0, 0], sizes = [8, 32], strides = [1, 1]} : vector<16x128xf32> to vector<8x32xf32>
    %281 = arith.truncf %280 : vector<8x32xf32> to vector<8x32xbf16>
    %282 = vector.extract_strided_slice %277 {offsets = [0, 0], sizes = [8, 32], strides = [1, 1]} : vector<16x128xf32> to vector<8x32xf32>
    %283 = arith.truncf %282 : vector<8x32xf32> to vector<8x32xbf16>
    %284 = vector.extract_strided_slice %278 {offsets = [0, 0], sizes = [8, 32], strides = [1, 1]} : vector<16x128xf32> to vector<8x32xf32>
    %285 = arith.truncf %284 : vector<8x32xf32> to vector<8x32xbf16>
    %cst_95 = arith.constant dense<0.000000e+00> : vector<8x8xf32>
    %286 = tpu.matmul %281, %283, %cst_95 {dimension_numbers = #tpu.dot_dimension_numbers<[1], [1], [0], [0], [0, 0, 1, 0], [], []>} : vector<8x32xbf16>, vector<8x32xbf16>, vector<8x8xf32> -> vector<8x8xf32>
    %287 = vector.broadcast %279 : vector<1x8xf32> to vector<8x8xf32>
    %288 = arith.addf %286, %287 : vector<8x8xf32>
    %cst_96 = arith.constant dense<0xFF800000> : vector<8xf32>
    %289 = vector.multi_reduction <maximumf>, %288, %cst_96 [1] : vector<8x8xf32> to vector<8xf32>
    %290 = vector.shape_cast %289 : vector<8xf32> to vector<8x1xf32>
    %291 = vector.broadcast %290 : vector<8x1xf32> to vector<8x8xf32>
    %292 = arith.subf %288, %291 : vector<8x8xf32>
    %293 = math.exp %292 : vector<8x8xf32>
    %cst_97 = arith.constant dense<0.000000e+00> : vector<8xf32>
    %294 = vector.multi_reduction <add>, %293, %cst_97 [1] : vector<8x8xf32> to vector<8xf32>
    %295 = vector.shape_cast %294 : vector<8xf32> to vector<8x1xf32>
    %296 = tpu.reciprocal %295 {approx = true} : vector<8x1xf32> -> vector<8x1xf32>
    %297 = vector.broadcast %296 : vector<8x1xf32> to vector<8x8xf32>
    %298 = arith.mulf %293, %297 : vector<8x8xf32>
    %299 = arith.truncf %298 : vector<8x8xf32> to vector<8x8xbf16>
    %cst_98 = arith.constant dense<0.000000e+00> : vector<8x32xf32>
    %300 = tpu.matmul %299, %285, %cst_98 {dimension_numbers = #tpu.dot_dimension_numbers<[1], [0], [0], [1], [0, 0, 1, 1], [], []>} : vector<8x8xbf16>, vector<8x32xbf16>, vector<8x32xf32> -> vector<8x32xf32>
    %301 = vector.extract_strided_slice %276 {offsets = [0, 32], sizes = [8, 32], strides = [1, 1]} : vector<16x128xf32> to vector<8x32xf32>
    %302 = arith.truncf %301 : vector<8x32xf32> to vector<8x32xbf16>
    %303 = vector.extract_strided_slice %277 {offsets = [0, 32], sizes = [8, 32], strides = [1, 1]} : vector<16x128xf32> to vector<8x32xf32>
    %304 = arith.truncf %303 : vector<8x32xf32> to vector<8x32xbf16>
    %305 = vector.extract_strided_slice %278 {offsets = [0, 32], sizes = [8, 32], strides = [1, 1]} : vector<16x128xf32> to vector<8x32xf32>
    %306 = arith.truncf %305 : vector<8x32xf32> to vector<8x32xbf16>
    %cst_99 = arith.constant dense<0.000000e+00> : vector<8x8xf32>
    %307 = tpu.matmul %302, %304, %cst_99 {dimension_numbers = #tpu.dot_dimension_numbers<[1], [1], [0], [0], [0, 0, 1, 0], [], []>} : vector<8x32xbf16>, vector<8x32xbf16>, vector<8x8xf32> -> vector<8x8xf32>
    %308 = vector.broadcast %279 : vector<1x8xf32> to vector<8x8xf32>
    %309 = arith.addf %307, %308 : vector<8x8xf32>
    %cst_100 = arith.constant dense<0xFF800000> : vector<8xf32>
    %310 = vector.multi_reduction <maximumf>, %309, %cst_100 [1] : vector<8x8xf32> to vector<8xf32>
    %311 = vector.shape_cast %310 : vector<8xf32> to vector<8x1xf32>
    %312 = vector.broadcast %311 : vector<8x1xf32> to vector<8x8xf32>
    %313 = arith.subf %309, %312 : vector<8x8xf32>
    %314 = math.exp %313 : vector<8x8xf32>
    %cst_101 = arith.constant dense<0.000000e+00> : vector<8xf32>
    %315 = vector.multi_reduction <add>, %314, %cst_101 [1] : vector<8x8xf32> to vector<8xf32>
    %316 = vector.shape_cast %315 : vector<8xf32> to vector<8x1xf32>
    %317 = tpu.reciprocal %316 {approx = true} : vector<8x1xf32> -> vector<8x1xf32>
    %318 = vector.broadcast %317 : vector<8x1xf32> to vector<8x8xf32>
    %319 = arith.mulf %314, %318 : vector<8x8xf32>
    %320 = arith.truncf %319 : vector<8x8xf32> to vector<8x8xbf16>
    %cst_102 = arith.constant dense<0.000000e+00> : vector<8x32xf32>
    %321 = tpu.matmul %320, %306, %cst_102 {dimension_numbers = #tpu.dot_dimension_numbers<[1], [0], [0], [1], [0, 0, 1, 1], [], []>} : vector<8x8xbf16>, vector<8x32xbf16>, vector<8x32xf32> -> vector<8x32xf32>
    %322 = vector.extract_strided_slice %276 {offsets = [0, 64], sizes = [8, 32], strides = [1, 1]} : vector<16x128xf32> to vector<8x32xf32>
    %323 = arith.truncf %322 : vector<8x32xf32> to vector<8x32xbf16>
    %324 = vector.extract_strided_slice %277 {offsets = [0, 64], sizes = [8, 32], strides = [1, 1]} : vector<16x128xf32> to vector<8x32xf32>
    %325 = arith.truncf %324 : vector<8x32xf32> to vector<8x32xbf16>
    %326 = vector.extract_strided_slice %278 {offsets = [0, 64], sizes = [8, 32], strides = [1, 1]} : vector<16x128xf32> to vector<8x32xf32>
    %327 = arith.truncf %326 : vector<8x32xf32> to vector<8x32xbf16>
    %cst_103 = arith.constant dense<0.000000e+00> : vector<8x8xf32>
    %328 = tpu.matmul %323, %325, %cst_103 {dimension_numbers = #tpu.dot_dimension_numbers<[1], [1], [0], [0], [0, 0, 1, 0], [], []>} : vector<8x32xbf16>, vector<8x32xbf16>, vector<8x8xf32> -> vector<8x8xf32>
    %329 = vector.broadcast %279 : vector<1x8xf32> to vector<8x8xf32>
    %330 = arith.addf %328, %329 : vector<8x8xf32>
    %cst_104 = arith.constant dense<0xFF800000> : vector<8xf32>
    %331 = vector.multi_reduction <maximumf>, %330, %cst_104 [1] : vector<8x8xf32> to vector<8xf32>
    %332 = vector.shape_cast %331 : vector<8xf32> to vector<8x1xf32>
    %333 = vector.broadcast %332 : vector<8x1xf32> to vector<8x8xf32>
    %334 = arith.subf %330, %333 : vector<8x8xf32>
    %335 = math.exp %334 : vector<8x8xf32>
    %cst_105 = arith.constant dense<0.000000e+00> : vector<8xf32>
    %336 = vector.multi_reduction <add>, %335, %cst_105 [1] : vector<8x8xf32> to vector<8xf32>
    %337 = vector.shape_cast %336 : vector<8xf32> to vector<8x1xf32>
    %338 = tpu.reciprocal %337 {approx = true} : vector<8x1xf32> -> vector<8x1xf32>
    %339 = vector.broadcast %338 : vector<8x1xf32> to vector<8x8xf32>
    %340 = arith.mulf %335, %339 : vector<8x8xf32>
    %341 = arith.truncf %340 : vector<8x8xf32> to vector<8x8xbf16>
    %cst_106 = arith.constant dense<0.000000e+00> : vector<8x32xf32>
    %342 = tpu.matmul %341, %327, %cst_106 {dimension_numbers = #tpu.dot_dimension_numbers<[1], [0], [0], [1], [0, 0, 1, 1], [], []>} : vector<8x8xbf16>, vector<8x32xbf16>, vector<8x32xf32> -> vector<8x32xf32>
    %343 = vector.extract_strided_slice %276 {offsets = [0, 96], sizes = [8, 32], strides = [1, 1]} : vector<16x128xf32> to vector<8x32xf32>
    %344 = arith.truncf %343 : vector<8x32xf32> to vector<8x32xbf16>
    %345 = vector.extract_strided_slice %277 {offsets = [0, 96], sizes = [8, 32], strides = [1, 1]} : vector<16x128xf32> to vector<8x32xf32>
    %346 = arith.truncf %345 : vector<8x32xf32> to vector<8x32xbf16>
    %347 = vector.extract_strided_slice %278 {offsets = [0, 96], sizes = [8, 32], strides = [1, 1]} : vector<16x128xf32> to vector<8x32xf32>
    %348 = arith.truncf %347 : vector<8x32xf32> to vector<8x32xbf16>
    %cst_107 = arith.constant dense<0.000000e+00> : vector<8x8xf32>
    %349 = tpu.matmul %344, %346, %cst_107 {dimension_numbers = #tpu.dot_dimension_numbers<[1], [1], [0], [0], [0, 0, 1, 0], [], []>} : vector<8x32xbf16>, vector<8x32xbf16>, vector<8x8xf32> -> vector<8x8xf32>
    %350 = vector.broadcast %279 : vector<1x8xf32> to vector<8x8xf32>
    %351 = arith.addf %349, %350 : vector<8x8xf32>
    %cst_108 = arith.constant dense<0xFF800000> : vector<8xf32>
    %352 = vector.multi_reduction <maximumf>, %351, %cst_108 [1] : vector<8x8xf32> to vector<8xf32>
    %353 = vector.shape_cast %352 : vector<8xf32> to vector<8x1xf32>
    %354 = vector.broadcast %353 : vector<8x1xf32> to vector<8x8xf32>
    %355 = arith.subf %351, %354 : vector<8x8xf32>
    %356 = math.exp %355 : vector<8x8xf32>
    %cst_109 = arith.constant dense<0.000000e+00> : vector<8xf32>
    %357 = vector.multi_reduction <add>, %356, %cst_109 [1] : vector<8x8xf32> to vector<8xf32>
    %358 = vector.shape_cast %357 : vector<8xf32> to vector<8x1xf32>
    %359 = tpu.reciprocal %358 {approx = true} : vector<8x1xf32> -> vector<8x1xf32>
    %360 = vector.broadcast %359 : vector<8x1xf32> to vector<8x8xf32>
    %361 = arith.mulf %356, %360 : vector<8x8xf32>
    %362 = arith.truncf %361 : vector<8x8xf32> to vector<8x8xbf16>
    %cst_110 = arith.constant dense<0.000000e+00> : vector<8x32xf32>
    %363 = tpu.matmul %362, %348, %cst_110 {dimension_numbers = #tpu.dot_dimension_numbers<[1], [0], [0], [1], [0, 0, 1, 1], [], []>} : vector<8x8xbf16>, vector<8x32xbf16>, vector<8x32xf32> -> vector<8x32xf32>
    %364 = tpu.concatenate %300, %321, %342, %363 in 1 : vector<8x32xf32>, vector<8x32xf32>, vector<8x32xf32>, vector<8x32xf32> -> vector<8x128xf32>
    %365 = vector.extract_strided_slice %7 {offsets = [1, 0], sizes = [1, 8], strides = [1, 1]} : vector<2x8xf32> to vector<1x8xf32>
    %366 = vector.extract_strided_slice %276 {offsets = [8, 0], sizes = [8, 32], strides = [1, 1]} : vector<16x128xf32> to vector<8x32xf32>
    %367 = arith.truncf %366 : vector<8x32xf32> to vector<8x32xbf16>
    %368 = vector.extract_strided_slice %277 {offsets = [8, 0], sizes = [8, 32], strides = [1, 1]} : vector<16x128xf32> to vector<8x32xf32>
    %369 = arith.truncf %368 : vector<8x32xf32> to vector<8x32xbf16>
    %370 = vector.extract_strided_slice %278 {offsets = [8, 0], sizes = [8, 32], strides = [1, 1]} : vector<16x128xf32> to vector<8x32xf32>
    %371 = arith.truncf %370 : vector<8x32xf32> to vector<8x32xbf16>
    %cst_111 = arith.constant dense<0.000000e+00> : vector<8x8xf32>
    %372 = tpu.matmul %367, %369, %cst_111 {dimension_numbers = #tpu.dot_dimension_numbers<[1], [1], [0], [0], [0, 0, 1, 0], [], []>} : vector<8x32xbf16>, vector<8x32xbf16>, vector<8x8xf32> -> vector<8x8xf32>
    %373 = vector.broadcast %365 : vector<1x8xf32> to vector<8x8xf32>
    %374 = arith.addf %372, %373 : vector<8x8xf32>
    %cst_112 = arith.constant dense<0xFF800000> : vector<8xf32>
    %375 = vector.multi_reduction <maximumf>, %374, %cst_112 [1] : vector<8x8xf32> to vector<8xf32>
    %376 = vector.shape_cast %375 : vector<8xf32> to vector<8x1xf32>
    %377 = vector.broadcast %376 : vector<8x1xf32> to vector<8x8xf32>
    %378 = arith.subf %374, %377 : vector<8x8xf32>
    %379 = math.exp %378 : vector<8x8xf32>
    %cst_113 = arith.constant dense<0.000000e+00> : vector<8xf32>
    %380 = vector.multi_reduction <add>, %379, %cst_113 [1] : vector<8x8xf32> to vector<8xf32>
    %381 = vector.shape_cast %380 : vector<8xf32> to vector<8x1xf32>
    %382 = tpu.reciprocal %381 {approx = true} : vector<8x1xf32> -> vector<8x1xf32>
    %383 = vector.broadcast %382 : vector<8x1xf32> to vector<8x8xf32>
    %384 = arith.mulf %379, %383 : vector<8x8xf32>
    %385 = arith.truncf %384 : vector<8x8xf32> to vector<8x8xbf16>
    %cst_114 = arith.constant dense<0.000000e+00> : vector<8x32xf32>
    %386 = tpu.matmul %385, %371, %cst_114 {dimension_numbers = #tpu.dot_dimension_numbers<[1], [0], [0], [1], [0, 0, 1, 1], [], []>} : vector<8x8xbf16>, vector<8x32xbf16>, vector<8x32xf32> -> vector<8x32xf32>
    %387 = vector.extract_strided_slice %276 {offsets = [8, 32], sizes = [8, 32], strides = [1, 1]} : vector<16x128xf32> to vector<8x32xf32>
    %388 = arith.truncf %387 : vector<8x32xf32> to vector<8x32xbf16>
    %389 = vector.extract_strided_slice %277 {offsets = [8, 32], sizes = [8, 32], strides = [1, 1]} : vector<16x128xf32> to vector<8x32xf32>
    %390 = arith.truncf %389 : vector<8x32xf32> to vector<8x32xbf16>
    %391 = vector.extract_strided_slice %278 {offsets = [8, 32], sizes = [8, 32], strides = [1, 1]} : vector<16x128xf32> to vector<8x32xf32>
    %392 = arith.truncf %391 : vector<8x32xf32> to vector<8x32xbf16>
    %cst_115 = arith.constant dense<0.000000e+00> : vector<8x8xf32>
    %393 = tpu.matmul %388, %390, %cst_115 {dimension_numbers = #tpu.dot_dimension_numbers<[1], [1], [0], [0], [0, 0, 1, 0], [], []>} : vector<8x32xbf16>, vector<8x32xbf16>, vector<8x8xf32> -> vector<8x8xf32>
    %394 = vector.broadcast %365 : vector<1x8xf32> to vector<8x8xf32>
    %395 = arith.addf %393, %394 : vector<8x8xf32>
    %cst_116 = arith.constant dense<0xFF800000> : vector<8xf32>
    %396 = vector.multi_reduction <maximumf>, %395, %cst_116 [1] : vector<8x8xf32> to vector<8xf32>
    %397 = vector.shape_cast %396 : vector<8xf32> to vector<8x1xf32>
    %398 = vector.broadcast %397 : vector<8x1xf32> to vector<8x8xf32>
    %399 = arith.subf %395, %398 : vector<8x8xf32>
    %400 = math.exp %399 : vector<8x8xf32>
    %cst_117 = arith.constant dense<0.000000e+00> : vector<8xf32>
    %401 = vector.multi_reduction <add>, %400, %cst_117 [1] : vector<8x8xf32> to vector<8xf32>
    %402 = vector.shape_cast %401 : vector<8xf32> to vector<8x1xf32>
    %403 = tpu.reciprocal %402 {approx = true} : vector<8x1xf32> -> vector<8x1xf32>
    %404 = vector.broadcast %403 : vector<8x1xf32> to vector<8x8xf32>
    %405 = arith.mulf %400, %404 : vector<8x8xf32>
    %406 = arith.truncf %405 : vector<8x8xf32> to vector<8x8xbf16>
    %cst_118 = arith.constant dense<0.000000e+00> : vector<8x32xf32>
    %407 = tpu.matmul %406, %392, %cst_118 {dimension_numbers = #tpu.dot_dimension_numbers<[1], [0], [0], [1], [0, 0, 1, 1], [], []>} : vector<8x8xbf16>, vector<8x32xbf16>, vector<8x32xf32> -> vector<8x32xf32>
    %408 = vector.extract_strided_slice %276 {offsets = [8, 64], sizes = [8, 32], strides = [1, 1]} : vector<16x128xf32> to vector<8x32xf32>
    %409 = arith.truncf %408 : vector<8x32xf32> to vector<8x32xbf16>
    %410 = vector.extract_strided_slice %277 {offsets = [8, 64], sizes = [8, 32], strides = [1, 1]} : vector<16x128xf32> to vector<8x32xf32>
    %411 = arith.truncf %410 : vector<8x32xf32> to vector<8x32xbf16>
    %412 = vector.extract_strided_slice %278 {offsets = [8, 64], sizes = [8, 32], strides = [1, 1]} : vector<16x128xf32> to vector<8x32xf32>
    %413 = arith.truncf %412 : vector<8x32xf32> to vector<8x32xbf16>
    %cst_119 = arith.constant dense<0.000000e+00> : vector<8x8xf32>
    %414 = tpu.matmul %409, %411, %cst_119 {dimension_numbers = #tpu.dot_dimension_numbers<[1], [1], [0], [0], [0, 0, 1, 0], [], []>} : vector<8x32xbf16>, vector<8x32xbf16>, vector<8x8xf32> -> vector<8x8xf32>
    %415 = vector.broadcast %365 : vector<1x8xf32> to vector<8x8xf32>
    %416 = arith.addf %414, %415 : vector<8x8xf32>
    %cst_120 = arith.constant dense<0xFF800000> : vector<8xf32>
    %417 = vector.multi_reduction <maximumf>, %416, %cst_120 [1] : vector<8x8xf32> to vector<8xf32>
    %418 = vector.shape_cast %417 : vector<8xf32> to vector<8x1xf32>
    %419 = vector.broadcast %418 : vector<8x1xf32> to vector<8x8xf32>
    %420 = arith.subf %416, %419 : vector<8x8xf32>
    %421 = math.exp %420 : vector<8x8xf32>
    %cst_121 = arith.constant dense<0.000000e+00> : vector<8xf32>
    %422 = vector.multi_reduction <add>, %421, %cst_121 [1] : vector<8x8xf32> to vector<8xf32>
    %423 = vector.shape_cast %422 : vector<8xf32> to vector<8x1xf32>
    %424 = tpu.reciprocal %423 {approx = true} : vector<8x1xf32> -> vector<8x1xf32>
    %425 = vector.broadcast %424 : vector<8x1xf32> to vector<8x8xf32>
    %426 = arith.mulf %421, %425 : vector<8x8xf32>
    %427 = arith.truncf %426 : vector<8x8xf32> to vector<8x8xbf16>
    %cst_122 = arith.constant dense<0.000000e+00> : vector<8x32xf32>
    %428 = tpu.matmul %427, %413, %cst_122 {dimension_numbers = #tpu.dot_dimension_numbers<[1], [0], [0], [1], [0, 0, 1, 1], [], []>} : vector<8x8xbf16>, vector<8x32xbf16>, vector<8x32xf32> -> vector<8x32xf32>
    %429 = vector.extract_strided_slice %276 {offsets = [8, 96], sizes = [8, 32], strides = [1, 1]} : vector<16x128xf32> to vector<8x32xf32>
    %430 = arith.truncf %429 : vector<8x32xf32> to vector<8x32xbf16>
    %431 = vector.extract_strided_slice %277 {offsets = [8, 96], sizes = [8, 32], strides = [1, 1]} : vector<16x128xf32> to vector<8x32xf32>
    %432 = arith.truncf %431 : vector<8x32xf32> to vector<8x32xbf16>
    %433 = vector.extract_strided_slice %278 {offsets = [8, 96], sizes = [8, 32], strides = [1, 1]} : vector<16x128xf32> to vector<8x32xf32>
    %434 = arith.truncf %433 : vector<8x32xf32> to vector<8x32xbf16>
    %cst_123 = arith.constant dense<0.000000e+00> : vector<8x8xf32>
    %435 = tpu.matmul %430, %432, %cst_123 {dimension_numbers = #tpu.dot_dimension_numbers<[1], [1], [0], [0], [0, 0, 1, 0], [], []>} : vector<8x32xbf16>, vector<8x32xbf16>, vector<8x8xf32> -> vector<8x8xf32>
    %436 = vector.broadcast %365 : vector<1x8xf32> to vector<8x8xf32>
    %437 = arith.addf %435, %436 : vector<8x8xf32>
    %cst_124 = arith.constant dense<0xFF800000> : vector<8xf32>
    %438 = vector.multi_reduction <maximumf>, %437, %cst_124 [1] : vector<8x8xf32> to vector<8xf32>
    %439 = vector.shape_cast %438 : vector<8xf32> to vector<8x1xf32>
    %440 = vector.broadcast %439 : vector<8x1xf32> to vector<8x8xf32>
    %441 = arith.subf %437, %440 : vector<8x8xf32>
    %442 = math.exp %441 : vector<8x8xf32>
    %cst_125 = arith.constant dense<0.000000e+00> : vector<8xf32>
    %443 = vector.multi_reduction <add>, %442, %cst_125 [1] : vector<8x8xf32> to vector<8xf32>
    %444 = vector.shape_cast %443 : vector<8xf32> to vector<8x1xf32>
    %445 = tpu.reciprocal %444 {approx = true} : vector<8x1xf32> -> vector<8x1xf32>
    %446 = vector.broadcast %445 : vector<8x1xf32> to vector<8x8xf32>
    %447 = arith.mulf %442, %446 : vector<8x8xf32>
    %448 = arith.truncf %447 : vector<8x8xf32> to vector<8x8xbf16>
    %cst_126 = arith.constant dense<0.000000e+00> : vector<8x32xf32>
    %449 = tpu.matmul %448, %434, %cst_126 {dimension_numbers = #tpu.dot_dimension_numbers<[1], [0], [0], [1], [0, 0, 1, 1], [], []>} : vector<8x8xbf16>, vector<8x32xbf16>, vector<8x32xf32> -> vector<8x32xf32>
    %450 = tpu.concatenate %386, %407, %428, %449 in 1 : vector<8x32xf32>, vector<8x32xf32>, vector<8x32xf32>, vector<8x32xf32> -> vector<8x128xf32>
    %451 = tpu.concatenate %364, %450 in 0 : vector<8x128xf32>, vector<8x128xf32> -> vector<16x128xf32>
    %452 = arith.truncf %451 : vector<16x128xf32> to vector<16x128xbf16>
    %c1_127 = arith.constant 1 : index
    %c0_128 = arith.constant 0 : index
    %c0_129 = arith.constant 0 : index
    %453 = vector.load %arg5[%c1_127, %c0_128, %c0_129] : memref<2x128x128xbf16, #tpu.memory_space<vmem>>, vector<1x128x128xbf16>
    %454 = vector.shape_cast %453 : vector<1x128x128xbf16> to vector<128x128xbf16>
    %cst_130 = arith.constant dense<0.000000e+00> : vector<16x128xf32>
    %455 = tpu.matmul %452, %454, %cst_130 {dimension_numbers = #tpu.dot_dimension_numbers<[1], [0], [0], [1], [0, 0, 1, 1], [], []>} : vector<16x128xbf16>, vector<128x128xbf16>, vector<16x128xf32> -> vector<16x128xf32>
    %c1_131 = arith.constant 1 : index
    %c0_132 = arith.constant 0 : index
    %c0_133 = arith.constant 0 : index
    %456 = vector.load %arg6[%c1_131, %c0_132, %c0_133] : memref<2x1x128xf32, #tpu.memory_space<vmem>>, vector<1x1x128xf32>
    %457 = vector.shape_cast %456 : vector<1x1x128xf32> to vector<1x128xf32>
    %458 = vector.broadcast %457 : vector<1x128xf32> to vector<16x128xf32>
    %459 = arith.addf %455, %458 : vector<16x128xf32>
    %460 = arith.addf %267, %459 : vector<16x128xf32>
    %c1_134 = arith.constant 1 : index
    %c0_135 = arith.constant 0 : index
    %c0_136 = arith.constant 0 : index
    %461 = vector.load %arg7[%c1_134, %c0_135, %c0_136] : memref<2x1x128xf32, #tpu.memory_space<vmem>>, vector<1x1x128xf32>
    %462 = vector.shape_cast %461 : vector<1x1x128xf32> to vector<1x128xf32>
    %c1_137 = arith.constant 1 : index
    %c0_138 = arith.constant 0 : index
    %c0_139 = arith.constant 0 : index
    %463 = vector.load %arg8[%c1_137, %c0_138, %c0_139] : memref<2x1x128xf32, #tpu.memory_space<vmem>>, vector<1x1x128xf32>
    %464 = vector.shape_cast %463 : vector<1x1x128xf32> to vector<1x128xf32>
    %cst_140 = arith.constant dense<0.000000e+00> : vector<16xf32>
    %465 = vector.multi_reduction <add>, %460, %cst_140 [1] : vector<16x128xf32> to vector<16xf32>
    %466 = vector.shape_cast %465 : vector<16xf32> to vector<16x1xf32>
    %cst_141 = arith.constant 1.280000e+02 : f32
    %467 = vector.broadcast %cst_141 : f32 to vector<16x1xf32>
    %468 = arith.divf %466, %467 : vector<16x1xf32>
    %469 = vector.broadcast %468 : vector<16x1xf32> to vector<16x128xf32>
    %470 = arith.subf %460, %469 : vector<16x128xf32>
    %471 = arith.mulf %470, %470 : vector<16x128xf32>
    %cst_142 = arith.constant dense<0.000000e+00> : vector<16xf32>
    %472 = vector.multi_reduction <add>, %471, %cst_142 [1] : vector<16x128xf32> to vector<16xf32>
    %473 = vector.shape_cast %472 : vector<16xf32> to vector<16x1xf32>
    %cst_143 = arith.constant 1.280000e+02 : f32
    %474 = vector.broadcast %cst_143 : f32 to vector<16x1xf32>
    %475 = arith.divf %473, %474 : vector<16x1xf32>
    %cst_144 = arith.constant 9.99999974E-6 : f32
    %476 = vector.broadcast %cst_144 : f32 to vector<16x1xf32>
    %477 = arith.addf %475, %476 : vector<16x1xf32>
    %478 = math.rsqrt %477 : vector<16x1xf32>
    %479 = vector.broadcast %478 : vector<16x1xf32> to vector<16x128xf32>
    %480 = arith.mulf %470, %479 : vector<16x128xf32>
    %481 = vector.broadcast %462 : vector<1x128xf32> to vector<16x128xf32>
    %482 = arith.mulf %480, %481 : vector<16x128xf32>
    %483 = vector.broadcast %464 : vector<1x128xf32> to vector<16x128xf32>
    %484 = arith.addf %482, %483 : vector<16x128xf32>
    %485 = arith.truncf %484 : vector<16x128xf32> to vector<16x128xbf16>
    %c1_145 = arith.constant 1 : index
    %c0_146 = arith.constant 0 : index
    %c0_147 = arith.constant 0 : index
    %486 = vector.load %arg9[%c1_145, %c0_146, %c0_147] : memref<2x128x256xbf16, #tpu.memory_space<vmem>>, vector<1x128x256xbf16>
    %487 = vector.shape_cast %486 : vector<1x128x256xbf16> to vector<128x256xbf16>
    %cst_148 = arith.constant dense<0.000000e+00> : vector<16x256xf32>
    %488 = tpu.matmul %485, %487, %cst_148 {dimension_numbers = #tpu.dot_dimension_numbers<[1], [0], [0], [1], [0, 0, 1, 1], [], []>} : vector<16x128xbf16>, vector<128x256xbf16>, vector<16x256xf32> -> vector<16x256xf32>
    %c1_149 = arith.constant 1 : index
    %c0_150 = arith.constant 0 : index
    %c0_151 = arith.constant 0 : index
    %489 = vector.load %arg10[%c1_149, %c0_150, %c0_151] : memref<2x1x256xf32, #tpu.memory_space<vmem>>, vector<1x1x256xf32>
    %490 = vector.shape_cast %489 : vector<1x1x256xf32> to vector<1x256xf32>
    %491 = vector.broadcast %490 : vector<1x256xf32> to vector<16x256xf32>
    %492 = arith.addf %488, %491 : vector<16x256xf32>
    %cst_152 = arith.constant 0.000000e+00 : f32
    %493 = vector.broadcast %cst_152 : f32 to vector<16x256xf32>
    %494 = arith.maximumf %492, %493 : vector<16x256xf32>
    %495 = arith.truncf %494 : vector<16x256xf32> to vector<16x256xbf16>
    %c1_153 = arith.constant 1 : index
    %c0_154 = arith.constant 0 : index
    %c0_155 = arith.constant 0 : index
    %496 = vector.load %arg11[%c1_153, %c0_154, %c0_155] : memref<2x256x128xbf16, #tpu.memory_space<vmem>>, vector<1x256x128xbf16>
    %497 = vector.shape_cast %496 : vector<1x256x128xbf16> to vector<256x128xbf16>
    %cst_156 = arith.constant dense<0.000000e+00> : vector<16x128xf32>
    %498 = tpu.matmul %495, %497, %cst_156 {dimension_numbers = #tpu.dot_dimension_numbers<[1], [0], [0], [1], [0, 0, 1, 1], [], []>} : vector<16x256xbf16>, vector<256x128xbf16>, vector<16x128xf32> -> vector<16x128xf32>
    %c1_157 = arith.constant 1 : index
    %c0_158 = arith.constant 0 : index
    %c0_159 = arith.constant 0 : index
    %499 = vector.load %arg12[%c1_157, %c0_158, %c0_159] : memref<2x1x128xf32, #tpu.memory_space<vmem>>, vector<1x1x128xf32>
    %500 = vector.shape_cast %499 : vector<1x1x128xf32> to vector<1x128xf32>
    %501 = vector.broadcast %500 : vector<1x128xf32> to vector<16x128xf32>
    %502 = arith.addf %498, %501 : vector<16x128xf32>
    %503 = arith.addf %484, %502 : vector<16x128xf32>
    %c1_160 = arith.constant 1 : index
    %c0_161 = arith.constant 0 : index
    %c0_162 = arith.constant 0 : index
    %504 = vector.load %arg13[%c1_160, %c0_161, %c0_162] : memref<2x1x128xf32, #tpu.memory_space<vmem>>, vector<1x1x128xf32>
    %505 = vector.shape_cast %504 : vector<1x1x128xf32> to vector<1x128xf32>
    %c1_163 = arith.constant 1 : index
    %c0_164 = arith.constant 0 : index
    %c0_165 = arith.constant 0 : index
    %506 = vector.load %arg14[%c1_163, %c0_164, %c0_165] : memref<2x1x128xf32, #tpu.memory_space<vmem>>, vector<1x1x128xf32>
    %507 = vector.shape_cast %506 : vector<1x1x128xf32> to vector<1x128xf32>
    %cst_166 = arith.constant dense<0.000000e+00> : vector<16xf32>
    %508 = vector.multi_reduction <add>, %503, %cst_166 [1] : vector<16x128xf32> to vector<16xf32>
    %509 = vector.shape_cast %508 : vector<16xf32> to vector<16x1xf32>
    %cst_167 = arith.constant 1.280000e+02 : f32
    %510 = vector.broadcast %cst_167 : f32 to vector<16x1xf32>
    %511 = arith.divf %509, %510 : vector<16x1xf32>
    %512 = vector.broadcast %511 : vector<16x1xf32> to vector<16x128xf32>
    %513 = arith.subf %503, %512 : vector<16x128xf32>
    %514 = arith.mulf %513, %513 : vector<16x128xf32>
    %cst_168 = arith.constant dense<0.000000e+00> : vector<16xf32>
    %515 = vector.multi_reduction <add>, %514, %cst_168 [1] : vector<16x128xf32> to vector<16xf32>
    %516 = vector.shape_cast %515 : vector<16xf32> to vector<16x1xf32>
    %cst_169 = arith.constant 1.280000e+02 : f32
    %517 = vector.broadcast %cst_169 : f32 to vector<16x1xf32>
    %518 = arith.divf %516, %517 : vector<16x1xf32>
    %cst_170 = arith.constant 9.99999974E-6 : f32
    %519 = vector.broadcast %cst_170 : f32 to vector<16x1xf32>
    %520 = arith.addf %518, %519 : vector<16x1xf32>
    %521 = math.rsqrt %520 : vector<16x1xf32>
    %522 = vector.broadcast %521 : vector<16x1xf32> to vector<16x128xf32>
    %523 = arith.mulf %513, %522 : vector<16x128xf32>
    %524 = vector.broadcast %505 : vector<1x128xf32> to vector<16x128xf32>
    %525 = arith.mulf %523, %524 : vector<16x128xf32>
    %526 = vector.broadcast %507 : vector<1x128xf32> to vector<16x128xf32>
    %527 = arith.addf %525, %526 : vector<16x128xf32>
    %528 = vector.extract_strided_slice %3 {offsets = [0, 0], sizes = [1, 8], strides = [1, 1]} : vector<2x8xf32> to vector<1x8xf32>
    %529 = vector.extract_strided_slice %527 {offsets = [0, 0], sizes = [8, 128], strides = [1, 1]} : vector<16x128xf32> to vector<8x128xf32>
    %cst_171 = arith.constant dense<0.000000e+00> : vector<1x128xf32>
    %530 = tpu.matmul %528, %529, %cst_171 {dimension_numbers = #tpu.dot_dimension_numbers<[1], [0], [0], [1], [0, 0, 1, 1], [], []>} : vector<1x8xf32>, vector<8x128xf32>, vector<1x128xf32> -> vector<1x128xf32>
    %cst_172 = arith.constant dense<0.000000e+00> : vector<1xf32>
    %531 = vector.multi_reduction <add>, %528, %cst_172 [1] : vector<1x8xf32> to vector<1xf32>
    %532 = vector.shape_cast %531 : vector<1xf32> to vector<1x1xf32>
    %cst_173 = arith.constant 1.000000e+00 : f32
    %533 = vector.broadcast %cst_173 : f32 to vector<1x1xf32>
    %534 = arith.maximumf %532, %533 : vector<1x1xf32>
    %535 = vector.broadcast %534 : vector<1x1xf32> to vector<1x128xf32>
    %536 = arith.divf %530, %535 : vector<1x128xf32>
    %537 = vector.extract_strided_slice %3 {offsets = [1, 0], sizes = [1, 8], strides = [1, 1]} : vector<2x8xf32> to vector<1x8xf32>
    %538 = vector.extract_strided_slice %527 {offsets = [8, 0], sizes = [8, 128], strides = [1, 1]} : vector<16x128xf32> to vector<8x128xf32>
    %cst_174 = arith.constant dense<0.000000e+00> : vector<1x128xf32>
    %539 = tpu.matmul %537, %538, %cst_174 {dimension_numbers = #tpu.dot_dimension_numbers<[1], [0], [0], [1], [0, 0, 1, 1], [], []>} : vector<1x8xf32>, vector<8x128xf32>, vector<1x128xf32> -> vector<1x128xf32>
    %cst_175 = arith.constant dense<0.000000e+00> : vector<1xf32>
    %540 = vector.multi_reduction <add>, %537, %cst_175 [1] : vector<1x8xf32> to vector<1xf32>
    %541 = vector.shape_cast %540 : vector<1xf32> to vector<1x1xf32>
    %cst_176 = arith.constant 1.000000e+00 : f32
    %542 = vector.broadcast %cst_176 : f32 to vector<1x1xf32>
    %543 = arith.maximumf %541, %542 : vector<1x1xf32>
    %544 = vector.broadcast %543 : vector<1x1xf32> to vector<1x128xf32>
    %545 = arith.divf %539, %544 : vector<1x128xf32>
    %546 = tpu.concatenate %536, %545 in 0 : vector<1x128xf32>, vector<1x128xf32> -> vector<2x128xf32>
    %547 = arith.truncf %546 : vector<2x128xf32> to vector<2x128xbf16>
    %c0_177 = arith.constant 0 : index
    %c0_178 = arith.constant 0 : index
    %548 = vector.load %arg15[%c0_177, %c0_178] : memref<128x128xbf16, #tpu.memory_space<vmem>>, vector<128x128xbf16>
    %cst_179 = arith.constant dense<0.000000e+00> : vector<2x128xf32>
    %549 = tpu.matmul %547, %548, %cst_179 {dimension_numbers = #tpu.dot_dimension_numbers<[1], [0], [0], [1], [0, 0, 1, 1], [], []>} : vector<2x128xbf16>, vector<128x128xbf16>, vector<2x128xf32> -> vector<2x128xf32>
    %c0_180 = arith.constant 0 : index
    %c0_181 = arith.constant 0 : index
    %550 = vector.load %arg16[%c0_180, %c0_181] : memref<1x128xf32, #tpu.memory_space<vmem>>, vector<1x128xf32>
    %551 = vector.broadcast %550 : vector<1x128xf32> to vector<2x128xf32>
    %552 = arith.addf %549, %551 : vector<2x128xf32>
    %553 = vector.shape_cast %552 : vector<2x128xf32> to vector<2x1x128xf32>
    %c0_182 = arith.constant 0 : index
    %c0_183 = arith.constant 0 : index
    %c0_184 = arith.constant 0 : index
    %554 = vector.load %arg17[%c0_182, %c0_183, %c0_184] : memref<2x1x128xf32, #tpu.memory_space<vmem>>, vector<2x1x128xf32>
    tpu.vector_store %arg17[%c0_182, %c0_183, %c0_184], %553 {strides = array<i32>} : memref<2x1x128xf32, #tpu.memory_space<vmem>>, vector<2x1x128xf32>,
    return
  }
  func.func @transform_0(%arg0: i32) -> (i32, i32, i32) {
    %c0_i32 = arith.constant 0 : i32
    %c0_i32_0 = arith.constant 0 : i32
    %c0_i32_1 = arith.constant 0 : i32
    return %arg0, %c0_i32, %c0_i32_0 : i32, i32, i32
  }
  func.func @transform_1(%arg0: i32) -> (i32, i32, i32) {
    %c0_i32 = arith.constant 0 : i32
    %c0_i32_0 = arith.constant 0 : i32
    %c0_i32_1 = arith.constant 0 : i32
    return %arg0, %c0_i32, %c0_i32_0 : i32, i32, i32
  }
  func.func @transform_2(%arg0: i32) -> (i32, i32, i32) {
    %c0_i32 = arith.constant 0 : i32
    %c0_i32_0 = arith.constant 0 : i32
    %c0_i32_1 = arith.constant 0 : i32
    %c0_i32_2 = arith.constant 0 : i32
    return %c0_i32, %c0_i32_0, %c0_i32_1 : i32, i32, i32
  }
  func.func @transform_3(%arg0: i32) -> (i32, i32, i32) {
    %c0_i32 = arith.constant 0 : i32
    %c0_i32_0 = arith.constant 0 : i32
    %c0_i32_1 = arith.constant 0 : i32
    %c0_i32_2 = arith.constant 0 : i32
    return %c0_i32, %c0_i32_0, %c0_i32_1 : i32, i32, i32
  }
  func.func @transform_4(%arg0: i32) -> (i32, i32, i32) {
    %c0_i32 = arith.constant 0 : i32
    %c0_i32_0 = arith.constant 0 : i32
    %c0_i32_1 = arith.constant 0 : i32
    %c0_i32_2 = arith.constant 0 : i32
    return %c0_i32, %c0_i32_0, %c0_i32_1 : i32, i32, i32
  }
  func.func @transform_5(%arg0: i32) -> (i32, i32, i32) {
    %c0_i32 = arith.constant 0 : i32
    %c0_i32_0 = arith.constant 0 : i32
    %c0_i32_1 = arith.constant 0 : i32
    %c0_i32_2 = arith.constant 0 : i32
    return %c0_i32, %c0_i32_0, %c0_i32_1 : i32, i32, i32
  }
  func.func @transform_6(%arg0: i32) -> (i32, i32, i32) {
    %c0_i32 = arith.constant 0 : i32
    %c0_i32_0 = arith.constant 0 : i32
    %c0_i32_1 = arith.constant 0 : i32
    %c0_i32_2 = arith.constant 0 : i32
    return %c0_i32, %c0_i32_0, %c0_i32_1 : i32, i32, i32
  }
  func.func @transform_7(%arg0: i32) -> (i32, i32, i32) {
    %c0_i32 = arith.constant 0 : i32
    %c0_i32_0 = arith.constant 0 : i32
    %c0_i32_1 = arith.constant 0 : i32
    %c0_i32_2 = arith.constant 0 : i32
    return %c0_i32, %c0_i32_0, %c0_i32_1 : i32, i32, i32
  }
  func.func @transform_8(%arg0: i32) -> (i32, i32, i32) {
    %c0_i32 = arith.constant 0 : i32
    %c0_i32_0 = arith.constant 0 : i32
    %c0_i32_1 = arith.constant 0 : i32
    %c0_i32_2 = arith.constant 0 : i32
    return %c0_i32, %c0_i32_0, %c0_i32_1 : i32, i32, i32
  }
  func.func @transform_9(%arg0: i32) -> (i32, i32, i32) {
    %c0_i32 = arith.constant 0 : i32
    %c0_i32_0 = arith.constant 0 : i32
    %c0_i32_1 = arith.constant 0 : i32
    %c0_i32_2 = arith.constant 0 : i32
    return %c0_i32, %c0_i32_0, %c0_i32_1 : i32, i32, i32
  }
  func.func @transform_10(%arg0: i32) -> (i32, i32, i32) {
    %c0_i32 = arith.constant 0 : i32
    %c0_i32_0 = arith.constant 0 : i32
    %c0_i32_1 = arith.constant 0 : i32
    %c0_i32_2 = arith.constant 0 : i32
    return %c0_i32, %c0_i32_0, %c0_i32_1 : i32, i32, i32
  }
  func.func @transform_11(%arg0: i32) -> (i32, i32, i32) {
    %c0_i32 = arith.constant 0 : i32
    %c0_i32_0 = arith.constant 0 : i32
    %c0_i32_1 = arith.constant 0 : i32
    %c0_i32_2 = arith.constant 0 : i32
    return %c0_i32, %c0_i32_0, %c0_i32_1 : i32, i32, i32
  }
  func.func @transform_12(%arg0: i32) -> (i32, i32, i32) {
    %c0_i32 = arith.constant 0 : i32
    %c0_i32_0 = arith.constant 0 : i32
    %c0_i32_1 = arith.constant 0 : i32
    %c0_i32_2 = arith.constant 0 : i32
    return %c0_i32, %c0_i32_0, %c0_i32_1 : i32, i32, i32
  }
  func.func @transform_13(%arg0: i32) -> (i32, i32, i32) {
    %c0_i32 = arith.constant 0 : i32
    %c0_i32_0 = arith.constant 0 : i32
    %c0_i32_1 = arith.constant 0 : i32
    %c0_i32_2 = arith.constant 0 : i32
    return %c0_i32, %c0_i32_0, %c0_i32_1 : i32, i32, i32
  }
  func.func @transform_14(%arg0: i32) -> (i32, i32) {
    %c0_i32 = arith.constant 0 : i32
    %c0_i32_0 = arith.constant 0 : i32
    %c0_i32_1 = arith.constant 0 : i32
    return %c0_i32, %c0_i32_0 : i32, i32
  }
  func.func @transform_15(%arg0: i32) -> (i32, i32) {
    %c0_i32 = arith.constant 0 : i32
    %c0_i32_0 = arith.constant 0 : i32
    %c0_i32_1 = arith.constant 0 : i32
    return %c0_i32, %c0_i32_0 : i32, i32
  }
  func.func @transform_16(%arg0: i32) -> (i32, i32, i32) {
    %c0_i32 = arith.constant 0 : i32
    %c0_i32_0 = arith.constant 0 : i32
    %c0_i32_1 = arith.constant 0 : i32
    return %arg0, %c0_i32, %c0_i32_0 : i32, i32, i32
  }
}

</mosaic_0001>

<llo_original>
// kernel: tpu_custom_call.1
$region0: #{tpu_custom_call.1}
  #allocation0 [shape = 'u32[]', space=smem, size = 0x4, offset = 0x4, fixed_abs, tag = 'smem constant byte address 0x4 - core index']
  #allocation1 [shape = 'u32[144,128]{1,0:T(1,128)}', space=vmem, size = 0x12000, scoped, tag = 'internal scratch']
  %s0 = inlined_call_operand.hbm [shape: f32[2,8,128], index: 0, kind: input, shape index: {}]
  %s1 = inlined_call_operand.hbm [shape: f32[2,1,8], index: 1, kind: input, shape index: {}]
  %s2 = inlined_call_operand.hbm [shape: bf16[2,128,384], index: 2, kind: input, shape index: {}]
  %s3 = inlined_call_operand.hbm [shape: f32[2,1,384], index: 3, kind: input, shape index: {}]
  %s4 = inlined_call_operand.hbm [shape: bf16[2,128,128], index: 4, kind: input, shape index: {}]
  %s5 = inlined_call_operand.vmem [shape: f32[2,1,128], index: 5, kind: input, shape index: {}]
  %s6 = inlined_call_operand.vmem [shape: f32[2,1,128], index: 6, kind: input, shape index: {}]
  %s7 = inlined_call_operand.vmem [shape: f32[2,1,128], index: 7, kind: input, shape index: {}]
  %s8 = inlined_call_operand.hbm [shape: bf16[2,128,256], index: 8, kind: input, shape index: {}]
  %s9 = inlined_call_operand.vmem [shape: f32[2,1,256], index: 9, kind: input, shape index: {}]
  %s10 = inlined_call_operand.hbm [shape: bf16[2,256,128], index: 10, kind: input, shape index: {}]
  %s11 = inlined_call_operand.vmem [shape: f32[2,1,128], index: 11, kind: input, shape index: {}]
  %s12 = inlined_call_operand.vmem [shape: f32[2,1,128], index: 12, kind: input, shape index: {}]
  %s13 = inlined_call_operand.vmem [shape: f32[2,1,128], index: 13, kind: input, shape index: {}]
  %s14 = inlined_call_operand.hbm [shape: bf16[128,128], index: 14, kind: input, shape index: {}]
  %s15 = inlined_call_operand.vmem [shape: f32[1,128], index: 15, kind: input, shape index: {}]
  %s16 = inlined_call_operand.hbm [shape: f32[2,1,128], index: 16, kind: output, shape index: {}]
  %s17 = sld [smem:[#allocation0]]
  $region106: #{tpu_custom_call.1} parent=0
    _
  %s19 = ssub.s32 1, %s17
  %s20 = scalar_select 0, %s19, %s17
  $region1: #{tpu_custom_call.1} parent=0
    #allocation2 [shape = 'u8[8192]{0}', space=vmem, size = 0x2000, scoped, tag = 'input window, operand 0, single buffered']
    #allocation3 [shape = 's32[1]{0}', space=sflag, size = 0x4, scoped, tag = 'scoped memory for tpu_custom_call.1']
    #allocation4 [shape = 's32[1]{0}', space=sflag, size = 0x4, scoped, tag = 'scoped memory for tpu_custom_call.1']
    #allocation5 [shape = 'u8[1024]{0}', space=vmem, size = 0x400, scoped, tag = 'input window, operand 1, single buffered']
    #allocation6 [shape = 's32[1]{0}', space=sflag, size = 0x4, scoped, tag = 'scoped memory for tpu_custom_call.1']
    #allocation7 [shape = 'u8[196608]{0}', space=vmem, size = 0x30000, scoped, tag = 'input window, operand 2, single buffered']
    #allocation8 [shape = 'u8[3072]{0}', space=vmem, size = 0xc00, scoped, tag = 'input window, operand 3, single buffered']
    #allocation9 [shape = 's32[1]{0}', space=sflag, size = 0x4, scoped, tag = 'scoped memory for tpu_custom_call.1']
    #allocation10 [shape = 'u8[65536]{0}', space=vmem, size = 0x10000, scoped, tag = 'input window, operand 4, single buffered']
    #allocation11 [shape = 'u8[131072]{0}', space=vmem, size = 0x20000, scoped, tag = 'input window, operand 8, single buffered']
    #allocation12 [shape = 's32[1]{0}', space=sflag, size = 0x4, scoped, tag = 'scoped memory for tpu_custom_call.1']
    #allocation13 [shape = 'u8[131072]{0}', space=vmem, size = 0x20000, scoped, tag = 'input window, operand 10, single buffered']
    #allocation14 [shape = 'u8[32768]{0}', space=vmem, size = 0x8000, scoped, tag = 'input window, operand 14, single buffered']
    #allocation15 [shape = 's32[1]{0}', space=sflag, size = 0x4, scoped, tag = 'scoped memory for tpu_custom_call.1']
    #allocation16 [shape = 'u8[1024]{0}', space=vmem, size = 0x400, scoped, tag = 'output window, operand 0, single buffered']
    %21 = vsyncpa [#allocation3], 0
    %22 = vsyncpa [#allocation6], 0
    %23 = vsyncpa [#allocation9], 0
    %24 = vsyncpa [#allocation12], 0
    %25 = vsyncpa [#allocation15], 0
    %26 = vsyncpa [#allocation4], 0
    // Predicated region
    $region2: #{tpu_custom_call.1} parent=1 // pred_check
      _
    $region3: #{tpu_custom_call.1} parent=1 // pred_check_branch
      %28 = sbr.rel (0) target = $region5
    $region4: #{tpu_custom_call.1} parent=1 // pred_region
      %s30 = ssub.s32 256, 256
      %31 = vsyncadd [#allocation3], %s30
      %s32 = sshll.u32 [#allocation2], 4
      %s33 = int_to_ptr.vmem [resolvable:$true] %s32
      %38 = dma.hbm_to_vmem [thread:$0]  %s0, 256, %s33, [#allocation3], 128, 128, 8
    $region5: #{tpu_custom_call.1} parent=1 // pred_fallthru
      _
    // Predicated region
    $region6: #{tpu_custom_call.1} parent=1 // pred_check
      _
    $region7: #{tpu_custom_call.1} parent=1 // pred_check_branch
      %40 = sbr.rel (0) target = $region9
    $region8: #{tpu_custom_call.1} parent=1 // pred_region
      %s42 = ssub.s32 32, 32
      %43 = vsyncadd [#allocation6], %s42
      %s44 = sshll.u32 [#allocation5], 4
      %s45 = int_to_ptr.vmem [resolvable:$true] %s44
      %50 = dma.hbm_to_vmem [thread:$0]  %s1, 32, %s45, [#allocation6], 16, 16, 1
    $region9: #{tpu_custom_call.1} parent=1 // pred_fallthru
      _
    // Predicated region
    $region10: #{tpu_custom_call.1} parent=1 // pred_check
      _
    $region11: #{tpu_custom_call.1} parent=1 // pred_check_branch
      %52 = sbr.rel (0) target = $region13
    $region12: #{tpu_custom_call.1} parent=1 // pred_region
      %s54 = ssub.s32 6144, 6144
      %55 = vsyncadd [#allocation6], %s54
      %s56 = sshll.u32 [#allocation7], 4
      %s57 = int_to_ptr.vmem [resolvable:$true] %s56
      %62 = dma.hbm_to_vmem [thread:$0]  %s2, 6144, %s57, [#allocation6], 192, 192, 12
    $region13: #{tpu_custom_call.1} parent=1 // pred_fallthru
      _
    // Predicated region
    $region14: #{tpu_custom_call.1} parent=1 // pred_check
      _
    $region15: #{tpu_custom_call.1} parent=1 // pred_check_branch
      %64 = sbr.rel (0) target = $region17
    $region16: #{tpu_custom_call.1} parent=1 // pred_region
      %s66 = ssub.s32 96, 96
      %67 = vsyncadd [#allocation9], %s66
      %s68 = sshll.u32 [#allocation8], 4
      %s69 = int_to_ptr.vmem [resolvable:$true] %s68
      %74 = dma.hbm_to_vmem [thread:$0]  %s3, 96, %s69, [#allocation9], 48, 48, 3
    $region17: #{tpu_custom_call.1} parent=1 // pred_fallthru
      _
    // Predicated region
    $region18: #{tpu_custom_call.1} parent=1 // pred_check
      _
    $region19: #{tpu_custom_call.1} parent=1 // pred_check_branch
      %76 = sbr.rel (0) target = $region21
    $region20: #{tpu_custom_call.1} parent=1 // pred_region
      %s78 = ssub.s32 2048, 2048
      %79 = vsyncadd [#allocation9], %s78
      %s80 = sshll.u32 [#allocation10], 4
      %s81 = int_to_ptr.vmem [resolvable:$true] %s80
      %86 = dma.hbm_to_vmem [thread:$0]  %s4, 2048, %s81, [#allocation9], 64, 64, 4
    $region21: #{tpu_custom_call.1} parent=1 // pred_fallthru
      _
    // Predicated region
    $region22: #{tpu_custom_call.1} parent=1 // pred_check
      _
    $region23: #{tpu_custom_call.1} parent=1 // pred_check_branch
      %88 = sbr.rel (0) target = $region25
    $region24: #{tpu_custom_call.1} parent=1 // pred_region
      _
    $region25: #{tpu_custom_call.1} parent=1 // pred_fallthru
      _
    // Predicated region
    $region26: #{tpu_custom_call.1} parent=1 // pred_check
      _
    $region27: #{tpu_custom_call.1} parent=1 // pred_check_branch
      %90 = sbr.rel (0) target = $region29
    $region28: #{tpu_custom_call.1} parent=1 // pred_region
      _
    $region29: #{tpu_custom_call.1} parent=1 // pred_fallthru
      _
    // Predicated region
    $region30: #{tpu_custom_call.1} parent=1 // pred_check
      _
    $region31: #{tpu_custom_call.1} parent=1 // pred_check_branch
      %92 = sbr.rel (0) target = $region33
    $region32: #{tpu_custom_call.1} parent=1 // pred_region
      _
    $region33: #{tpu_custom_call.1} parent=1 // pred_fallthru
      _
    // Predicated region
    $region34: #{tpu_custom_call.1} parent=1 // pred_check
      _
    $region35: #{tpu_custom_call.1} parent=1 // pred_check_branch
      %94 = sbr.rel (0) target = $region37
    $region36: #{tpu_custom_call.1} parent=1 // pred_region
      %s96 = ssub.s32 4096, 4096
      %97 = vsyncadd [#allocation12], %s96
      %s98 = sshll.u32 [#allocation11], 4
      %s99 = int_to_ptr.vmem [resolvable:$true] %s98
      %104 = dma.hbm_to_vmem [thread:$0]  %s8, 4096, %s99, [#allocation12], 128, 128, 8
    $region37: #{tpu_custom_call.1} parent=1 // pred_fallthru
      _
    // Predicated region
    $region38: #{tpu_custom_call.1} parent=1 // pred_check
      _
    $region39: #{tpu_custom_call.1} parent=1 // pred_check_branch
      %106 = sbr.rel (0) target = $region41
    $region40: #{tpu_custom_call.1} parent=1 // pred_region
      _
    $region41: #{tpu_custom_call.1} parent=1 // pred_fallthru
      _
    // Predicated region
    $region42: #{tpu_custom_call.1} parent=1 // pred_check
      _
    $region43: #{tpu_custom_call.1} parent=1 // pred_check_branch
      %108 = sbr.rel (0) target = $region45
    $region44: #{tpu_custom_call.1} parent=1 // pred_region
      %s110 = ssub.s32 4096, 4096
      %111 = vsyncadd [#allocation12], %s110
      %s112 = sshll.u32 [#allocation13], 4
      %s113 = int_to_ptr.vmem [resolvable:$true] %s112
      %118 = dma.hbm_to_vmem [thread:$0]  %s10, 4096, %s113, [#allocation12], 64, 64, 4
    $region45: #{tpu_custom_call.1} parent=1 // pred_fallthru
      _
    // Predicated region
    $region46: #{tpu_custom_call.1} parent=1 // pred_check
      _
    $region47: #{tpu_custom_call.1} parent=1 // pred_check_branch
      %120 = sbr.rel (0) target = $region49
    $region48: #{tpu_custom_call.1} parent=1 // pred_region
      _
    $region49: #{tpu_custom_call.1} parent=1 // pred_fallthru
      _
    // Predicated region
    $region50: #{tpu_custom_call.1} parent=1 // pred_check
      _
    $region51: #{tpu_custom_call.1} parent=1 // pred_check_branch
      %122 = sbr.rel (0) target = $region53
    $region52: #{tpu_custom_call.1} parent=1 // pred_region
      _
    $region53: #{tpu_custom_call.1} parent=1 // pred_fallthru
      _
    // Predicated region
    $region54: #{tpu_custom_call.1} parent=1 // pred_check
      _
    $region55: #{tpu_custom_call.1} parent=1 // pred_check_branch
      %124 = sbr.rel (0) target = $region57
    $region56: #{tpu_custom_call.1} parent=1 // pred_region
      _
    $region57: #{tpu_custom_call.1} parent=1 // pred_fallthru
      _
    // Predicated region
    $region58: #{tpu_custom_call.1} parent=1 // pred_check
      _
    $region59: #{tpu_custom_call.1} parent=1 // pred_check_branch
      %126 = sbr.rel (0) target = $region61
    $region60: #{tpu_custom_call.1} parent=1 // pred_region
      %s128 = ssub.s32 1024, 1024
      %129 = vsyncadd [#allocation15], %s128
      %s130 = sshll.u32 [#allocation14], 4
      %s131 = int_to_ptr.vmem [resolvable:$true] %s130
      %136 = dma.hbm_to_vmem [thread:$0]  %s14, 1024, %s131, [#allocation15], 64, 64, 4
    $region61: #{tpu_custom_call.1} parent=1 // pred_fallthru
      _
    // Predicated region
    $region62: #{tpu_custom_call.1} parent=1 // pred_check
      _
    $region63: #{tpu_custom_call.1} parent=1 // pred_check_branch
      %138 = sbr.rel (0) target = $region65
    $region64: #{tpu_custom_call.1} parent=1 // pred_region
      _
    $region65: #{tpu_custom_call.1} parent=1 // pred_fallthru
      _
    // Predicated region
    $region66: #{tpu_custom_call.1} parent=1 // pred_check
      _
    $region67: #{tpu_custom_call.1} parent=1 // pred_check_branch
      %140 = sbr.rel (0) target = $region69
    $region68: #{tpu_custom_call.1} parent=1 // pred_region
      %141 = dma.done [#allocation3], 256
    $region69: #{tpu_custom_call.1} parent=1 // pred_fallthru
      _
    // Predicated region
    $region70: #{tpu_custom_call.1} parent=1 // pred_check
      _
    $region71: #{tpu_custom_call.1} parent=1 // pred_check_branch
      %143 = sbr.rel (0) target = $region73
    $region72: #{tpu_custom_call.1} parent=1 // pred_region
      %144 = dma.done [#allocation6], 32
    $region73: #{tpu_custom_call.1} parent=1 // pred_fallthru
      _
    // Predicated region
    $region74: #{tpu_custom_call.1} parent=1 // pred_check
      _
    $region75: #{tpu_custom_call.1} parent=1 // pred_check_branch
      %146 = sbr.rel (0) target = $region77
    $region76: #{tpu_custom_call.1} parent=1 // pred_region
      %147 = dma.done [#allocation6], 6144
    $region77: #{tpu_custom_call.1} parent=1 // pred_fallthru
      _
    // Predicated region
    $region78: #{tpu_custom_call.1} parent=1 // pred_check
      _
    $region79: #{tpu_custom_call.1} parent=1 // pred_check_branch
      %149 = sbr.rel (0) target = $region81
    $region80: #{tpu_custom_call.1} parent=1 // pred_region
      %150 = dma.done [#allocation9], 96
    $region81: #{tpu_custom_call.1} parent=1 // pred_fallthru
      _
    // Predicated region
    $region82: #{tpu_custom_call.1} parent=1 // pred_check
      _
    $region83: #{tpu_custom_call.1} parent=1 // pred_check_branch
      %152 = sbr.rel (0) target = $region85
    $region84: #{tpu_custom_call.1} parent=1 // pred_region
      %153 = dma.done [#allocation9], 2048
    $region85: #{tpu_custom_call.1} parent=1 // pred_fallthru
      _
    // Predicated region
    $region86: #{tpu_custom_call.1} parent=1 // pred_check
      _
    $region87: #{tpu_custom_call.1} parent=1 // pred_check_branch
      %155 = sbr.rel (0) target = $region89
    $region88: #{tpu_custom_call.1} parent=1 // pred_region
      %156 = dma.done [#allocation12], 4096
    $region89: #{tpu_custom_call.1} parent=1 // pred_fallthru
      _
    // Predicated region
    $region90: #{tpu_custom_call.1} parent=1 // pred_check
      _
    $region91: #{tpu_custom_call.1} parent=1 // pred_check_branch
      %158 = sbr.rel (0) target = $region93
    $region92: #{tpu_custom_call.1} parent=1 // pred_region
      %159 = dma.done [#allocation12], 4096
    $region93: #{tpu_custom_call.1} parent=1 // pred_fallthru
      _
    // Predicated region
    $region94: #{tpu_custom_call.1} parent=1 // pred_check
      _
    $region95: #{tpu_custom_call.1} parent=1 // pred_check_branch
      %161 = sbr.rel (0) target = $region97
    $region96: #{tpu_custom_call.1} parent=1 // pred_region
      %162 = dma.done [#allocation15], 1024
    $region97: #{tpu_custom_call.1} parent=1 // pred_fallthru
      _
    %v164 = vld [vmem:[#allocation2] sm:$0xff]
    %v165 = vld [vmem:[#allocation2 + $0x8] sm:$0xff]
    %v166 = vld [vmem:[#allocation5] sm:$0x1]
    %v167 = vld [vmem:[#allocation5 + $0x1] sm:$0x1]
    %v168 = vsub.f32 %v166, 1.0
    %v169 = vsub.f32 %v167, 1.0
    %v170 = vmul.f32 %v168, 1e+09
    %v171 = vmul.f32 %v169, 1e+09
    %v172 = vpack.c.bf16 %v165, %v164
    %v173 = vld [vmem:[#allocation7] sm:$0xff]
    %v174 = vld [vmem:[#allocation7 + $0x8] sm:$0xf]
    %v175 = vld [vmem:[#allocation7 + $0xc] sm:$0xff]
    %v176 = vld [vmem:[#allocation7 + $0x14] sm:$0xf]
    %v177 = vld [vmem:[#allocation7 + $0x18] sm:$0xff]
    %v178 = vld [vmem:[#allocation7 + $0x20] sm:$0xf]
    %v179 = vld [vmem:[#allocation7 + $0x24] sm:$0xff]
    %v180 = vld [vmem:[#allocation7 + $0x2c] sm:$0xf]
    %v181 = vld [vmem:[#allocation7 + $0x30] sm:$0xff]
    %v182 = vld [vmem:[#allocation7 + $0x38] sm:$0xf]
    %v183 = vld [vmem:[#allocation7 + $0x3c] sm:$0xff]
    %v184 = vld [vmem:[#allocation7 + $0x44] sm:$0xf]
    %v185 = vld [vmem:[#allocation7 + $0x48] sm:$0xff]
    %v186 = vld [vmem:[#allocation7 + $0x50] sm:$0xf]
    %v187 = vld [vmem:[#allocation7 + $0x54] sm:$0xff]
    %v188 = vld [vmem:[#allocation7 + $0x5c] sm:$0xf]
    %v189 = vld [vmem:[#allocation7 + $0x60] sm:$0xff]
    %v190 = vld [vmem:[#allocation7 + $0x68] sm:$0xf]
    %v191 = vld [vmem:[#allocation7 + $0x6c] sm:$0xff]
    %v192 = vld [vmem:[#allocation7 + $0x74] sm:$0xf]
    %v193 = vld [vmem:[#allocation7 + $0x78] sm:$0xff]
    %v194 = vld [vmem:[#allocation7 + $0x80] sm:$0xf]
    %v195 = vld [vmem:[#allocation7 + $0x84] sm:$0xff]
    %v196 = vld [vmem:[#allocation7 + $0x8c] sm:$0xf]
    %v197 = vld [vmem:[#allocation7 + $0x90] sm:$0xff]
    %v198 = vld [vmem:[#allocation7 + $0x98] sm:$0xf]
    %v199 = vld [vmem:[#allocation7 + $0x9c] sm:$0xff]
    %v200 = vld [vmem:[#allocation7 + $0xa4] sm:$0xf]
    %v201 = vld [vmem:[#allocation7 + $0xa8] sm:$0xff]
    %v202 = vld [vmem:[#allocation7 + $0xb0] sm:$0xf]
    %v203 = vld [vmem:[#allocation7 + $0xb4] sm:$0xff]
    %v204 = vld [vmem:[#allocation7 + $0xbc] sm:$0xf]
    %v205 = vld [vmem:[#allocation8] sm:$0x7]
    %v207 = vlaneseq
    %v208 = vshrl.u32 %v207, 7
    %v209 = vsub.s32 0, %v208
    %v210 = vrot.slane %v205, %v209
    %v211 = vlaneseq
    %v212 = vshrl.u32 %v211, 7
    %v213 = vsub.s32 1, %v212
    %v214 = vrot.slane %v205, %v213
    %v215 = vlaneseq
    %v216 = vshrl.u32 %v215, 7
    %v217 = vsub.s32 2, %v216
    %v218 = vrot.slane %v205, %v217
    %v254 = vunpack.c.l.b16 %v173
    %v255 = vunpack.c.h.b16 %v173
    %v256 = vunpack.c.l.b16 %v174
    %v257 = vunpack.c.l.b16 %v175
    %v258 = vunpack.c.h.b16 %v175
    %v259 = vunpack.c.l.b16 %v176
    %v260 = vunpack.c.l.b16 %v177
    %v261 = vunpack.c.h.b16 %v177
    %v262 = vunpack.c.l.b16 %v178
    %v263 = vunpack.c.l.b16 %v179
    %v264 = vunpack.c.h.b16 %v179
    %v265 = vunpack.c.l.b16 %v180
    %v266 = vunpack.c.l.b16 %v181
    %v267 = vunpack.c.h.b16 %v181
    %v268 = vunpack.c.l.b16 %v182
    %v269 = vunpack.c.l.b16 %v183
    %v270 = vunpack.c.h.b16 %v183
    %v271 = vunpack.c.l.b16 %v184
    %v272 = vunpack.c.l.b16 %v185
    %v273 = vunpack.c.h.b16 %v185
    %v274 = vunpack.c.l.b16 %v186
    %v275 = vunpack.c.l.b16 %v187
    %v276 = vunpack.c.h.b16 %v187
    %v277 = vunpack.c.l.b16 %v188
    %v278 = vunpack.c.l.b16 %v189
    %v279 = vunpack.c.h.b16 %v189
    %v280 = vunpack.c.l.b16 %v190
    %v281 = vunpack.c.l.b16 %v191
    %v282 = vunpack.c.h.b16 %v191
    %v283 = vunpack.c.l.b16 %v192
    %v284 = vunpack.c.l.b16 %v193
    %v285 = vunpack.c.h.b16 %v193
    %v286 = vunpack.c.l.b16 %v194
    %v287 = vunpack.c.l.b16 %v195
    %v288 = vunpack.c.h.b16 %v195
    %v289 = vunpack.c.l.b16 %v196
    %v290 = vunpack.c.l.b16 %v197
    %v291 = vunpack.c.h.b16 %v197
    %v292 = vunpack.c.l.b16 %v198
    %v293 = vunpack.c.l.b16 %v199
    %v294 = vunpack.c.h.b16 %v199
    %v295 = vunpack.c.l.b16 %v200
    %v296 = vunpack.c.l.b16 %v201
    %v297 = vunpack.c.h.b16 %v201
    %v298 = vunpack.c.l.b16 %v202
    %v299 = vunpack.c.l.b16 %v203
    %v300 = vunpack.c.h.b16 %v203
    %v301 = vunpack.c.l.b16 %v204
    %v302 = vpack.c.b16 %v257, %v254
    %v303 = vpack.c.b16 %v258, %v255
    %v304 = vpack.c.b16 %v259, %v256
    %v305 = vpack.c.b16 %v263, %v260
    %v306 = vpack.c.b16 %v264, %v261
    %v307 = vpack.c.b16 %v265, %v262
    %v308 = vpack.c.b16 %v269, %v266
    %v309 = vpack.c.b16 %v270, %v267
    %v310 = vpack.c.b16 %v271, %v268
    %v311 = vpack.c.b16 %v275, %v272
    %v312 = vpack.c.b16 %v276, %v273
    %v313 = vpack.c.b16 %v277, %v274
    %v314 = vpack.c.b16 %v281, %v278
    %v315 = vpack.c.b16 %v282, %v279
    %v316 = vpack.c.b16 %v283, %v280
    %v317 = vpack.c.b16 %v287, %v284
    %v318 = vpack.c.b16 %v288, %v285
    %v319 = vpack.c.b16 %v289, %v286
    %v320 = vpack.c.b16 %v293, %v290
    %v321 = vpack.c.b16 %v294, %v291
    %v322 = vpack.c.b16 %v295, %v292
    %v323 = vpack.c.b16 %v299, %v296
    %v324 = vpack.c.b16 %v300, %v297
    %v325 = vpack.c.b16 %v301, %v298
    %350 = vmatprep.subr.bf16.mxu0 %v324
    %351 = vmatpush1.bf16.msra.mxu0 %v323
    %352 = vmatprep.subr.bf16.mxu0 %v321
    %353 = vmatpush1.bf16.msra.mxu0 %v320
    %354 = vmatprep.subr.bf16.mxu0 %v318
    %355 = vmatpush1.bf16.msra.mxu0 %v317
    %356 = vmatprep.subr.bf16.mxu0 %v315
    %357 = vmatpush1.bf16.msra.mxu0 %v314
    %358 = vmatprep.subr.bf16.mxu0 %v312
    %359 = vmatpush1.bf16.msra.mxu0 %v311
    %360 = vmatprep.subr.bf16.mxu0 %v309
    %361 = vmatpush1.bf16.msra.mxu0 %v308
    %362 = vmatprep.subr.bf16.mxu0 %v306
    %363 = vmatpush1.bf16.msra.mxu0 %v305
    %364 = vmatprep.subr.bf16.mxu0 %v303
    %365 = vmatpush1.bf16.msra.mxu0 %v302
    %366 = vmatprep.subr.bf16.mxu0 0
    %367 = vmatpush2.bf16.msra.mxu0 0
    %368 = vmatprep.subr.bf16.mxu0 0
    %369 = vmatpush2.bf16.msra.mxu0 0
    %370 = vmatprep.subr.bf16.mxu0 0
    %371 = vmatpush2.bf16.msra.mxu0 0
    %372 = vmatprep.subr.bf16.mxu0 0
    %373 = vmatpush2.bf16.msra.mxu0 0
    %374 = vmatprep.subr.bf16.mxu0 0
    %375 = vmatpush2.bf16.msra.mxu0 0
    %376 = vmatprep.subr.bf16.mxu0 0
    %377 = vmatpush2.bf16.msra.mxu0 0
    %378 = vmatprep.subr.bf16.mxu0 0
    %379 = vmatpush2.bf16.msra.mxu0 0
    %380 = vmatprep.subr.bf16.mxu0 0
    %381 = vmatpush2.bf16.msra.mxu0 0
    %382 = vmatprep.mubr.bf16.mxu0 0
    %383 = vmatmul.mubr.bf16.gmra.mxu0 %v172
    %v384 = vpop.f32.mrf.mxu0
    %v385 = vadd.f32 %v210, %v384
    %v386 = vpop.f32.mrf.mxu0
    %v387 = vadd.f32 %v214, %v386
    %v388 = vpop.f32.mrf.mxu0
    %v389 = vadd.f32 %v210, %v388
    %v390 = vpop.f32.mrf.mxu0
    %v391 = vadd.f32 %v214, %v390
    %392 = vdwg.mxu0
    %393 = vmatprep.subr.bf16.mxu0 0
    %394 = vmatpush1.bf16.msra.mxu0 %v325
    %395 = vmatprep.subr.bf16.mxu0 0
    %396 = vmatpush1.bf16.msra.mxu0 %v322
    %397 = vmatprep.subr.bf16.mxu0 0
    %398 = vmatpush1.bf16.msra.mxu0 %v319
    %399 = vmatprep.subr.bf16.mxu0 0
    %400 = vmatpush1.bf16.msra.mxu0 %v316
    %401 = vmatprep.subr.bf16.mxu0 0
    %402 = vmatpush1.bf16.msra.mxu0 %v313
    %403 = vmatprep.subr.bf16.mxu0 0
    %404 = vmatpush1.bf16.msra.mxu0 %v310
    %405 = vmatprep.subr.bf16.mxu0 0
    %406 = vmatpush1.bf16.msra.mxu0 %v307
    %407 = vmatprep.subr.bf16.mxu0 0
    %408 = vmatpush1.bf16.msra.mxu0 %v304
    %409 = vmatprep.subr.bf16.mxu0 0
    %410 = vmatpush2.bf16.msra.mxu0 0
    %411 = vmatprep.subr.bf16.mxu0 0
    %412 = vmatpush2.bf16.msra.mxu0 0
    %413 = vmatprep.subr.bf16.mxu0 0
    %414 = vmatpush2.bf16.msra.mxu0 0
    %415 = vmatprep.subr.bf16.mxu0 0
    %416 = vmatpush2.bf16.msra.mxu0 0
    %417 = vmatprep.subr.bf16.mxu0 0
    %418 = vmatpush2.bf16.msra.mxu0 0
    %419 = vmatprep.subr.bf16.mxu0 0
    %420 = vmatpush2.bf16.msra.mxu0 0
    %421 = vmatprep.subr.bf16.mxu0 0
    %422 = vmatpush2.bf16.msra.mxu0 0
    %423 = vmatprep.subr.bf16.mxu0 0
    %424 = vmatpush2.bf16.msra.mxu0 0
    %425 = vmatprep.mubr.bf16.mxu0 0
    %426 = vmatmul.mubr.bf16.gmra.mxu0 %v172
    %v427 = vpop.f32.mrf.mxu0
    %v428 = vadd.f32 %v218, %v427
    %v429 = vpop.f32.mrf.mxu0
    %v430 = vpop.f32.mrf.mxu0
    %v431 = vadd.f32 %v218, %v430
    %v432 = vpop.f32.mrf.mxu0
    %433 = vdwg.mxu0
    %v434 = vpack.c.bf16 %v385, %v385
    %v435 = vpack.c.bf16 %v387, %v387
    %v436 = vpack.c.bf16 %v428, %v428
    %v438 = vlaneseq
    %v439 = vshrl.u32 %v438, 7
    %v440 = vsub.s32 0, %v439
    %v441 = vrot.slane %v170, %v440
    %vm443 = vcmask 261120
    %v445 = vsel %vm443, %v434, 0
    %v448 = vsel %vm443, %v435, 0
    %450 = vmatprep.subr.bf16.mxu0 0
    %451 = vmatpush1.bf16.xpose.msra.mxu0 0
    %452 = vmatprep.subr.bf16.mxu0 0
    %453 = vmatpush1.bf16.xpose.msra.mxu0 0
    %454 = vmatprep.subr.bf16.mxu0 0
    %455 = vmatpush1.bf16.xpose.msra.mxu0 0
    %456 = vmatprep.subr.bf16.mxu0 0
    %457 = vmatpush1.bf16.xpose.msra.mxu0 0
    %458 = vmatprep.subr.bf16.mxu0 0
    %459 = vmatpush1.bf16.xpose.msra.mxu0 0
    %460 = vmatprep.subr.bf16.mxu0 0
    %461 = vmatpush1.bf16.xpose.msra.mxu0 0
    %462 = vmatprep.subr.bf16.mxu0 0
    %463 = vmatpush1.bf16.xpose.msra.mxu0 0
    %464 = vmatprep.subr.bf16.mxu0 0
    %465 = vmatpush1.bf16.xpose.msra.mxu0 %v448
    %466 = vmatprep.subr.bf16.mxu0 0
    %467 = vmatpush2.bf16.xpose.msra.mxu0 0
    %468 = vmatprep.subr.bf16.mxu0 0
    %469 = vmatpush2.bf16.xpose.msra.mxu0 0
    %470 = vmatprep.subr.bf16.mxu0 0
    %471 = vmatpush2.bf16.xpose.msra.mxu0 0
    %472 = vmatprep.subr.bf16.mxu0 0
    %473 = vmatpush2.bf16.xpose.msra.mxu0 0
    %474 = vmatprep.subr.bf16.mxu0 0
    %475 = vmatpush2.bf16.xpose.msra.mxu0 0
    %476 = vmatprep.subr.bf16.mxu0 0
    %477 = vmatpush2.bf16.xpose.msra.mxu0 0
    %478 = vmatprep.subr.bf16.mxu0 0
    %479 = vmatpush2.bf16.xpose.msra.mxu0 0
    %480 = vmatprep.subr.bf16.mxu0 0
    %481 = vmatpush2.bf16.xpose.msra.mxu0 0
    %482 = vmatprep.mubr.bf16.mxu0 0
    %483 = vmatmul.mubr.bf16.gmra.mxu0 %v445
    %v484 = vpop.f32.mrf.mxu0
    %v485 = vadd.f32 %v441, %v484
    %v486 = vpop.f32.mrf.mxu0
    %v487 = vpop.f32.mrf.mxu0
    %v488 = vpop.f32.mrf.mxu0
    %489 = vdwg.mxu0
    %vm490 = vcmask 64512
    %v491 = vsel %vm490, %v485, -inf
    %492 = vmax.xlane.f32.xlu0 %v491
    %v493 = vpop.xlane.xlu0 %492
    %v494 = vsub.f32 %v485, %v493
    %v495 = vmul.f32 %v494, 1.442695
    %v496 = vpow.pop %v495
    %v497 = vsel %vm490, %v496, 0.0
    %498 = vadd.xlane.f32.xlu0 %v497
    %v499 = vpop.xlane.xlu0 %498
    %v500 = vrcp.pop %v499
    %v501 = vmul.f32 %v496, %v500
    %v502 = vpack.c.bf16 %v501, %v501
    %v504 = vsel %vm490, %v502, 0
    %vm506 = vcmask 1043456
    %v508 = vsel %vm506, %v436, 0
    %510 = vmatprep.subr.bf16.mxu0 0
    %511 = vmatpush1.bf16.msra.mxu0 0
    %512 = vmatprep.subr.bf16.mxu0 0
    %513 = vmatpush1.bf16.msra.mxu0 0
    %514 = vmatprep.subr.bf16.mxu0 0
    %515 = vmatpush1.bf16.msra.mxu0 0
    %516 = vmatprep.subr.bf16.mxu0 0
    %517 = vmatpush1.bf16.msra.mxu0 0
    %518 = vmatprep.subr.bf16.mxu0 0
    %519 = vmatpush1.bf16.msra.mxu0 0
    %520 = vmatprep.subr.bf16.mxu0 0
    %521 = vmatpush1.bf16.msra.mxu0 0
    %522 = vmatprep.subr.bf16.mxu0 0
    %523 = vmatpush1.bf16.msra.mxu0 0
    %524 = vmatprep.subr.bf16.mxu0 0
    %525 = vmatpush1.bf16.msra.mxu0 %v508
    %526 = vmatprep.subr.bf16.mxu0 0
    %527 = vmatpush2.bf16.msra.mxu0 0
    %528 = vmatprep.subr.bf16.mxu0 0
    %529 = vmatpush2.bf16.msra.mxu0 0
    %530 = vmatprep.subr.bf16.mxu0 0
    %531 = vmatpush2.bf16.msra.mxu0 0
    %532 = vmatprep.subr.bf16.mxu0 0
    %533 = vmatpush2.bf16.msra.mxu0 0
    %534 = vmatprep.subr.bf16.mxu0 0
    %535 = vmatpush2.bf16.msra.mxu0 0
    %536 = vmatprep.subr.bf16.mxu0 0
    %537 = vmatpush2.bf16.msra.mxu0 0
    %538 = vmatprep.subr.bf16.mxu0 0
    %539 = vmatpush2.bf16.msra.mxu0 0
    %540 = vmatprep.subr.bf16.mxu0 0
    %541 = vmatpush2.bf16.msra.mxu0 0
    %542 = vmatprep.mubr.bf16.mxu0 0
    %543 = vmatmul.mubr.bf16.gmra.mxu0 %v504
    %v544 = vpop.f32.mrf.mxu0
    %v545 = vadd.f32 0.0, %v544
    %v546 = vpop.f32.mrf.mxu0
    %v547 = vpop.f32.mrf.mxu0
    %v548 = vpop.f32.mrf.mxu0
    %549 = vdwg.mxu0
    %551 = vrot.lane.b32.xlu0 %v434, 96
    %v552 = vpop.permute.xlu0 %551
    %554 = vrot.lane.b32.xlu0 %v435, 96
    %v555 = vpop.permute.xlu0 %554
    %v557 = vsel %vm443, %v552, 0
    %v560 = vsel %vm443, %v555, 0
    %562 = vmatprep.subr.bf16.mxu0 0
    %563 = vmatpush1.bf16.xpose.msra.mxu0 0
    %564 = vmatprep.subr.bf16.mxu0 0
    %565 = vmatpush1.bf16.xpose.msra.mxu0 0
    %566 = vmatprep.subr.bf16.mxu0 0
    %567 = vmatpush1.bf16.xpose.msra.mxu0 0
    %568 = vmatprep.subr.bf16.mxu0 0
    %569 = vmatpush1.bf16.xpose.msra.mxu0 0
    %570 = vmatprep.subr.bf16.mxu0 0
    %571 = vmatpush1.bf16.xpose.msra.mxu0 0
    %572 = vmatprep.subr.bf16.mxu0 0
    %573 = vmatpush1.bf16.xpose.msra.mxu0 0
    %574 = vmatprep.subr.bf16.mxu0 0
    %575 = vmatpush1.bf16.xpose.msra.mxu0 0
    %576 = vmatprep.subr.bf16.mxu0 0
    %577 = vmatpush1.bf16.xpose.msra.mxu0 %v560
    %578 = vmatprep.subr.bf16.mxu0 0
    %579 = vmatpush2.bf16.xpose.msra.mxu0 0
    %580 = vmatprep.subr.bf16.mxu0 0
    %581 = vmatpush2.bf16.xpose.msra.mxu0 0
    %582 = vmatprep.subr.bf16.mxu0 0
    %583 = vmatpush2.bf16.xpose.msra.mxu0 0
    %584 = vmatprep.subr.bf16.mxu0 0
    %585 = vmatpush2.bf16.xpose.msra.mxu0 0
    %586 = vmatprep.subr.bf16.mxu0 0
    %587 = vmatpush2.bf16.xpose.msra.mxu0 0
    %588 = vmatprep.subr.bf16.mxu0 0
    %589 = vmatpush2.bf16.xpose.msra.mxu0 0
    %590 = vmatprep.subr.bf16.mxu0 0
    %591 = vmatpush2.bf16.xpose.msra.mxu0 0
    %592 = vmatprep.subr.bf16.mxu0 0
    %593 = vmatpush2.bf16.xpose.msra.mxu0 0
    %594 = vmatprep.mubr.bf16.mxu0 0
    %595 = vmatmul.mubr.bf16.gmra.mxu0 %v557
    %v596 = vpop.f32.mrf.mxu0
    %v597 = vadd.f32 %v441, %v596
    %v598 = vpop.f32.mrf.mxu0
    %v599 = vpop.f32.mrf.mxu0
    %v600 = vpop.f32.mrf.mxu0
    %601 = vdwg.mxu0
    %v602 = vsel %vm490, %v597, -inf
    %603 = vmax.xlane.f32.xlu0 %v602
    %v604 = vpop.xlane.xlu0 %603
    %v605 = vsub.f32 %v597, %v604
    %v606 = vmul.f32 %v605, 1.442695
    %v607 = vpow.pop %v606
    %v608 = vsel %vm490, %v607, 0.0
    %609 = vadd.xlane.f32.xlu0 %v608
    %v610 = vpop.xlane.xlu0 %609
    %v611 = vrcp.pop %v610
    %v612 = vmul.f32 %v607, %v611
    %v613 = vpack.c.bf16 %v612, %v612
    %615 = vrot.lane.b32.xlu0 %v436, 96
    %v616 = vpop.permute.xlu0 %615
    %v618 = vsel %vm490, %v613, 0
    %v621 = vsel %vm506, %v616, 0
    %623 = vmatprep.subr.bf16.mxu0 0
    %624 = vmatpush1.bf16.msra.mxu0 0
    %625 = vmatprep.subr.bf16.mxu0 0
    %626 = vmatpush1.bf16.msra.mxu0 0
    %627 = vmatprep.subr.bf16.mxu0 0
    %628 = vmatpush1.bf16.msra.mxu0 0
    %629 = vmatprep.subr.bf16.mxu0 0
    %630 = vmatpush1.bf16.msra.mxu0 0
    %631 = vmatprep.subr.bf16.mxu0 0
    %632 = vmatpush1.bf16.msra.mxu0 0
    %633 = vmatprep.subr.bf16.mxu0 0
    %634 = vmatpush1.bf16.msra.mxu0 0
    %635 = vmatprep.subr.bf16.mxu0 0
    %636 = vmatpush1.bf16.msra.mxu0 0
    %637 = vmatprep.subr.bf16.mxu0 0
    %638 = vmatpush1.bf16.msra.mxu0 %v621
    %639 = vmatprep.subr.bf16.mxu0 0
    %640 = vmatpush2.bf16.msra.mxu0 0
    %641 = vmatprep.subr.bf16.mxu0 0
    %642 = vmatpush2.bf16.msra.mxu0 0
    %643 = vmatprep.subr.bf16.mxu0 0
    %644 = vmatpush2.bf16.msra.mxu0 0
    %645 = vmatprep.subr.bf16.mxu0 0
    %646 = vmatpush2.bf16.msra.mxu0 0
    %647 = vmatprep.subr.bf16.mxu0 0
    %648 = vmatpush2.bf16.msra.mxu0 0
    %649 = vmatprep.subr.bf16.mxu0 0
    %650 = vmatpush2.bf16.msra.mxu0 0
    %651 = vmatprep.subr.bf16.mxu0 0
    %652 = vmatpush2.bf16.msra.mxu0 0
    %653 = vmatprep.subr.bf16.mxu0 0
    %654 = vmatpush2.bf16.msra.mxu0 0
    %655 = vmatprep.mubr.bf16.mxu0 0
    %656 = vmatmul.mubr.bf16.gmra.mxu0 %v618
    %v657 = vpop.f32.mrf.mxu0
    %v658 = vadd.f32 0.0, %v657
    %v659 = vpop.f32.mrf.mxu0
    %v660 = vpop.f32.mrf.mxu0
    %v661 = vpop.f32.mrf.mxu0
    %662 = vdwg.mxu0
    %663 = vrot.lane.b32.xlu0 %v434, 64
    %v664 = vpop.permute.xlu0 %663
    %665 = vrot.lane.b32.xlu0 %v435, 64
    %v666 = vpop.permute.xlu0 %665
    %v668 = vsel %vm443, %v664, 0
    %v671 = vsel %vm443, %v666, 0
    %673 = vmatprep.subr.bf16.mxu0 0
    %674 = vmatpush1.bf16.xpose.msra.mxu0 0
    %675 = vmatprep.subr.bf16.mxu0 0
    %676 = vmatpush1.bf16.xpose.msra.mxu0 0
    %677 = vmatprep.subr.bf16.mxu0 0
    %678 = vmatpush1.bf16.xpose.msra.mxu0 0
    %679 = vmatprep.subr.bf16.mxu0 0
    %680 = vmatpush1.bf16.xpose.msra.mxu0 0
    %681 = vmatprep.subr.bf16.mxu0 0
    %682 = vmatpush1.bf16.xpose.msra.mxu0 0
    %683 = vmatprep.subr.bf16.mxu0 0
    %684 = vmatpush1.bf16.xpose.msra.mxu0 0
    %685 = vmatprep.subr.bf16.mxu0 0
    %686 = vmatpush1.bf16.xpose.msra.mxu0 0
    %687 = vmatprep.subr.bf16.mxu0 0
    %688 = vmatpush1.bf16.xpose.msra.mxu0 %v671
    %689 = vmatprep.subr.bf16.mxu0 0
    %690 = vmatpush2.bf16.xpose.msra.mxu0 0
    %691 = vmatprep.subr.bf16.mxu0 0
    %692 = vmatpush2.bf16.xpose.msra.mxu0 0
    %693 = vmatprep.subr.bf16.mxu0 0
    %694 = vmatpush2.bf16.xpose.msra.mxu0 0
    %695 = vmatprep.subr.bf16.mxu0 0
    %696 = vmatpush2.bf16.xpose.msra.mxu0 0
    %697 = vmatprep.subr.bf16.mxu0 0
    %698 = vmatpush2.bf16.xpose.msra.mxu0 0
    %699 = vmatprep.subr.bf16.mxu0 0
    %700 = vmatpush2.bf16.xpose.msra.mxu0 0
    %701 = vmatprep.subr.bf16.mxu0 0
    %702 = vmatpush2.bf16.xpose.msra.mxu0 0
    %703 = vmatprep.subr.bf16.mxu0 0
    %704 = vmatpush2.bf16.xpose.msra.mxu0 0
    %705 = vmatprep.mubr.bf16.mxu0 0
    %706 = vmatmul.mubr.bf16.gmra.mxu0 %v668
    %v707 = vpop.f32.mrf.mxu0
    %v708 = vadd.f32 %v441, %v707
    %v709 = vpop.f32.mrf.mxu0
    %v710 = vpop.f32.mrf.mxu0
    %v711 = vpop.f32.mrf.mxu0
    %712 = vdwg.mxu0
    %v713 = vsel %vm490, %v708, -inf
    %714 = vmax.xlane.f32.xlu0 %v713
    %v715 = vpop.xlane.xlu0 %714
    %v716 = vsub.f32 %v708, %v715
    %v717 = vmul.f32 %v716, 1.442695
    %v718 = vpow.pop %v717
    %v719 = vsel %vm490, %v718, 0.0
    %720 = vadd.xlane.f32.xlu0 %v719
    %v721 = vpop.xlane.xlu0 %720
    %v722 = vrcp.pop %v721
    %v723 = vmul.f32 %v718, %v722
    %v724 = vpack.c.bf16 %v723, %v723
    %725 = vrot.lane.b32.xlu0 %v436, 64
    %v726 = vpop.permute.xlu0 %725
    %v728 = vsel %vm490, %v724, 0
    %v731 = vsel %vm506, %v726, 0
    %733 = vmatprep.subr.bf16.mxu0 0
    %734 = vmatpush1.bf16.msra.mxu0 0
    %735 = vmatprep.subr.bf16.mxu0 0
    %736 = vmatpush1.bf16.msra.mxu0 0
    %737 = vmatprep.subr.bf16.mxu0 0
    %738 = vmatpush1.bf16.msra.mxu0 0
    %739 = vmatprep.subr.bf16.mxu0 0
    %740 = vmatpush1.bf16.msra.mxu0 0
    %741 = vmatprep.subr.bf16.mxu0 0
    %742 = vmatpush1.bf16.msra.mxu0 0
    %743 = vmatprep.subr.bf16.mxu0 0
    %744 = vmatpush1.bf16.msra.mxu0 0
    %745 = vmatprep.subr.bf16.mxu0 0
    %746 = vmatpush1.bf16.msra.mxu0 0
    %747 = vmatprep.subr.bf16.mxu0 0
    %748 = vmatpush1.bf16.msra.mxu0 %v731
    %749 = vmatprep.subr.bf16.mxu0 0
    %750 = vmatpush2.bf16.msra.mxu0 0
    %751 = vmatprep.subr.bf16.mxu0 0
    %752 = vmatpush2.bf16.msra.mxu0 0
    %753 = vmatprep.subr.bf16.mxu0 0
    %754 = vmatpush2.bf16.msra.mxu0 0
    %755 = vmatprep.subr.bf16.mxu0 0
    %756 = vmatpush2.bf16.msra.mxu0 0
    %757 = vmatprep.subr.bf16.mxu0 0
    %758 = vmatpush2.bf16.msra.mxu0 0
    %759 = vmatprep.subr.bf16.mxu0 0
    %760 = vmatpush2.bf16.msra.mxu0 0
    %761 = vmatprep.subr.bf16.mxu0 0
    %762 = vmatpush2.bf16.msra.mxu0 0
    %763 = vmatprep.subr.bf16.mxu0 0
    %764 = vmatpush2.bf16.msra.mxu0 0
    %765 = vmatprep.mubr.bf16.mxu0 0
    %766 = vmatmul.mubr.bf16.gmra.mxu0 %v728
    %v767 = vpop.f32.mrf.mxu0
    %v768 = vadd.f32 0.0, %v767
    %v769 = vpop.f32.mrf.mxu0
    %v770 = vpop.f32.mrf.mxu0
    %v771 = vpop.f32.mrf.mxu0
    %772 = vdwg.mxu0
    %773 = vrot.lane.b32.xlu0 %v434, 32
    %v774 = vpop.permute.xlu0 %773
    %775 = vrot.lane.b32.xlu0 %v435, 32
    %v776 = vpop.permute.xlu0 %775
    %v778 = vsel %vm443, %v774, 0
    %v781 = vsel %vm443, %v776, 0
    %783 = vmatprep.subr.bf16.mxu0 0
    %784 = vmatpush1.bf16.xpose.msra.mxu0 0
    %785 = vmatprep.subr.bf16.mxu0 0
    %786 = vmatpush1.bf16.xpose.msra.mxu0 0
    %787 = vmatprep.subr.bf16.mxu0 0
    %788 = vmatpush1.bf16.xpose.msra.mxu0 0
    %789 = vmatprep.subr.bf16.mxu0 0
    %790 = vmatpush1.bf16.xpose.msra.mxu0 0
    %791 = vmatprep.subr.bf16.mxu0 0
    %792 = vmatpush1.bf16.xpose.msra.mxu0 0
    %793 = vmatprep.subr.bf16.mxu0 0
    %794 = vmatpush1.bf16.xpose.msra.mxu0 0
    %795 = vmatprep.subr.bf16.mxu0 0
    %796 = vmatpush1.bf16.xpose.msra.mxu0 0
    %797 = vmatprep.subr.bf16.mxu0 0
    %798 = vmatpush1.bf16.xpose.msra.mxu0 %v781
    %799 = vmatprep.subr.bf16.mxu0 0
    %800 = vmatpush2.bf16.xpose.msra.mxu0 0
    %801 = vmatprep.subr.bf16.mxu0 0
    %802 = vmatpush2.bf16.xpose.msra.mxu0 0
    %803 = vmatprep.subr.bf16.mxu0 0
    %804 = vmatpush2.bf16.xpose.msra.mxu0 0
    %805 = vmatprep.subr.bf16.mxu0 0
    %806 = vmatpush2.bf16.xpose.msra.mxu0 0
    %807 = vmatprep.subr.bf16.mxu0 0
    %808 = vmatpush2.bf16.xpose.msra.mxu0 0
    %809 = vmatprep.subr.bf16.mxu0 0
    %810 = vmatpush2.bf16.xpose.msra.mxu0 0
    %811 = vmatprep.subr.bf16.mxu0 0
    %812 = vmatpush2.bf16.xpose.msra.mxu0 0
    %813 = vmatprep.subr.bf16.mxu0 0
    %814 = vmatpush2.bf16.xpose.msra.mxu0 0
    %815 = vmatprep.mubr.bf16.mxu0 0
    %816 = vmatmul.mubr.bf16.gmra.mxu0 %v778
    %v817 = vpop.f32.mrf.mxu0
    %v818 = vadd.f32 %v441, %v817
    %v819 = vpop.f32.mrf.mxu0
    %v820 = vpop.f32.mrf.mxu0
    %v821 = vpop.f32.mrf.mxu0
    %822 = vdwg.mxu0
    %v823 = vsel %vm490, %v818, -inf
    %824 = vmax.xlane.f32.xlu0 %v823
    %v825 = vpop.xlane.xlu0 %824
    %v826 = vsub.f32 %v818, %v825
    %v827 = vmul.f32 %v826, 1.442695
    %v828 = vpow.pop %v827
    %v829 = vsel %vm490, %v828, 0.0
    %830 = vadd.xlane.f32.xlu0 %v829
    %v831 = vpop.xlane.xlu0 %830
    %v832 = vrcp.pop %v831
    %v833 = vmul.f32 %v828, %v832
    %v834 = vpack.c.bf16 %v833, %v833
    %835 = vrot.lane.b32.xlu0 %v436, 32
    %v836 = vpop.permute.xlu0 %835
    %v838 = vsel %vm490, %v834, 0
    %v841 = vsel %vm506, %v836, 0
    %843 = vmatprep.subr.bf16.mxu0 0
    %844 = vmatpush1.bf16.msra.mxu0 0
    %845 = vmatprep.subr.bf16.mxu0 0
    %846 = vmatpush1.bf16.msra.mxu0 0
    %847 = vmatprep.subr.bf16.mxu0 0
    %848 = vmatpush1.bf16.msra.mxu0 0
    %849 = vmatprep.subr.bf16.mxu0 0
    %850 = vmatpush1.bf16.msra.mxu0 0
    %851 = vmatprep.subr.bf16.mxu0 0
    %852 = vmatpush1.bf16.msra.mxu0 0
    %853 = vmatprep.subr.bf16.mxu0 0
    %854 = vmatpush1.bf16.msra.mxu0 0
    %855 = vmatprep.subr.bf16.mxu0 0
    %856 = vmatpush1.bf16.msra.mxu0 0
    %857 = vmatprep.subr.bf16.mxu0 0
    %858 = vmatpush1.bf16.msra.mxu0 %v841
    %859 = vmatprep.subr.bf16.mxu0 0
    %860 = vmatpush2.bf16.msra.mxu0 0
    %861 = vmatprep.subr.bf16.mxu0 0
    %862 = vmatpush2.bf16.msra.mxu0 0
    %863 = vmatprep.subr.bf16.mxu0 0
    %864 = vmatpush2.bf16.msra.mxu0 0
    %865 = vmatprep.subr.bf16.mxu0 0
    %866 = vmatpush2.bf16.msra.mxu0 0
    %867 = vmatprep.subr.bf16.mxu0 0
    %868 = vmatpush2.bf16.msra.mxu0 0
    %869 = vmatprep.subr.bf16.mxu0 0
    %870 = vmatpush2.bf16.msra.mxu0 0
    %871 = vmatprep.subr.bf16.mxu0 0
    %872 = vmatpush2.bf16.msra.mxu0 0
    %873 = vmatprep.subr.bf16.mxu0 0
    %874 = vmatpush2.bf16.msra.mxu0 0
    %875 = vmatprep.mubr.bf16.mxu0 0
    %876 = vmatmul.mubr.bf16.gmra.mxu0 %v838
    %v877 = vpop.f32.mrf.mxu0
    %v878 = vadd.f32 0.0, %v877
    %v879 = vpop.f32.mrf.mxu0
    %v880 = vpop.f32.mrf.mxu0
    %v881 = vpop.f32.mrf.mxu0
    %882 = vdwg.mxu0
    %884 = vrot.lane.b32.xlu0 %v658, 32
    %v885 = vpop.permute.xlu0 %884
    %888 = vrot.lane.b32.xlu0 %v768, 64
    %v889 = vpop.permute.xlu0 %888
    %892 = vrot.lane.b32.xlu0 %v878, 96
    %v893 = vpop.permute.xlu0 %892
    %v895 = vsel %vm443, %v545, %v885
    %vm896 = vcmask 523264
    %v897 = vsel %vm896, %v895, %v889
    %vm898 = vcmask 785408
    %v899 = vsel %vm898, %v897, %v893
    %v900 = vpack.c.bf16 %v389, %v389
    %v901 = vpack.c.bf16 %v391, %v391
    %v902 = vpack.c.bf16 %v431, %v431
    %v904 = vlaneseq
    %v905 = vshrl.u32 %v904, 7
    %v906 = vsub.s32 0, %v905
    %v907 = vrot.slane %v171, %v906
    %v910 = vsel %vm443, %v900, 0
    %v913 = vsel %vm443, %v901, 0
    %915 = vmatprep.subr.bf16.mxu0 0
    %916 = vmatpush1.bf16.xpose.msra.mxu0 0
    %917 = vmatprep.subr.bf16.mxu0 0
    %918 = vmatpush1.bf16.xpose.msra.mxu0 0
    %919 = vmatprep.subr.bf16.mxu0 0
    %920 = vmatpush1.bf16.xpose.msra.mxu0 0
    %921 = vmatprep.subr.bf16.mxu0 0
    %922 = vmatpush1.bf16.xpose.msra.mxu0 0
    %923 = vmatprep.subr.bf16.mxu0 0
    %924 = vmatpush1.bf16.xpose.msra.mxu0 0
    %925 = vmatprep.subr.bf16.mxu0 0
    %926 = vmatpush1.bf16.xpose.msra.mxu0 0
    %927 = vmatprep.subr.bf16.mxu0 0
    %928 = vmatpush1.bf16.xpose.msra.mxu0 0
    %929 = vmatprep.subr.bf16.mxu0 0
    %930 = vmatpush1.bf16.xpose.msra.mxu0 %v913
    %931 = vmatprep.subr.bf16.mxu0 0
    %932 = vmatpush2.bf16.xpose.msra.mxu0 0
    %933 = vmatprep.subr.bf16.mxu0 0
    %934 = vmatpush2.bf16.xpose.msra.mxu0 0
    %935 = vmatprep.subr.bf16.mxu0 0
    %936 = vmatpush2.bf16.xpose.msra.mxu0 0
    %937 = vmatprep.subr.bf16.mxu0 0
    %938 = vmatpush2.bf16.xpose.msra.mxu0 0
    %939 = vmatprep.subr.bf16.mxu0 0
    %940 = vmatpush2.bf16.xpose.msra.mxu0 0
    %941 = vmatprep.subr.bf16.mxu0 0
    %942 = vmatpush2.bf16.xpose.msra.mxu0 0
    %943 = vmatprep.subr.bf16.mxu0 0
    %944 = vmatpush2.bf16.xpose.msra.mxu0 0
    %945 = vmatprep.subr.bf16.mxu0 0
    %946 = vmatpush2.bf16.xpose.msra.mxu0 0
    %947 = vmatprep.mubr.bf16.mxu0 0
    %948 = vmatmul.mubr.bf16.gmra.mxu0 %v910
    %v949 = vpop.f32.mrf.mxu0
    %v950 = vadd.f32 %v907, %v949
    %v951 = vpop.f32.mrf.mxu0
    %v952 = vpop.f32.mrf.mxu0
    %v953 = vpop.f32.mrf.mxu0
    %954 = vdwg.mxu0
    %v955 = vsel %vm490, %v950, -inf
    %956 = vmax.xlane.f32.xlu0 %v955
    %v957 = vpop.xlane.xlu0 %956
    %v958 = vsub.f32 %v950, %v957
    %v959 = vmul.f32 %v958, 1.442695
    %v960 = vpow.pop %v959
    %v961 = vsel %vm490, %v960, 0.0
    %962 = vadd.xlane.f32.xlu0 %v961
    %v963 = vpop.xlane.xlu0 %962
    %v964 = vrcp.pop %v963
    %v965 = vmul.f32 %v960, %v964
    %v966 = vpack.c.bf16 %v965, %v965
    %v968 = vsel %vm490, %v966, 0
    %v971 = vsel %vm506, %v902, 0
    %973 = vmatprep.subr.bf16.mxu0 0
    %974 = vmatpush1.bf16.msra.mxu0 0
    %975 = vmatprep.subr.bf16.mxu0 0
    %976 = vmatpush1.bf16.msra.mxu0 0
    %977 = vmatprep.subr.bf16.mxu0 0
    %978 = vmatpush1.bf16.msra.mxu0 0
    %979 = vmatprep.subr.bf16.mxu0 0
    %980 = vmatpush1.bf16.msra.mxu0 0
    %981 = vmatprep.subr.bf16.mxu0 0
    %982 = vmatpush1.bf16.msra.mxu0 0
    %983 = vmatprep.subr.bf16.mxu0 0
    %984 = vmatpush1.bf16.msra.mxu0 0
    %985 = vmatprep.subr.bf16.mxu0 0
    %986 = vmatpush1.bf16.msra.mxu0 0
    %987 = vmatprep.subr.bf16.mxu0 0
    %988 = vmatpush1.bf16.msra.mxu0 %v971
    %989 = vmatprep.subr.bf16.mxu0 0
    %990 = vmatpush2.bf16.msra.mxu0 0
    %991 = vmatprep.subr.bf16.mxu0 0
    %992 = vmatpush2.bf16.msra.mxu0 0
    %993 = vmatprep.subr.bf16.mxu0 0
    %994 = vmatpush2.bf16.msra.mxu0 0
    %995 = vmatprep.subr.bf16.mxu0 0
    %996 = vmatpush2.bf16.msra.mxu0 0
    %997 = vmatprep.subr.bf16.mxu0 0
    %998 = vmatpush2.bf16.msra.mxu0 0
    %999 = vmatprep.subr.bf16.mxu0 0
    %1000 = vmatpush2.bf16.msra.mxu0 0
    %1001 = vmatprep.subr.bf16.mxu0 0
    %1002 = vmatpush2.bf16.msra.mxu0 0
    %1003 = vmatprep.subr.bf16.mxu0 0
    %1004 = vmatpush2.bf16.msra.mxu0 0
    %1005 = vmatprep.mubr.bf16.mxu0 0
    %1006 = vmatmul.mubr.bf16.gmra.mxu0 %v968
    %v1007 = vpop.f32.mrf.mxu0
    %v1008 = vadd.f32 0.0, %v1007
    %v1009 = vpop.f32.mrf.mxu0
    %v1010 = vpop.f32.mrf.mxu0
    %v1011 = vpop.f32.mrf.mxu0
    %1012 = vdwg.mxu0
    %1014 = vrot.lane.b32.xlu0 %v900, 96
    %v1015 = vpop.permute.xlu0 %1014
    %1017 = vrot.lane.b32.xlu0 %v901, 96
    %v1018 = vpop.permute.xlu0 %1017
    %v1020 = vsel %vm443, %v1015, 0
    %v1023 = vsel %vm443, %v1018, 0
    %1025 = vmatprep.subr.bf16.mxu0 0
    %1026 = vmatpush1.bf16.xpose.msra.mxu0 0
    %1027 = vmatprep.subr.bf16.mxu0 0
    %1028 = vmatpush1.bf16.xpose.msra.mxu0 0
    %1029 = vmatprep.subr.bf16.mxu0 0
    %1030 = vmatpush1.bf16.xpose.msra.mxu0 0
    %1031 = vmatprep.subr.bf16.mxu0 0
    %1032 = vmatpush1.bf16.xpose.msra.mxu0 0
    %1033 = vmatprep.subr.bf16.mxu0 0
    %1034 = vmatpush1.bf16.xpose.msra.mxu0 0
    %1035 = vmatprep.subr.bf16.mxu0 0
    %1036 = vmatpush1.bf16.xpose.msra.mxu0 0
    %1037 = vmatprep.subr.bf16.mxu0 0
    %1038 = vmatpush1.bf16.xpose.msra.mxu0 0
    %1039 = vmatprep.subr.bf16.mxu0 0
    %1040 = vmatpush1.bf16.xpose.msra.mxu0 %v1023
    %1041 = vmatprep.subr.bf16.mxu0 0
    %1042 = vmatpush2.bf16.xpose.msra.mxu0 0
    %1043 = vmatprep.subr.bf16.mxu0 0
    %1044 = vmatpush2.bf16.xpose.msra.mxu0 0
    %1045 = vmatprep.subr.bf16.mxu0 0
    %1046 = vmatpush2.bf16.xpose.msra.mxu0 0
    %1047 = vmatprep.subr.bf16.mxu0 0
    %1048 = vmatpush2.bf16.xpose.msra.mxu0 0
    %1049 = vmatprep.subr.bf16.mxu0 0
    %1050 = vmatpush2.bf16.xpose.msra.mxu0 0
    %1051 = vmatprep.subr.bf16.mxu0 0
    %1052 = vmatpush2.bf16.xpose.msra.mxu0 0
    %1053 = vmatprep.subr.bf16.mxu0 0
    %1054 = vmatpush2.bf16.xpose.msra.mxu0 0
    %1055 = vmatprep.subr.bf16.mxu0 0
    %1056 = vmatpush2.bf16.xpose.msra.mxu0 0
    %1057 = vmatprep.mubr.bf16.mxu0 0
    %1058 = vmatmul.mubr.bf16.gmra.mxu0 %v1020
    %v1059 = vpop.f32.mrf.mxu0
    %v1060 = vadd.f32 %v907, %v1059
    %v1061 = vpop.f32.mrf.mxu0
    %v1062 = vpop.f32.mrf.mxu0
    %v1063 = vpop.f32.mrf.mxu0
    %1064 = vdwg.mxu0
    %v1065 = vsel %vm490, %v1060, -inf
    %1066 = vmax.xlane.f32.xlu0 %v1065
    %v1067 = vpop.xlane.xlu0 %1066
    %v1068 = vsub.f32 %v1060, %v1067
    %v1069 = vmul.f32 %v1068, 1.442695
    %v1070 = vpow.pop %v1069
    %v1071 = vsel %vm490, %v1070, 0.0
    %1072 = vadd.xlane.f32.xlu0 %v1071
    %v1073 = vpop.xlane.xlu0 %1072
    %v1074 = vrcp.pop %v1073
    %v1075 = vmul.f32 %v1070, %v1074
    %v1076 = vpack.c.bf16 %v1075, %v1075
    %1078 = vrot.lane.b32.xlu0 %v902, 96
    %v1079 = vpop.permute.xlu0 %1078
    %v1081 = vsel %vm490, %v1076, 0
    %v1084 = vsel %vm506, %v1079, 0
    %1086 = vmatprep.subr.bf16.mxu0 0
    %1087 = vmatpush1.bf16.msra.mxu0 0
    %1088 = vmatprep.subr.bf16.mxu0 0
    %1089 = vmatpush1.bf16.msra.mxu0 0
    %1090 = vmatprep.subr.bf16.mxu0 0
    %1091 = vmatpush1.bf16.msra.mxu0 0
    %1092 = vmatprep.subr.bf16.mxu0 0
    %1093 = vmatpush1.bf16.msra.mxu0 0
    %1094 = vmatprep.subr.bf16.mxu0 0
    %1095 = vmatpush1.bf16.msra.mxu0 0
    %1096 = vmatprep.subr.bf16.mxu0 0
    %1097 = vmatpush1.bf16.msra.mxu0 0
    %1098 = vmatprep.subr.bf16.mxu0 0
    %1099 = vmatpush1.bf16.msra.mxu0 0
    %1100 = vmatprep.subr.bf16.mxu0 0
    %1101 = vmatpush1.bf16.msra.mxu0 %v1084
    %1102 = vmatprep.subr.bf16.mxu0 0
    %1103 = vmatpush2.bf16.msra.mxu0 0
    %1104 = vmatprep.subr.bf16.mxu0 0
    %1105 = vmatpush2.bf16.msra.mxu0 0
    %1106 = vmatprep.subr.bf16.mxu0 0
    %1107 = vmatpush2.bf16.msra.mxu0 0
    %1108 = vmatprep.subr.bf16.mxu0 0
    %1109 = vmatpush2.bf16.msra.mxu0 0
    %1110 = vmatprep.subr.bf16.mxu0 0
    %1111 = vmatpush2.bf16.msra.mxu0 0
    %1112 = vmatprep.subr.bf16.mxu0 0
    %1113 = vmatpush2.bf16.msra.mxu0 0
    %1114 = vmatprep.subr.bf16.mxu0 0
    %1115 = vmatpush2.bf16.msra.mxu0 0
    %1116 = vmatprep.subr.bf16.mxu0 0
    %1117 = vmatpush2.bf16.msra.mxu0 0
    %1118 = vmatprep.mubr.bf16.mxu0 0
    %1119 = vmatmul.mubr.bf16.gmra.mxu0 %v1081
    %v1120 = vpop.f32.mrf.mxu0
    %v1121 = vadd.f32 0.0, %v1120
    %v1122 = vpop.f32.mrf.mxu0
    %v1123 = vpop.f32.mrf.mxu0
    %v1124 = vpop.f32.mrf.mxu0
    %1125 = vdwg.mxu0
    %1126 = vrot.lane.b32.xlu0 %v900, 64
    %v1127 = vpop.permute.xlu0 %1126
    %1128 = vrot.lane.b32.xlu0 %v901, 64
    %v1129 = vpop.permute.xlu0 %1128
    %v1131 = vsel %vm443, %v1127, 0
    %v1134 = vsel %vm443, %v1129, 0
    %1136 = vmatprep.subr.bf16.mxu0 0
    %1137 = vmatpush1.bf16.xpose.msra.mxu0 0
    %1138 = vmatprep.subr.bf16.mxu0 0
    %1139 = vmatpush1.bf16.xpose.msra.mxu0 0
    %1140 = vmatprep.subr.bf16.mxu0 0
    %1141 = vmatpush1.bf16.xpose.msra.mxu0 0
    %1142 = vmatprep.subr.bf16.mxu0 0
    %1143 = vmatpush1.bf16.xpose.msra.mxu0 0
    %1144 = vmatprep.subr.bf16.mxu0 0
    %1145 = vmatpush1.bf16.xpose.msra.mxu0 0
    %1146 = vmatprep.subr.bf16.mxu0 0
    %1147 = vmatpush1.bf16.xpose.msra.mxu0 0
    %1148 = vmatprep.subr.bf16.mxu0 0
    %1149 = vmatpush1.bf16.xpose.msra.mxu0 0
    %1150 = vmatprep.subr.bf16.mxu0 0
    %1151 = vmatpush1.bf16.xpose.msra.mxu0 %v1134
    %1152 = vmatprep.subr.bf16.mxu0 0
    %1153 = vmatpush2.bf16.xpose.msra.mxu0 0
    %1154 = vmatprep.subr.bf16.mxu0 0
    %1155 = vmatpush2.bf16.xpose.msra.mxu0 0
    %1156 = vmatprep.subr.bf16.mxu0 0
    %1157 = vmatpush2.bf16.xpose.msra.mxu0 0
    %1158 = vmatprep.subr.bf16.mxu0 0
    %1159 = vmatpush2.bf16.xpose.msra.mxu0 0
    %1160 = vmatprep.subr.bf16.mxu0 0
    %1161 = vmatpush2.bf16.xpose.msra.mxu0 0
    %1162 = vmatprep.subr.bf16.mxu0 0
    %1163 = vmatpush2.bf16.xpose.msra.mxu0 0
    %1164 = vmatprep.subr.bf16.mxu0 0
    %1165 = vmatpush2.bf16.xpose.msra.mxu0 0
    %1166 = vmatprep.subr.bf16.mxu0 0
    %1167 = vmatpush2.bf16.xpose.msra.mxu0 0
    %1168 = vmatprep.mubr.bf16.mxu0 0
    %1169 = vmatmul.mubr.bf16.gmra.mxu0 %v1131
    %v1170 = vpop.f32.mrf.mxu0
    %v1171 = vadd.f32 %v907, %v1170
    %v1172 = vpop.f32.mrf.mxu0
    %v1173 = vpop.f32.mrf.mxu0
    %v1174 = vpop.f32.mrf.mxu0
    %1175 = vdwg.mxu0
    %v1176 = vsel %vm490, %v1171, -inf
    %1177 = vmax.xlane.f32.xlu0 %v1176
    %v1178 = vpop.xlane.xlu0 %1177
    %v1179 = vsub.f32 %v1171, %v1178
    %v1180 = vmul.f32 %v1179, 1.442695
    %v1181 = vpow.pop %v1180
    %v1182 = vsel %vm490, %v1181, 0.0
    %1183 = vadd.xlane.f32.xlu0 %v1182
    %v1184 = vpop.xlane.xlu0 %1183
    %v1185 = vrcp.pop %v1184
    %v1186 = vmul.f32 %v1181, %v1185
    %v1187 = vpack.c.bf16 %v1186, %v1186
    %1188 = vrot.lane.b32.xlu0 %v902, 64
    %v1189 = vpop.permute.xlu0 %1188
    %v1191 = vsel %vm490, %v1187, 0
    %v1194 = vsel %vm506, %v1189, 0
    %1196 = vmatprep.subr.bf16.mxu0 0
    %1197 = vmatpush1.bf16.msra.mxu0 0
    %1198 = vmatprep.subr.bf16.mxu0 0
    %1199 = vmatpush1.bf16.msra.mxu0 0
    %1200 = vmatprep.subr.bf16.mxu0 0
    %1201 = vmatpush1.bf16.msra.mxu0 0
    %1202 = vmatprep.subr.bf16.mxu0 0
    %1203 = vmatpush1.bf16.msra.mxu0 0
    %1204 = vmatprep.subr.bf16.mxu0 0
    %1205 = vmatpush1.bf16.msra.mxu0 0
    %1206 = vmatprep.subr.bf16.mxu0 0
    %1207 = vmatpush1.bf16.msra.mxu0 0
    %1208 = vmatprep.subr.bf16.mxu0 0
    %1209 = vmatpush1.bf16.msra.mxu0 0
    %1210 = vmatprep.subr.bf16.mxu0 0
    %1211 = vmatpush1.bf16.msra.mxu0 %v1194
    %1212 = vmatprep.subr.bf16.mxu0 0
    %1213 = vmatpush2.bf16.msra.mxu0 0
    %1214 = vmatprep.subr.bf16.mxu0 0
    %1215 = vmatpush2.bf16.msra.mxu0 0
    %1216 = vmatprep.subr.bf16.mxu0 0
    %1217 = vmatpush2.bf16.msra.mxu0 0
    %1218 = vmatprep.subr.bf16.mxu0 0
    %1219 = vmatpush2.bf16.msra.mxu0 0
    %1220 = vmatprep.subr.bf16.mxu0 0
    %1221 = vmatpush2.bf16.msra.mxu0 0
    %1222 = vmatprep.subr.bf16.mxu0 0
    %1223 = vmatpush2.bf16.msra.mxu0 0
    %1224 = vmatprep.subr.bf16.mxu0 0
    %1225 = vmatpush2.bf16.msra.mxu0 0
    %1226 = vmatprep.subr.bf16.mxu0 0
    %1227 = vmatpush2.bf16.msra.mxu0 0
    %1228 = vmatprep.mubr.bf16.mxu0 0
    %1229 = vmatmul.mubr.bf16.gmra.mxu0 %v1191
    %v1230 = vpop.f32.mrf.mxu0
    %v1231 = vadd.f32 0.0, %v1230
    %v1232 = vpop.f32.mrf.mxu0
    %v1233 = vpop.f32.mrf.mxu0
    %v1234 = vpop.f32.mrf.mxu0
    %1235 = vdwg.mxu0
    %1236 = vrot.lane.b32.xlu0 %v900, 32
    %v1237 = vpop.permute.xlu0 %1236
    %1238 = vrot.lane.b32.xlu0 %v901, 32
    %v1239 = vpop.permute.xlu0 %1238
    %v1241 = vsel %vm443, %v1237, 0
    %v1244 = vsel %vm443, %v1239, 0
    %1246 = vmatprep.subr.bf16.mxu0 0
    %1247 = vmatpush1.bf16.xpose.msra.mxu0 0
    %1248 = vmatprep.subr.bf16.mxu0 0
    %1249 = vmatpush1.bf16.xpose.msra.mxu0 0
    %1250 = vmatprep.subr.bf16.mxu0 0
    %1251 = vmatpush1.bf16.xpose.msra.mxu0 0
    %1252 = vmatprep.subr.bf16.mxu0 0
    %1253 = vmatpush1.bf16.xpose.msra.mxu0 0
    %1254 = vmatprep.subr.bf16.mxu0 0
    %1255 = vmatpush1.bf16.xpose.msra.mxu0 0
    %1256 = vmatprep.subr.bf16.mxu0 0
    %1257 = vmatpush1.bf16.xpose.msra.mxu0 0
    %1258 = vmatprep.subr.bf16.mxu0 0
    %1259 = vmatpush1.bf16.xpose.msra.mxu0 0
    %1260 = vmatprep.subr.bf16.mxu0 0
    %1261 = vmatpush1.bf16.xpose.msra.mxu0 %v1244
    %1262 = vmatprep.subr.bf16.mxu0 0
    %1263 = vmatpush2.bf16.xpose.msra.mxu0 0
    %1264 = vmatprep.subr.bf16.mxu0 0
    %1265 = vmatpush2.bf16.xpose.msra.mxu0 0
    %1266 = vmatprep.subr.bf16.mxu0 0
    %1267 = vmatpush2.bf16.xpose.msra.mxu0 0
    %1268 = vmatprep.subr.bf16.mxu0 0
    %1269 = vmatpush2.bf16.xpose.msra.mxu0 0
    %1270 = vmatprep.subr.bf16.mxu0 0
    %1271 = vmatpush2.bf16.xpose.msra.mxu0 0
    %1272 = vmatprep.subr.bf16.mxu0 0
    %1273 = vmatpush2.bf16.xpose.msra.mxu0 0
    %1274 = vmatprep.subr.bf16.mxu0 0
    %1275 = vmatpush2.bf16.xpose.msra.mxu0 0
    %1276 = vmatprep.subr.bf16.mxu0 0
    %1277 = vmatpush2.bf16.xpose.msra.mxu0 0
    %1278 = vmatprep.mubr.bf16.mxu0 0
    %1279 = vmatmul.mubr.bf16.gmra.mxu0 %v1241
    %v1280 = vpop.f32.mrf.mxu0
    %v1281 = vadd.f32 %v907, %v1280
    %v1282 = vpop.f32.mrf.mxu0
    %v1283 = vpop.f32.mrf.mxu0
    %v1284 = vpop.f32.mrf.mxu0
    %1285 = vdwg.mxu0
    %v1286 = vsel %vm490, %v1281, -inf
    %1287 = vmax.xlane.f32.xlu0 %v1286
    %v1288 = vpop.xlane.xlu0 %1287
    %v1289 = vsub.f32 %v1281, %v1288
    %v1290 = vmul.f32 %v1289, 1.442695
    %v1291 = vpow.pop %v1290
    %v1292 = vsel %vm490, %v1291, 0.0
    %1293 = vadd.xlane.f32.xlu0 %v1292
    %v1294 = vpop.xlane.xlu0 %1293
    %v1295 = vrcp.pop %v1294
    %v1296 = vmul.f32 %v1291, %v1295
    %v1297 = vpack.c.bf16 %v1296, %v1296
    %1298 = vrot.lane.b32.xlu0 %v902, 32
    %v1299 = vpop.permute.xlu0 %1298
    %v1301 = vsel %vm490, %v1297, 0
    %v1304 = vsel %vm506, %v1299, 0
    %1306 = vmatprep.subr.bf16.mxu0 0
    %1307 = vmatpush1.bf16.msra.mxu0 0
    %1308 = vmatprep.subr.bf16.mxu0 0
    %1309 = vmatpush1.bf16.msra.mxu0 0
    %1310 = vmatprep.subr.bf16.mxu0 0
    %1311 = vmatpush1.bf16.msra.mxu0 0
    %1312 = vmatprep.subr.bf16.mxu0 0
    %1313 = vmatpush1.bf16.msra.mxu0 0
    %1314 = vmatprep.subr.bf16.mxu0 0
    %1315 = vmatpush1.bf16.msra.mxu0 0
    %1316 = vmatprep.subr.bf16.mxu0 0
    %1317 = vmatpush1.bf16.msra.mxu0 0
    %1318 = vmatprep.subr.bf16.mxu0 0
    %1319 = vmatpush1.bf16.msra.mxu0 0
    %1320 = vmatprep.subr.bf16.mxu0 0
    %1321 = vmatpush1.bf16.msra.mxu0 %v1304
    %1322 = vmatprep.subr.bf16.mxu0 0
    %1323 = vmatpush2.bf16.msra.mxu0 0
    %1324 = vmatprep.subr.bf16.mxu0 0
    %1325 = vmatpush2.bf16.msra.mxu0 0
    %1326 = vmatprep.subr.bf16.mxu0 0
    %1327 = vmatpush2.bf16.msra.mxu0 0
    %1328 = vmatprep.subr.bf16.mxu0 0
    %1329 = vmatpush2.bf16.msra.mxu0 0
    %1330 = vmatprep.subr.bf16.mxu0 0
    %1331 = vmatpush2.bf16.msra.mxu0 0
    %1332 = vmatprep.subr.bf16.mxu0 0
    %1333 = vmatpush2.bf16.msra.mxu0 0
    %1334 = vmatprep.subr.bf16.mxu0 0
    %1335 = vmatpush2.bf16.msra.mxu0 0
    %1336 = vmatprep.subr.bf16.mxu0 0
    %1337 = vmatpush2.bf16.msra.mxu0 0
    %1338 = vmatprep.mubr.bf16.mxu0 0
    %1339 = vmatmul.mubr.bf16.gmra.mxu0 %v1301
    %v1340 = vpop.f32.mrf.mxu0
    %v1341 = vadd.f32 0.0, %v1340
    %v1342 = vpop.f32.mrf.mxu0
    %v1343 = vpop.f32.mrf.mxu0
    %v1344 = vpop.f32.mrf.mxu0
    %1345 = vdwg.mxu0
    %1347 = vrot.lane.b32.xlu0 %v1121, 32
    %v1348 = vpop.permute.xlu0 %1347
    %1351 = vrot.lane.b32.xlu0 %v1231, 64
    %v1352 = vpop.permute.xlu0 %1351
    %1355 = vrot.lane.b32.xlu0 %v1341, 96
    %v1356 = vpop.permute.xlu0 %1355
    %v1358 = vsel %vm443, %v1008, %v1348
    %v1359 = vsel %vm896, %v1358, %v1352
    %v1360 = vsel %vm898, %v1359, %v1356
    %v1361 = vpack.c.bf16 %v1360, %v899
    %v1362 = vld [vmem:[#allocation10] sm:$0xf]
    %v1363 = vld [vmem:[#allocation10 + $0x4] sm:$0xf]
    %v1364 = vld [vmem:[#allocation10 + $0x8] sm:$0xf]
    %v1365 = vld [vmem:[#allocation10 + $0xc] sm:$0xf]
    %v1366 = vld [vmem:[#allocation10 + $0x10] sm:$0xf]
    %v1367 = vld [vmem:[#allocation10 + $0x14] sm:$0xf]
    %v1368 = vld [vmem:[#allocation10 + $0x18] sm:$0xf]
    %v1369 = vld [vmem:[#allocation10 + $0x1c] sm:$0xf]
    %v1370 = vld [vmem:[#allocation10 + $0x20] sm:$0xf]
    %v1371 = vld [vmem:[#allocation10 + $0x24] sm:$0xf]
    %v1372 = vld [vmem:[#allocation10 + $0x28] sm:$0xf]
    %v1373 = vld [vmem:[#allocation10 + $0x2c] sm:$0xf]
    %v1374 = vld [vmem:[#allocation10 + $0x30] sm:$0xf]
    %v1375 = vld [vmem:[#allocation10 + $0x34] sm:$0xf]
    %v1376 = vld [vmem:[#allocation10 + $0x38] sm:$0xf]
    %v1377 = vld [vmem:[#allocation10 + $0x3c] sm:$0xf]
    %v1378 = vld [vmem:[%s5] sm:$0x1]
    %v1380 = vlaneseq
    %v1381 = vshrl.u32 %v1380, 7
    %v1382 = vsub.s32 0, %v1381
    %v1383 = vrot.slane %v1378, %v1382
    %v1401 = vunpack.c.l.b16 %v1362
    %v1402 = vunpack.c.l.b16 %v1363
    %v1403 = vunpack.c.l.b16 %v1364
    %v1404 = vunpack.c.l.b16 %v1365
    %v1405 = vunpack.c.l.b16 %v1366
    %v1406 = vunpack.c.l.b16 %v1367
    %v1407 = vunpack.c.l.b16 %v1368
    %v1408 = vunpack.c.l.b16 %v1369
    %v1409 = vunpack.c.l.b16 %v1370
    %v1410 = vunpack.c.l.b16 %v1371
    %v1411 = vunpack.c.l.b16 %v1372
    %v1412 = vunpack.c.l.b16 %v1373
    %v1413 = vunpack.c.l.b16 %v1374
    %v1414 = vunpack.c.l.b16 %v1375
    %v1415 = vunpack.c.l.b16 %v1376
    %v1416 = vunpack.c.l.b16 %v1377
    %v1417 = vpack.c.b16 %v1402, %v1401
    %v1418 = vpack.c.b16 %v1404, %v1403
    %v1419 = vpack.c.b16 %v1406, %v1405
    %v1420 = vpack.c.b16 %v1408, %v1407
    %v1421 = vpack.c.b16 %v1410, %v1409
    %v1422 = vpack.c.b16 %v1412, %v1411
    %v1423 = vpack.c.b16 %v1414, %v1413
    %v1424 = vpack.c.b16 %v1416, %v1415
    %1433 = vmatprep.subr.bf16.mxu0 0
    %1434 = vmatpush1.bf16.msra.mxu0 %v1424
    %1435 = vmatprep.subr.bf16.mxu0 0
    %1436 = vmatpush1.bf16.msra.mxu0 %v1423
    %1437 = vmatprep.subr.bf16.mxu0 0
    %1438 = vmatpush1.bf16.msra.mxu0 %v1422
    %1439 = vmatprep.subr.bf16.mxu0 0
    %1440 = vmatpush1.bf16.msra.mxu0 %v1421
    %1441 = vmatprep.subr.bf16.mxu0 0
    %1442 = vmatpush1.bf16.msra.mxu0 %v1420
    %1443 = vmatprep.subr.bf16.mxu0 0
    %1444 = vmatpush1.bf16.msra.mxu0 %v1419
    %1445 = vmatprep.subr.bf16.mxu0 0
    %1446 = vmatpush1.bf16.msra.mxu0 %v1418
    %1447 = vmatprep.subr.bf16.mxu0 0
    %1448 = vmatpush1.bf16.msra.mxu0 %v1417
    %1449 = vmatprep.subr.bf16.mxu0 0
    %1450 = vmatpush2.bf16.msra.mxu0 0
    %1451 = vmatprep.subr.bf16.mxu0 0
    %1452 = vmatpush2.bf16.msra.mxu0 0
    %1453 = vmatprep.subr.bf16.mxu0 0
    %1454 = vmatpush2.bf16.msra.mxu0 0
    %1455 = vmatprep.subr.bf16.mxu0 0
    %1456 = vmatpush2.bf16.msra.mxu0 0
    %1457 = vmatprep.subr.bf16.mxu0 0
    %1458 = vmatpush2.bf16.msra.mxu0 0
    %1459 = vmatprep.subr.bf16.mxu0 0
    %1460 = vmatpush2.bf16.msra.mxu0 0
    %1461 = vmatprep.subr.bf16.mxu0 0
    %1462 = vmatpush2.bf16.msra.mxu0 0
    %1463 = vmatprep.subr.bf16.mxu0 0
    %1464 = vmatpush2.bf16.msra.mxu0 0
    %1465 = vmatprep.mubr.bf16.mxu0 0
    %1466 = vmatmul.mubr.bf16.gmra.mxu0 %v1361
    %v1467 = vpop.f32.mrf.mxu0
    %v1468 = vadd.f32 %v1383, %v1467
    %v1469 = vpop.f32.mrf.mxu0
    %v1470 = vpop.f32.mrf.mxu0
    %v1471 = vadd.f32 %v1383, %v1470
    %v1472 = vpop.f32.mrf.mxu0
    %1473 = vdwg.mxu0
    %v1474 = vadd.f32 %v164, %v1468
    %v1475 = vadd.f32 %v165, %v1471
    %v1476 = vld [vmem:[%s6] sm:$0x1]
    %v1477 = vld [vmem:[%s7] sm:$0x1]
    %1478 = vadd.xlane.f32.xlu0 %v1474
    %v1479 = vpop.xlane.xlu0 %1478
    %1480 = vadd.xlane.f32.xlu0 %v1475
    %v1481 = vpop.xlane.xlu0 %1480
    %v1482 = vrcp.pop 128.0
    %v1483 = vmul.f32 %v1479, %v1482
    %v1484 = vmul.f32 %v1481, %v1482
    %v1485 = vsub.f32 %v1474, %v1483
    %v1486 = vsub.f32 %v1475, %v1484
    %v1487 = vmul.f32 %v1485, %v1485
    %v1488 = vmul.f32 %v1486, %v1486
    %1489 = vadd.xlane.f32.xlu0 %v1487
    %v1490 = vpop.xlane.xlu0 %1489
    %1491 = vadd.xlane.f32.xlu0 %v1488
    %v1492 = vpop.xlane.xlu0 %1491
    %v1493 = vmul.f32 %v1490, %v1482
    %v1494 = vmul.f32 %v1492, %v1482
    %v1495 = vadd.f32 %v1493, 1e-05
    %v1496 = vadd.f32 %v1494, 1e-05
    %v1497 = vrsqrt.pop %v1495
    %v1498 = vrsqrt.pop %v1496
    %v1499 = vmul.f32 %v1485, %v1497
    %v1500 = vmul.f32 %v1486, %v1498
    %v1502 = vlaneseq
    %v1503 = vshrl.u32 %v1502, 7
    %v1504 = vsub.s32 0, %v1503
    %v1505 = vrot.slane %v1476, %v1504
    %v1507 = vmul.f32 %v1499, %v1505
    %v1508 = vmul.f32 %v1500, %v1505
    %v1510 = vlaneseq
    %v1511 = vshrl.u32 %v1510, 7
    %v1512 = vsub.s32 0, %v1511
    %v1513 = vrot.slane %v1477, %v1512
    %v1515 = vadd.f32 %v1507, %v1513
    %v1516 = vadd.f32 %v1508, %v1513
    %v1517 = vpack.c.bf16 %v1516, %v1515
    %v1518 = vld [vmem:[#allocation11] sm:$0xff]
    %v1519 = vld [vmem:[#allocation11 + $0x8] sm:$0xff]
    %v1520 = vld [vmem:[#allocation11 + $0x10] sm:$0xff]
    %v1521 = vld [vmem:[#allocation11 + $0x18] sm:$0xff]
    %v1522 = vld [vmem:[#allocation11 + $0x20] sm:$0xff]
    %v1523 = vld [vmem:[#allocation11 + $0x28] sm:$0xff]
    %v1524 = vld [vmem:[#allocation11 + $0x30] sm:$0xff]
    %v1525 = vld [vmem:[#allocation11 + $0x38] sm:$0xff]
    %v1526 = vld [vmem:[#allocation11 + $0x40] sm:$0xff]
    %v1527 = vld [vmem:[#allocation11 + $0x48] sm:$0xff]
    %v1528 = vld [vmem:[#allocation11 + $0x50] sm:$0xff]
    %v1529 = vld [vmem:[#allocation11 + $0x58] sm:$0xff]
    %v1530 = vld [vmem:[#allocation11 + $0x60] sm:$0xff]
    %v1531 = vld [vmem:[#allocation11 + $0x68] sm:$0xff]
    %v1532 = vld [vmem:[#allocation11 + $0x70] sm:$0xff]
    %v1533 = vld [vmem:[#allocation11 + $0x78] sm:$0xff]
    %v1534 = vld [vmem:[%s9] sm:$0x3]
    %v1536 = vlaneseq
    %v1537 = vshrl.u32 %v1536, 7
    %v1538 = vsub.s32 0, %v1537
    %v1539 = vrot.slane %v1534, %v1538
    %v1540 = vlaneseq
    %v1541 = vshrl.u32 %v1540, 7
    %v1542 = vsub.s32 1, %v1541
    %v1543 = vrot.slane %v1534, %v1542
    %v1562 = vunpack.c.l.b16 %v1518
    %v1563 = vunpack.c.h.b16 %v1518
    %v1564 = vunpack.c.l.b16 %v1519
    %v1565 = vunpack.c.h.b16 %v1519
    %v1566 = vunpack.c.l.b16 %v1520
    %v1567 = vunpack.c.h.b16 %v1520
    %v1568 = vunpack.c.l.b16 %v1521
    %v1569 = vunpack.c.h.b16 %v1521
    %v1570 = vunpack.c.l.b16 %v1522
    %v1571 = vunpack.c.h.b16 %v1522
    %v1572 = vunpack.c.l.b16 %v1523
    %v1573 = vunpack.c.h.b16 %v1523
    %v1574 = vunpack.c.l.b16 %v1524
    %v1575 = vunpack.c.h.b16 %v1524
    %v1576 = vunpack.c.l.b16 %v1525
    %v1577 = vunpack.c.h.b16 %v1525
    %v1578 = vunpack.c.l.b16 %v1526
    %v1579 = vunpack.c.h.b16 %v1526
    %v1580 = vunpack.c.l.b16 %v1527
    %v1581 = vunpack.c.h.b16 %v1527
    %v1582 = vunpack.c.l.b16 %v1528
    %v1583 = vunpack.c.h.b16 %v1528
    %v1584 = vunpack.c.l.b16 %v1529
    %v1585 = vunpack.c.h.b16 %v1529
    %v1586 = vunpack.c.l.b16 %v1530
    %v1587 = vunpack.c.h.b16 %v1530
    %v1588 = vunpack.c.l.b16 %v1531
    %v1589 = vunpack.c.h.b16 %v1531
    %v1590 = vunpack.c.l.b16 %v1532
    %v1591 = vunpack.c.h.b16 %v1532
    %v1592 = vunpack.c.l.b16 %v1533
    %v1593 = vunpack.c.h.b16 %v1533
    %v1594 = vpack.c.b16 %v1564, %v1562
    %v1595 = vpack.c.b16 %v1565, %v1563
    %v1596 = vpack.c.b16 %v1568, %v1566
    %v1597 = vpack.c.b16 %v1569, %v1567
    %v1598 = vpack.c.b16 %v1572, %v1570
    %v1599 = vpack.c.b16 %v1573, %v1571
    %v1600 = vpack.c.b16 %v1576, %v1574
    %v1601 = vpack.c.b16 %v1577, %v1575
    %v1602 = vpack.c.b16 %v1580, %v1578
    %v1603 = vpack.c.b16 %v1581, %v1579
    %v1604 = vpack.c.b16 %v1584, %v1582
    %v1605 = vpack.c.b16 %v1585, %v1583
    %v1606 = vpack.c.b16 %v1588, %v1586
    %v1607 = vpack.c.b16 %v1589, %v1587
    %v1608 = vpack.c.b16 %v1592, %v1590
    %v1609 = vpack.c.b16 %v1593, %v1591
    %1626 = vmatprep.subr.bf16.mxu0 %v1609
    %1627 = vmatpush1.bf16.msra.mxu0 %v1608
    %1628 = vmatprep.subr.bf16.mxu0 %v1607
    %1629 = vmatpush1.bf16.msra.mxu0 %v1606
    %1630 = vmatprep.subr.bf16.mxu0 %v1605
    %1631 = vmatpush1.bf16.msra.mxu0 %v1604
    %1632 = vmatprep.subr.bf16.mxu0 %v1603
    %1633 = vmatpush1.bf16.msra.mxu0 %v1602
    %1634 = vmatprep.subr.bf16.mxu0 %v1601
    %1635 = vmatpush1.bf16.msra.mxu0 %v1600
    %1636 = vmatprep.subr.bf16.mxu0 %v1599
    %1637 = vmatpush1.bf16.msra.mxu0 %v1598
    %1638 = vmatprep.subr.bf16.mxu0 %v1597
    %1639 = vmatpush1.bf16.msra.mxu0 %v1596
    %1640 = vmatprep.subr.bf16.mxu0 %v1595
    %1641 = vmatpush1.bf16.msra.mxu0 %v1594
    %1642 = vmatprep.subr.bf16.mxu0 0
    %1643 = vmatpush2.bf16.msra.mxu0 0
    %1644 = vmatprep.subr.bf16.mxu0 0
    %1645 = vmatpush2.bf16.msra.mxu0 0
    %1646 = vmatprep.subr.bf16.mxu0 0
    %1647 = vmatpush2.bf16.msra.mxu0 0
    %1648 = vmatprep.subr.bf16.mxu0 0
    %1649 = vmatpush2.bf16.msra.mxu0 0
    %1650 = vmatprep.subr.bf16.mxu0 0
    %1651 = vmatpush2.bf16.msra.mxu0 0
    %1652 = vmatprep.subr.bf16.mxu0 0
    %1653 = vmatpush2.bf16.msra.mxu0 0
    %1654 = vmatprep.subr.bf16.mxu0 0
    %1655 = vmatpush2.bf16.msra.mxu0 0
    %1656 = vmatprep.subr.bf16.mxu0 0
    %1657 = vmatpush2.bf16.msra.mxu0 0
    %1658 = vmatprep.mubr.bf16.mxu0 0
    %1659 = vmatmul.mubr.bf16.gmra.mxu0 %v1517
    %v1660 = vpop.f32.mrf.mxu0
    %v1661 = vadd.f32 %v1539, %v1660
    %v1662 = vpop.f32.mrf.mxu0
    %v1663 = vadd.f32 %v1543, %v1662
    %v1664 = vpop.f32.mrf.mxu0
    %v1665 = vadd.f32 %v1539, %v1664
    %v1666 = vpop.f32.mrf.mxu0
    %v1667 = vadd.f32 %v1543, %v1666
    %1668 = vdwg.mxu0
    %v1669 = vmax.f32 %v1661, 0.0
    %v1670 = vmax.f32 %v1663, 0.0
    %v1671 = vmax.f32 %v1665, 0.0
    %v1672 = vmax.f32 %v1667, 0.0
    %v1673 = vpack.c.bf16 %v1671, %v1669
    %v1674 = vpack.c.bf16 %v1672, %v1670
    %v1675 = vld [vmem:[#allocation13] sm:$0xf]
    %v1676 = vld [vmem:[#allocation13 + $0x4] sm:$0xf]
    %v1677 = vld [vmem:[#allocation13 + $0x8] sm:$0xf]
    %v1678 = vld [vmem:[#allocation13 + $0xc] sm:$0xf]
    %v1679 = vld [vmem:[#allocation13 + $0x10] sm:$0xf]
    %v1680 = vld [vmem:[#allocation13 + $0x14] sm:$0xf]
    %v1681 = vld [vmem:[#allocation13 + $0x18] sm:$0xf]
    %v1682 = vld [vmem:[#allocation13 + $0x1c] sm:$0xf]
    %v1683 = vld [vmem:[#allocation13 + $0x20] sm:$0xf]
    %v1684 = vld [vmem:[#allocation13 + $0x24] sm:$0xf]
    %v1685 = vld [vmem:[#allocation13 + $0x28] sm:$0xf]
    %v1686 = vld [vmem:[#allocation13 + $0x2c] sm:$0xf]
    %v1687 = vld [vmem:[#allocation13 + $0x30] sm:$0xf]
    %v1688 = vld [vmem:[#allocation13 + $0x34] sm:$0xf]
    %v1689 = vld [vmem:[#allocation13 + $0x38] sm:$0xf]
    %v1690 = vld [vmem:[#allocation13 + $0x3c] sm:$0xf]
    %v1691 = vld [vmem:[#allocation13 + $0x40] sm:$0xf]
    %v1692 = vld [vmem:[#allocation13 + $0x44] sm:$0xf]
    %v1693 = vld [vmem:[#allocation13 + $0x48] sm:$0xf]
    %v1694 = vld [vmem:[#allocation13 + $0x4c] sm:$0xf]
    %v1695 = vld [vmem:[#allocation13 + $0x50] sm:$0xf]
    %v1696 = vld [vmem:[#allocation13 + $0x54] sm:$0xf]
    %v1697 = vld [vmem:[#allocation13 + $0x58] sm:$0xf]
    %v1698 = vld [vmem:[#allocation13 + $0x5c] sm:$0xf]
    %v1699 = vld [vmem:[#allocation13 + $0x60] sm:$0xf]
    %v1700 = vld [vmem:[#allocation13 + $0x64] sm:$0xf]
    %v1701 = vld [vmem:[#allocation13 + $0x68] sm:$0xf]
    %v1702 = vld [vmem:[#allocation13 + $0x6c] sm:$0xf]
    %v1703 = vld [vmem:[#allocation13 + $0x70] sm:$0xf]
    %v1704 = vld [vmem:[#allocation13 + $0x74] sm:$0xf]
    %v1705 = vld [vmem:[#allocation13 + $0x78] sm:$0xf]
    %v1706 = vld [vmem:[#allocation13 + $0x7c] sm:$0xf]
    %v1707 = vld [vmem:[%s11] sm:$0x1]
    %v1709 = vlaneseq
    %v1710 = vshrl.u32 %v1709, 7
    %v1711 = vsub.s32 0, %v1710
    %v1712 = vrot.slane %v1707, %v1711
    %v1746 = vunpack.c.l.b16 %v1675
    %v1747 = vunpack.c.l.b16 %v1676
    %v1748 = vunpack.c.l.b16 %v1677
    %v1749 = vunpack.c.l.b16 %v1678
    %v1750 = vunpack.c.l.b16 %v1679
    %v1751 = vunpack.c.l.b16 %v1680
    %v1752 = vunpack.c.l.b16 %v1681
    %v1753 = vunpack.c.l.b16 %v1682
    %v1754 = vunpack.c.l.b16 %v1683
    %v1755 = vunpack.c.l.b16 %v1684
    %v1756 = vunpack.c.l.b16 %v1685
    %v1757 = vunpack.c.l.b16 %v1686
    %v1758 = vunpack.c.l.b16 %v1687
    %v1759 = vunpack.c.l.b16 %v1688
    %v1760 = vunpack.c.l.b16 %v1689
    %v1761 = vunpack.c.l.b16 %v1690
    %v1762 = vunpack.c.l.b16 %v1691
    %v1763 = vunpack.c.l.b16 %v1692
    %v1764 = vunpack.c.l.b16 %v1693
    %v1765 = vunpack.c.l.b16 %v1694
    %v1766 = vunpack.c.l.b16 %v1695
    %v1767 = vunpack.c.l.b16 %v1696
    %v1768 = vunpack.c.l.b16 %v1697
    %v1769 = vunpack.c.l.b16 %v1698
    %v1770 = vunpack.c.l.b16 %v1699
    %v1771 = vunpack.c.l.b16 %v1700
    %v1772 = vunpack.c.l.b16 %v1701
    %v1773 = vunpack.c.l.b16 %v1702
    %v1774 = vunpack.c.l.b16 %v1703
    %v1775 = vunpack.c.l.b16 %v1704
    %v1776 = vunpack.c.l.b16 %v1705
    %v1777 = vunpack.c.l.b16 %v1706
    %v1778 = vpack.c.b16 %v1747, %v1746
    %v1779 = vpack.c.b16 %v1749, %v1748
    %v1780 = vpack.c.b16 %v1751, %v1750
    %v1781 = vpack.c.b16 %v1753, %v1752
    %v1782 = vpack.c.b16 %v1755, %v1754
    %v1783 = vpack.c.b16 %v1757, %v1756
    %v1784 = vpack.c.b16 %v1759, %v1758
    %v1785 = vpack.c.b16 %v1761, %v1760
    %v1786 = vpack.c.b16 %v1763, %v1762
    %v1787 = vpack.c.b16 %v1765, %v1764
    %v1788 = vpack.c.b16 %v1767, %v1766
    %v1789 = vpack.c.b16 %v1769, %v1768
    %v1790 = vpack.c.b16 %v1771, %v1770
    %v1791 = vpack.c.b16 %v1773, %v1772
    %v1792 = vpack.c.b16 %v1775, %v1774
    %v1793 = vpack.c.b16 %v1777, %v1776
    %1810 = vmatprep.subr.bf16.mxu0 0
    %1811 = vmatpush1.bf16.msra.mxu0 %v1785
    %1812 = vmatprep.subr.bf16.mxu0 0
    %1813 = vmatpush1.bf16.msra.mxu0 %v1784
    %1814 = vmatprep.subr.bf16.mxu0 0
    %1815 = vmatpush1.bf16.msra.mxu0 %v1783
    %1816 = vmatprep.subr.bf16.mxu0 0
    %1817 = vmatpush1.bf16.msra.mxu0 %v1782
    %1818 = vmatprep.subr.bf16.mxu0 0
    %1819 = vmatpush1.bf16.msra.mxu0 %v1781
    %1820 = vmatprep.subr.bf16.mxu0 0
    %1821 = vmatpush1.bf16.msra.mxu0 %v1780
    %1822 = vmatprep.subr.bf16.mxu0 0
    %1823 = vmatpush1.bf16.msra.mxu0 %v1779
    %1824 = vmatprep.subr.bf16.mxu0 0
    %1825 = vmatpush1.bf16.msra.mxu0 %v1778
    %1826 = vmatprep.subr.bf16.mxu0 0
    %1827 = vmatpush2.bf16.msra.mxu0 %v1793
    %1828 = vmatprep.subr.bf16.mxu0 0
    %1829 = vmatpush2.bf16.msra.mxu0 %v1792
    %1830 = vmatprep.subr.bf16.mxu0 0
    %1831 = vmatpush2.bf16.msra.mxu0 %v1791
    %1832 = vmatprep.subr.bf16.mxu0 0
    %1833 = vmatpush2.bf16.msra.mxu0 %v1790
    %1834 = vmatprep.subr.bf16.mxu0 0
    %1835 = vmatpush2.bf16.msra.mxu0 %v1789
    %1836 = vmatprep.subr.bf16.mxu0 0
    %1837 = vmatpush2.bf16.msra.mxu0 %v1788
    %1838 = vmatprep.subr.bf16.mxu0 0
    %1839 = vmatpush2.bf16.msra.mxu0 %v1787
    %1840 = vmatprep.subr.bf16.mxu0 0
    %1841 = vmatpush2.bf16.msra.mxu0 %v1786
    %1842 = vmatprep.mubr.bf16.mxu0 %v1674
    %1843 = vmatmul.mubr.bf16.gmra.mxu0 %v1673
    %v1844 = vpop.f32.mrf.mxu0
    %v1845 = vadd.f32 %v1712, %v1844
    %v1846 = vpop.f32.mrf.mxu0
    %v1847 = vpop.f32.mrf.mxu0
    %v1848 = vadd.f32 %v1712, %v1847
    %v1849 = vpop.f32.mrf.mxu0
    %1850 = vdwg.mxu0
    %v1851 = vadd.f32 %v1515, %v1845
    %v1852 = vadd.f32 %v1516, %v1848
    %v1853 = vld [vmem:[%s12] sm:$0x1]
    %v1854 = vld [vmem:[%s13] sm:$0x1]
    %1855 = vadd.xlane.f32.xlu0 %v1851
    %v1856 = vpop.xlane.xlu0 %1855
    %1857 = vadd.xlane.f32.xlu0 %v1852
    %v1858 = vpop.xlane.xlu0 %1857
    %v1859 = vmul.f32 %v1856, %v1482
    %v1860 = vmul.f32 %v1858, %v1482
    %v1861 = vsub.f32 %v1851, %v1859
    %v1862 = vsub.f32 %v1852, %v1860
    %v1863 = vmul.f32 %v1861, %v1861
    %v1864 = vmul.f32 %v1862, %v1862
    %1865 = vadd.xlane.f32.xlu0 %v1863
    %v1866 = vpop.xlane.xlu0 %1865
    %1867 = vadd.xlane.f32.xlu0 %v1864
    %v1868 = vpop.xlane.xlu0 %1867
    %v1869 = vmul.f32 %v1866, %v1482
    %v1870 = vmul.f32 %v1868, %v1482
    %v1871 = vadd.f32 %v1869, 1e-05
    %v1872 = vadd.f32 %v1870, 1e-05
    %v1873 = vrsqrt.pop %v1871
    %v1874 = vrsqrt.pop %v1872
    %v1875 = vmul.f32 %v1861, %v1873
    %v1876 = vmul.f32 %v1862, %v1874
    %v1878 = vlaneseq
    %v1879 = vshrl.u32 %v1878, 7
    %v1880 = vsub.s32 0, %v1879
    %v1881 = vrot.slane %v1853, %v1880
    %v1883 = vmul.f32 %v1875, %v1881
    %v1884 = vmul.f32 %v1876, %v1881
    %v1886 = vlaneseq
    %v1887 = vshrl.u32 %v1886, 7
    %v1888 = vsub.s32 0, %v1887
    %v1889 = vrot.slane %v1854, %v1888
    %v1891 = vadd.f32 %v1883, %v1889
    %v1892 = vadd.f32 %v1884, %v1889
    %v1893 = vpack.c.bf16 %v1892, %v1891
    %s1894 = scalar_lea.vmem [#allocation7], 192
    %v1895 = vld [vmem:[%s1894] sm:$0xff]
    %v1896 = vld [vmem:[%s1894 + $0x8] sm:$0xf]
    %v1897 = vld [vmem:[%s1894 + $0xc] sm:$0xff]
    %v1898 = vld [vmem:[%s1894 + $0x14] sm:$0xf]
    %v1899 = vld [vmem:[%s1894 + $0x18] sm:$0xff]
    %v1900 = vld [vmem:[%s1894 + $0x20] sm:$0xf]
    %v1901 = vld [vmem:[%s1894 + $0x24] sm:$0xff]
    %v1902 = vld [vmem:[%s1894 + $0x2c] sm:$0xf]
    %v1903 = vld [vmem:[%s1894 + $0x30] sm:$0xff]
    %v1904 = vld [vmem:[%s1894 + $0x38] sm:$0xf]
    %v1905 = vld [vmem:[%s1894 + $0x3c] sm:$0xff]
    %v1906 = vld [vmem:[%s1894 + $0x44] sm:$0xf]
    %v1907 = vld [vmem:[%s1894 + $0x48] sm:$0xff]
    %v1908 = vld [vmem:[%s1894 + $0x50] sm:$0xf]
    %v1909 = vld [vmem:[%s1894 + $0x54] sm:$0xff]
    %v1910 = vld [vmem:[%s1894 + $0x5c] sm:$0xf]
    %v1911 = vld [vmem:[%s1894 + $0x60] sm:$0xff]
    %v1912 = vld [vmem:[%s1894 + $0x68] sm:$0xf]
    %v1913 = vld [vmem:[%s1894 + $0x6c] sm:$0xff]
    %v1914 = vld [vmem:[%s1894 + $0x74] sm:$0xf]
    %v1915 = vld [vmem:[%s1894 + $0x78] sm:$0xff]
    %v1916 = vld [vmem:[%s1894 + $0x80] sm:$0xf]
    %v1917 = vld [vmem:[%s1894 + $0x84] sm:$0xff]
    %v1918 = vld [vmem:[%s1894 + $0x8c] sm:$0xf]
    %v1919 = vld [vmem:[%s1894 + $0x90] sm:$0xff]
    %v1920 = vld [vmem:[%s1894 + $0x98] sm:$0xf]
    %v1921 = vld [vmem:[%s1894 + $0x9c] sm:$0xff]
    %v1922 = vld [vmem:[%s1894 + $0xa4] sm:$0xf]
    %v1923 = vld [vmem:[%s1894 + $0xa8] sm:$0xff]
    %v1924 = vld [vmem:[%s1894 + $0xb0] sm:$0xf]
    %v1925 = vld [vmem:[%s1894 + $0xb4] sm:$0xff]
    %v1926 = vld [vmem:[%s1894 + $0xbc] sm:$0xf]
    %s1927 = scalar_lea.vmem [#allocation8], 3
    %v1928 = vld [vmem:[%s1927] sm:$0x7]
    %v1930 = vlaneseq
    %v1931 = vshrl.u32 %v1930, 7
    %v1932 = vsub.s32 0, %v1931
    %v1933 = vrot.slane %v1928, %v1932
    %v1934 = vlaneseq
    %v1935 = vshrl.u32 %v1934, 7
    %v1936 = vsub.s32 1, %v1935
    %v1937 = vrot.slane %v1928, %v1936
    %v1938 = vlaneseq
    %v1939 = vshrl.u32 %v1938, 7
    %v1940 = vsub.s32 2, %v1939
    %v1941 = vrot.slane %v1928, %v1940
    %v1977 = vunpack.c.l.b16 %v1895
    %v1978 = vunpack.c.h.b16 %v1895
    %v1979 = vunpack.c.l.b16 %v1896
    %v1980 = vunpack.c.l.b16 %v1897
    %v1981 = vunpack.c.h.b16 %v1897
    %v1982 = vunpack.c.l.b16 %v1898
    %v1983 = vunpack.c.l.b16 %v1899
    %v1984 = vunpack.c.h.b16 %v1899
    %v1985 = vunpack.c.l.b16 %v1900
    %v1986 = vunpack.c.l.b16 %v1901
    %v1987 = vunpack.c.h.b16 %v1901
    %v1988 = vunpack.c.l.b16 %v1902
    %v1989 = vunpack.c.l.b16 %v1903
    %v1990 = vunpack.c.h.b16 %v1903
    %v1991 = vunpack.c.l.b16 %v1904
    %v1992 = vunpack.c.l.b16 %v1905
    %v1993 = vunpack.c.h.b16 %v1905
    %v1994 = vunpack.c.l.b16 %v1906
    %v1995 = vunpack.c.l.b16 %v1907
    %v1996 = vunpack.c.h.b16 %v1907
    %v1997 = vunpack.c.l.b16 %v1908
    %v1998 = vunpack.c.l.b16 %v1909
    %v1999 = vunpack.c.h.b16 %v1909
    %v2000 = vunpack.c.l.b16 %v1910
    %v2001 = vunpack.c.l.b16 %v1911
    %v2002 = vunpack.c.h.b16 %v1911
    %v2003 = vunpack.c.l.b16 %v1912
    %v2004 = vunpack.c.l.b16 %v1913
    %v2005 = vunpack.c.h.b16 %v1913
    %v2006 = vunpack.c.l.b16 %v1914
    %v2007 = vunpack.c.l.b16 %v1915
    %v2008 = vunpack.c.h.b16 %v1915
    %v2009 = vunpack.c.l.b16 %v1916
    %v2010 = vunpack.c.l.b16 %v1917
    %v2011 = vunpack.c.h.b16 %v1917
    %v2012 = vunpack.c.l.b16 %v1918
    %v2013 = vunpack.c.l.b16 %v1919
    %v2014 = vunpack.c.h.b16 %v1919
    %v2015 = vunpack.c.l.b16 %v1920
    %v2016 = vunpack.c.l.b16 %v1921
    %v2017 = vunpack.c.h.b16 %v1921
    %v2018 = vunpack.c.l.b16 %v1922
    %v2019 = vunpack.c.l.b16 %v1923
    %v2020 = vunpack.c.h.b16 %v1923
    %v2021 = vunpack.c.l.b16 %v1924
    %v2022 = vunpack.c.l.b16 %v1925
    %v2023 = vunpack.c.h.b16 %v1925
    %v2024 = vunpack.c.l.b16 %v1926
    %v2025 = vpack.c.b16 %v1980, %v1977
    %v2026 = vpack.c.b16 %v1981, %v1978
    %v2027 = vpack.c.b16 %v1982, %v1979
    %v2028 = vpack.c.b16 %v1986, %v1983
    %v2029 = vpack.c.b16 %v1987, %v1984
    %v2030 = vpack.c.b16 %v1988, %v1985
    %v2031 = vpack.c.b16 %v1992, %v1989
    %v2032 = vpack.c.b16 %v1993, %v1990
    %v2033 = vpack.c.b16 %v1994, %v1991
    %v2034 = vpack.c.b16 %v1998, %v1995
    %v2035 = vpack.c.b16 %v1999, %v1996
    %v2036 = vpack.c.b16 %v2000, %v1997
    %v2037 = vpack.c.b16 %v2004, %v2001
    %v2038 = vpack.c.b16 %v2005, %v2002
    %v2039 = vpack.c.b16 %v2006, %v2003
    %v2040 = vpack.c.b16 %v2010, %v2007
    %v2041 = vpack.c.b16 %v2011, %v2008
    %v2042 = vpack.c.b16 %v2012, %v2009
    %v2043 = vpack.c.b16 %v2016, %v2013
    %v2044 = vpack.c.b16 %v2017, %v2014
    %v2045 = vpack.c.b16 %v2018, %v2015
    %v2046 = vpack.c.b16 %v2022, %v2019
    %v2047 = vpack.c.b16 %v2023, %v2020
    %v2048 = vpack.c.b16 %v2024, %v2021
    %2073 = vmatprep.subr.bf16.mxu0 %v2047
    %2074 = vmatpush1.bf16.msra.mxu0 %v2046
    %2075 = vmatprep.subr.bf16.mxu0 %v2044
    %2076 = vmatpush1.bf16.msra.mxu0 %v2043
    %2077 = vmatprep.subr.bf16.mxu0 %v2041
    %2078 = vmatpush1.bf16.msra.mxu0 %v2040
    %2079 = vmatprep.subr.bf16.mxu0 %v2038
    %2080 = vmatpush1.bf16.msra.mxu0 %v2037
    %2081 = vmatprep.subr.bf16.mxu0 %v2035
    %2082 = vmatpush1.bf16.msra.mxu0 %v2034
    %2083 = vmatprep.subr.bf16.mxu0 %v2032
    %2084 = vmatpush1.bf16.msra.mxu0 %v2031
    %2085 = vmatprep.subr.bf16.mxu0 %v2029
    %2086 = vmatpush1.bf16.msra.mxu0 %v2028
    %2087 = vmatprep.subr.bf16.mxu0 %v2026
    %2088 = vmatpush1.bf16.msra.mxu0 %v2025
    %2089 = vmatprep.subr.bf16.mxu0 0
    %2090 = vmatpush2.bf16.msra.mxu0 0
    %2091 = vmatprep.subr.bf16.mxu0 0
    %2092 = vmatpush2.bf16.msra.mxu0 0
    %2093 = vmatprep.subr.bf16.mxu0 0
    %2094 = vmatpush2.bf16.msra.mxu0 0
    %2095 = vmatprep.subr.bf16.mxu0 0
    %2096 = vmatpush2.bf16.msra.mxu0 0
    %2097 = vmatprep.subr.bf16.mxu0 0
    %2098 = vmatpush2.bf16.msra.mxu0 0
    %2099 = vmatprep.subr.bf16.mxu0 0
    %2100 = vmatpush2.bf16.msra.mxu0 0
    %2101 = vmatprep.subr.bf16.mxu0 0
    %2102 = vmatpush2.bf16.msra.mxu0 0
    %2103 = vmatprep.subr.bf16.mxu0 0
    %2104 = vmatpush2.bf16.msra.mxu0 0
    %2105 = vmatprep.mubr.bf16.mxu0 0
    %2106 = vmatmul.mubr.bf16.gmra.mxu0 %v1893
    %v2107 = vpop.f32.mrf.mxu0
    %v2108 = vadd.f32 %v1933, %v2107
    %v2109 = vpop.f32.mrf.mxu0
    %v2110 = vadd.f32 %v1937, %v2109
    %v2111 = vpop.f32.mrf.mxu0
    %v2112 = vadd.f32 %v1933, %v2111
    %v2113 = vpop.f32.mrf.mxu0
    %v2114 = vadd.f32 %v1937, %v2113
    %2115 = vdwg.mxu0
    %2116 = vmatprep.subr.bf16.mxu0 0
    %2117 = vmatpush1.bf16.msra.mxu0 %v2048
    %2118 = vmatprep.subr.bf16.mxu0 0
    %2119 = vmatpush1.bf16.msra.mxu0 %v2045
    %2120 = vmatprep.subr.bf16.mxu0 0
    %2121 = vmatpush1.bf16.msra.mxu0 %v2042
    %2122 = vmatprep.subr.bf16.mxu0 0
    %2123 = vmatpush1.bf16.msra.mxu0 %v2039
    %2124 = vmatprep.subr.bf16.mxu0 0
    %2125 = vmatpush1.bf16.msra.mxu0 %v2036
    %2126 = vmatprep.subr.bf16.mxu0 0
    %2127 = vmatpush1.bf16.msra.mxu0 %v2033
    %2128 = vmatprep.subr.bf16.mxu0 0
    %2129 = vmatpush1.bf16.msra.mxu0 %v2030
    %2130 = vmatprep.subr.bf16.mxu0 0
    %2131 = vmatpush1.bf16.msra.mxu0 %v2027
    %2132 = vmatprep.subr.bf16.mxu0 0
    %2133 = vmatpush2.bf16.msra.mxu0 0
    %2134 = vmatprep.subr.bf16.mxu0 0
    %2135 = vmatpush2.bf16.msra.mxu0 0
    %2136 = vmatprep.subr.bf16.mxu0 0
    %2137 = vmatpush2.bf16.msra.mxu0 0
    %2138 = vmatprep.subr.bf16.mxu0 0
    %2139 = vmatpush2.bf16.msra.mxu0 0
    %2140 = vmatprep.subr.bf16.mxu0 0
    %2141 = vmatpush2.bf16.msra.mxu0 0
    %2142 = vmatprep.subr.bf16.mxu0 0
    %2143 = vmatpush2.bf16.msra.mxu0 0
    %2144 = vmatprep.subr.bf16.mxu0 0
    %2145 = vmatpush2.bf16.msra.mxu0 0
    %2146 = vmatprep.subr.bf16.mxu0 0
    %2147 = vmatpush2.bf16.msra.mxu0 0
    %2148 = vmatprep.mubr.bf16.mxu0 0
    %2149 = vmatmul.mubr.bf16.gmra.mxu0 %v1893
    %v2150 = vpop.f32.mrf.mxu0
    %v2151 = vadd.f32 %v1941, %v2150
    %v2152 = vpop.f32.mrf.mxu0
    %v2153 = vpop.f32.mrf.mxu0
    %v2154 = vadd.f32 %v1941, %v2153
    %v2155 = vpop.f32.mrf.mxu0
    %2156 = vdwg.mxu0
    %v2157 = vpack.c.bf16 %v2108, %v2108
    %v2158 = vpack.c.bf16 %v2110, %v2110
    %v2159 = vpack.c.bf16 %v2151, %v2151
    %v2161 = vsel %vm443, %v2157, 0
    %v2164 = vsel %vm443, %v2158, 0
    %2166 = vmatprep.subr.bf16.mxu0 0
    %2167 = vmatpush1.bf16.xpose.msra.mxu0 0
    %2168 = vmatprep.subr.bf16.mxu0 0
    %2169 = vmatpush1.bf16.xpose.msra.mxu0 0
    %2170 = vmatprep.subr.bf16.mxu0 0
    %2171 = vmatpush1.bf16.xpose.msra.mxu0 0
    %2172 = vmatprep.subr.bf16.mxu0 0
    %2173 = vmatpush1.bf16.xpose.msra.mxu0 0
    %2174 = vmatprep.subr.bf16.mxu0 0
    %2175 = vmatpush1.bf16.xpose.msra.mxu0 0
    %2176 = vmatprep.subr.bf16.mxu0 0
    %2177 = vmatpush1.bf16.xpose.msra.mxu0 0
    %2178 = vmatprep.subr.bf16.mxu0 0
    %2179 = vmatpush1.bf16.xpose.msra.mxu0 0
    %2180 = vmatprep.subr.bf16.mxu0 0
    %2181 = vmatpush1.bf16.xpose.msra.mxu0 %v2164
    %2182 = vmatprep.subr.bf16.mxu0 0
    %2183 = vmatpush2.bf16.xpose.msra.mxu0 0
    %2184 = vmatprep.subr.bf16.mxu0 0
    %2185 = vmatpush2.bf16.xpose.msra.mxu0 0
    %2186 = vmatprep.subr.bf16.mxu0 0
    %2187 = vmatpush2.bf16.xpose.msra.mxu0 0
    %2188 = vmatprep.subr.bf16.mxu0 0
    %2189 = vmatpush2.bf16.xpose.msra.mxu0 0
    %2190 = vmatprep.subr.bf16.mxu0 0
    %2191 = vmatpush2.bf16.xpose.msra.mxu0 0
    %2192 = vmatprep.subr.bf16.mxu0 0
    %2193 = vmatpush2.bf16.xpose.msra.mxu0 0
    %2194 = vmatprep.subr.bf16.mxu0 0
    %2195 = vmatpush2.bf16.xpose.msra.mxu0 0
    %2196 = vmatprep.subr.bf16.mxu0 0
    %2197 = vmatpush2.bf16.xpose.msra.mxu0 0
    %2198 = vmatprep.mubr.bf16.mxu0 0
    %2199 = vmatmul.mubr.bf16.gmra.mxu0 %v2161
    %v2200 = vpop.f32.mrf.mxu0
    %v2201 = vadd.f32 %v441, %v2200
    %v2202 = vpop.f32.mrf.mxu0
    %v2203 = vpop.f32.mrf.mxu0
    %v2204 = vpop.f32.mrf.mxu0
    %2205 = vdwg.mxu0
    %v2206 = vsel %vm490, %v2201, -inf
    %2207 = vmax.xlane.f32.xlu0 %v2206
    %v2208 = vpop.xlane.xlu0 %2207
    %v2209 = vsub.f32 %v2201, %v2208
    %v2210 = vmul.f32 %v2209, 1.442695
    %v2211 = vpow.pop %v2210
    %v2212 = vsel %vm490, %v2211, 0.0
    %2213 = vadd.xlane.f32.xlu0 %v2212
    %v2214 = vpop.xlane.xlu0 %2213
    %v2215 = vrcp.pop %v2214
    %v2216 = vmul.f32 %v2211, %v2215
    %v2217 = vpack.c.bf16 %v2216, %v2216
    %v2219 = vsel %vm490, %v2217, 0
    %v2222 = vsel %vm506, %v2159, 0
    %2224 = vmatprep.subr.bf16.mxu0 0
    %2225 = vmatpush1.bf16.msra.mxu0 0
    %2226 = vmatprep.subr.bf16.mxu0 0
    %2227 = vmatpush1.bf16.msra.mxu0 0
    %2228 = vmatprep.subr.bf16.mxu0 0
    %2229 = vmatpush1.bf16.msra.mxu0 0
    %2230 = vmatprep.subr.bf16.mxu0 0
    %2231 = vmatpush1.bf16.msra.mxu0 0
    %2232 = vmatprep.subr.bf16.mxu0 0
    %2233 = vmatpush1.bf16.msra.mxu0 0
    %2234 = vmatprep.subr.bf16.mxu0 0
    %2235 = vmatpush1.bf16.msra.mxu0 0
    %2236 = vmatprep.subr.bf16.mxu0 0
    %2237 = vmatpush1.bf16.msra.mxu0 0
    %2238 = vmatprep.subr.bf16.mxu0 0
    %2239 = vmatpush1.bf16.msra.mxu0 %v2222
    %2240 = vmatprep.subr.bf16.mxu0 0
    %2241 = vmatpush2.bf16.msra.mxu0 0
    %2242 = vmatprep.subr.bf16.mxu0 0
    %2243 = vmatpush2.bf16.msra.mxu0 0
    %2244 = vmatprep.subr.bf16.mxu0 0
    %2245 = vmatpush2.bf16.msra.mxu0 0
    %2246 = vmatprep.subr.bf16.mxu0 0
    %2247 = vmatpush2.bf16.msra.mxu0 0
    %2248 = vmatprep.subr.bf16.mxu0 0
    %2249 = vmatpush2.bf16.msra.mxu0 0
    %2250 = vmatprep.subr.bf16.mxu0 0
    %2251 = vmatpush2.bf16.msra.mxu0 0
    %2252 = vmatprep.subr.bf16.mxu0 0
    %2253 = vmatpush2.bf16.msra.mxu0 0
    %2254 = vmatprep.subr.bf16.mxu0 0
    %2255 = vmatpush2.bf16.msra.mxu0 0
    %2256 = vmatprep.mubr.bf16.mxu0 0
    %2257 = vmatmul.mubr.bf16.gmra.mxu0 %v2219
    %v2258 = vpop.f32.mrf.mxu0
    %v2259 = vadd.f32 0.0, %v2258
    %v2260 = vpop.f32.mrf.mxu0
    %v2261 = vpop.f32.mrf.mxu0
    %v2262 = vpop.f32.mrf.mxu0
    %2263 = vdwg.mxu0
    %2265 = vrot.lane.b32.xlu0 %v2157, 96
    %v2266 = vpop.permute.xlu0 %2265
    %2268 = vrot.lane.b32.xlu0 %v2158, 96
    %v2269 = vpop.permute.xlu0 %2268
    %v2271 = vsel %vm443, %v2266, 0
    %v2274 = vsel %vm443, %v2269, 0
    %2276 = vmatprep.subr.bf16.mxu0 0
    %2277 = vmatpush1.bf16.xpose.msra.mxu0 0
    %2278 = vmatprep.subr.bf16.mxu0 0
    %2279 = vmatpush1.bf16.xpose.msra.mxu0 0
    %2280 = vmatprep.subr.bf16.mxu0 0
    %2281 = vmatpush1.bf16.xpose.msra.mxu0 0
    %2282 = vmatprep.subr.bf16.mxu0 0
    %2283 = vmatpush1.bf16.xpose.msra.mxu0 0
    %2284 = vmatprep.subr.bf16.mxu0 0
    %2285 = vmatpush1.bf16.xpose.msra.mxu0 0
    %2286 = vmatprep.subr.bf16.mxu0 0
    %2287 = vmatpush1.bf16.xpose.msra.mxu0 0
    %2288 = vmatprep.subr.bf16.mxu0 0
    %2289 = vmatpush1.bf16.xpose.msra.mxu0 0
    %2290 = vmatprep.subr.bf16.mxu0 0
    %2291 = vmatpush1.bf16.xpose.msra.mxu0 %v2274
    %2292 = vmatprep.subr.bf16.mxu0 0
    %2293 = vmatpush2.bf16.xpose.msra.mxu0 0
    %2294 = vmatprep.subr.bf16.mxu0 0
    %2295 = vmatpush2.bf16.xpose.msra.mxu0 0
    %2296 = vmatprep.subr.bf16.mxu0 0
    %2297 = vmatpush2.bf16.xpose.msra.mxu0 0
    %2298 = vmatprep.subr.bf16.mxu0 0
    %2299 = vmatpush2.bf16.xpose.msra.mxu0 0
    %2300 = vmatprep.subr.bf16.mxu0 0
    %2301 = vmatpush2.bf16.xpose.msra.mxu0 0
    %2302 = vmatprep.subr.bf16.mxu0 0
    %2303 = vmatpush2.bf16.xpose.msra.mxu0 0
    %2304 = vmatprep.subr.bf16.mxu0 0
    %2305 = vmatpush2.bf16.xpose.msra.mxu0 0
    %2306 = vmatprep.subr.bf16.mxu0 0
    %2307 = vmatpush2.bf16.xpose.msra.mxu0 0
    %2308 = vmatprep.mubr.bf16.mxu0 0
    %2309 = vmatmul.mubr.bf16.gmra.mxu0 %v2271
    %v2310 = vpop.f32.mrf.mxu0
    %v2311 = vadd.f32 %v441, %v2310
    %v2312 = vpop.f32.mrf.mxu0
    %v2313 = vpop.f32.mrf.mxu0
    %v2314 = vpop.f32.mrf.mxu0
    %2315 = vdwg.mxu0
    %v2316 = vsel %vm490, %v2311, -inf
    %2317 = vmax.xlane.f32.xlu0 %v2316
    %v2318 = vpop.xlane.xlu0 %2317
    %v2319 = vsub.f32 %v2311, %v2318
    %v2320 = vmul.f32 %v2319, 1.442695
    %v2321 = vpow.pop %v2320
    %v2322 = vsel %vm490, %v2321, 0.0
    %2323 = vadd.xlane.f32.xlu0 %v2322
    %v2324 = vpop.xlane.xlu0 %2323
    %v2325 = vrcp.pop %v2324
    %v2326 = vmul.f32 %v2321, %v2325
    %v2327 = vpack.c.bf16 %v2326, %v2326
    %2329 = vrot.lane.b32.xlu0 %v2159, 96
    %v2330 = vpop.permute.xlu0 %2329
    %v2332 = vsel %vm490, %v2327, 0
    %v2335 = vsel %vm506, %v2330, 0
    %2337 = vmatprep.subr.bf16.mxu0 0
    %2338 = vmatpush1.bf16.msra.mxu0 0
    %2339 = vmatprep.subr.bf16.mxu0 0
    %2340 = vmatpush1.bf16.msra.mxu0 0
    %2341 = vmatprep.subr.bf16.mxu0 0
    %2342 = vmatpush1.bf16.msra.mxu0 0
    %2343 = vmatprep.subr.bf16.mxu0 0
    %2344 = vmatpush1.bf16.msra.mxu0 0
    %2345 = vmatprep.subr.bf16.mxu0 0
    %2346 = vmatpush1.bf16.msra.mxu0 0
    %2347 = vmatprep.subr.bf16.mxu0 0
    %2348 = vmatpush1.bf16.msra.mxu0 0
    %2349 = vmatprep.subr.bf16.mxu0 0
    %2350 = vmatpush1.bf16.msra.mxu0 0
    %2351 = vmatprep.subr.bf16.mxu0 0
    %2352 = vmatpush1.bf16.msra.mxu0 %v2335
    %2353 = vmatprep.subr.bf16.mxu0 0
    %2354 = vmatpush2.bf16.msra.mxu0 0
    %2355 = vmatprep.subr.bf16.mxu0 0
    %2356 = vmatpush2.bf16.msra.mxu0 0
    %2357 = vmatprep.subr.bf16.mxu0 0
    %2358 = vmatpush2.bf16.msra.mxu0 0
    %2359 = vmatprep.subr.bf16.mxu0 0
    %2360 = vmatpush2.bf16.msra.mxu0 0
    %2361 = vmatprep.subr.bf16.mxu0 0
    %2362 = vmatpush2.bf16.msra.mxu0 0
    %2363 = vmatprep.subr.bf16.mxu0 0
    %2364 = vmatpush2.bf16.msra.mxu0 0
    %2365 = vmatprep.subr.bf16.mxu0 0
    %2366 = vmatpush2.bf16.msra.mxu0 0
    %2367 = vmatprep.subr.bf16.mxu0 0
    %2368 = vmatpush2.bf16.msra.mxu0 0
    %2369 = vmatprep.mubr.bf16.mxu0 0
    %2370 = vmatmul.mubr.bf16.gmra.mxu0 %v2332
    %v2371 = vpop.f32.mrf.mxu0
    %v2372 = vadd.f32 0.0, %v2371
    %v2373 = vpop.f32.mrf.mxu0
    %v2374 = vpop.f32.mrf.mxu0
    %v2375 = vpop.f32.mrf.mxu0
    %2376 = vdwg.mxu0
    %2377 = vrot.lane.b32.xlu0 %v2157, 64
    %v2378 = vpop.permute.xlu0 %2377
    %2379 = vrot.lane.b32.xlu0 %v2158, 64
    %v2380 = vpop.permute.xlu0 %2379
    %v2382 = vsel %vm443, %v2378, 0
    %v2385 = vsel %vm443, %v2380, 0
    %2387 = vmatprep.subr.bf16.mxu0 0
    %2388 = vmatpush1.bf16.xpose.msra.mxu0 0
    %2389 = vmatprep.subr.bf16.mxu0 0
    %2390 = vmatpush1.bf16.xpose.msra.mxu0 0
    %2391 = vmatprep.subr.bf16.mxu0 0
    %2392 = vmatpush1.bf16.xpose.msra.mxu0 0
    %2393 = vmatprep.subr.bf16.mxu0 0
    %2394 = vmatpush1.bf16.xpose.msra.mxu0 0
    %2395 = vmatprep.subr.bf16.mxu0 0
    %2396 = vmatpush1.bf16.xpose.msra.mxu0 0
    %2397 = vmatprep.subr.bf16.mxu0 0
    %2398 = vmatpush1.bf16.xpose.msra.mxu0 0
    %2399 = vmatprep.subr.bf16.mxu0 0
    %2400 = vmatpush1.bf16.xpose.msra.mxu0 0
    %2401 = vmatprep.subr.bf16.mxu0 0
    %2402 = vmatpush1.bf16.xpose.msra.mxu0 %v2385
    %2403 = vmatprep.subr.bf16.mxu0 0
    %2404 = vmatpush2.bf16.xpose.msra.mxu0 0
    %2405 = vmatprep.subr.bf16.mxu0 0
    %2406 = vmatpush2.bf16.xpose.msra.mxu0 0
    %2407 = vmatprep.subr.bf16.mxu0 0
    %2408 = vmatpush2.bf16.xpose.msra.mxu0 0
    %2409 = vmatprep.subr.bf16.mxu0 0
    %2410 = vmatpush2.bf16.xpose.msra.mxu0 0
    %2411 = vmatprep.subr.bf16.mxu0 0
    %2412 = vmatpush2.bf16.xpose.msra.mxu0 0
    %2413 = vmatprep.subr.bf16.mxu0 0
    %2414 = vmatpush2.bf16.xpose.msra.mxu0 0
    %2415 = vmatprep.subr.bf16.mxu0 0
    %2416 = vmatpush2.bf16.xpose.msra.mxu0 0
    %2417 = vmatprep.subr.bf16.mxu0 0
    %2418 = vmatpush2.bf16.xpose.msra.mxu0 0
    %2419 = vmatprep.mubr.bf16.mxu0 0
    %2420 = vmatmul.mubr.bf16.gmra.mxu0 %v2382
    %v2421 = vpop.f32.mrf.mxu0
    %v2422 = vadd.f32 %v441, %v2421
    %v2423 = vpop.f32.mrf.mxu0
    %v2424 = vpop.f32.mrf.mxu0
    %v2425 = vpop.f32.mrf.mxu0
    %2426 = vdwg.mxu0
    %v2427 = vsel %vm490, %v2422, -inf
    %2428 = vmax.xlane.f32.xlu0 %v2427
    %v2429 = vpop.xlane.xlu0 %2428
    %v2430 = vsub.f32 %v2422, %v2429
    %v2431 = vmul.f32 %v2430, 1.442695
    %v2432 = vpow.pop %v2431
    %v2433 = vsel %vm490, %v2432, 0.0
    %2434 = vadd.xlane.f32.xlu0 %v2433
    %v2435 = vpop.xlane.xlu0 %2434
    %v2436 = vrcp.pop %v2435
    %v2437 = vmul.f32 %v2432, %v2436
    %v2438 = vpack.c.bf16 %v2437, %v2437
    %2439 = vrot.lane.b32.xlu0 %v2159, 64
    %v2440 = vpop.permute.xlu0 %2439
    %v2442 = vsel %vm490, %v2438, 0
    %v2445 = vsel %vm506, %v2440, 0
    %2447 = vmatprep.subr.bf16.mxu0 0
    %2448 = vmatpush1.bf16.msra.mxu0 0
    %2449 = vmatprep.subr.bf16.mxu0 0
    %2450 = vmatpush1.bf16.msra.mxu0 0
    %2451 = vmatprep.subr.bf16.mxu0 0
    %2452 = vmatpush1.bf16.msra.mxu0 0
    %2453 = vmatprep.subr.bf16.mxu0 0
    %2454 = vmatpush1.bf16.msra.mxu0 0
    %2455 = vmatprep.subr.bf16.mxu0 0
    %2456 = vmatpush1.bf16.msra.mxu0 0
    %2457 = vmatprep.subr.bf16.mxu0 0
    %2458 = vmatpush1.bf16.msra.mxu0 0
    %2459 = vmatprep.subr.bf16.mxu0 0
    %2460 = vmatpush1.bf16.msra.mxu0 0
    %2461 = vmatprep.subr.bf16.mxu0 0
    %2462 = vmatpush1.bf16.msra.mxu0 %v2445
    %2463 = vmatprep.subr.bf16.mxu0 0
    %2464 = vmatpush2.bf16.msra.mxu0 0
    %2465 = vmatprep.subr.bf16.mxu0 0
    %2466 = vmatpush2.bf16.msra.mxu0 0
    %2467 = vmatprep.subr.bf16.mxu0 0
    %2468 = vmatpush2.bf16.msra.mxu0 0
    %2469 = vmatprep.subr.bf16.mxu0 0
    %2470 = vmatpush2.bf16.msra.mxu0 0
    %2471 = vmatprep.subr.bf16.mxu0 0
    %2472 = vmatpush2.bf16.msra.mxu0 0
    %2473 = vmatprep.subr.bf16.mxu0 0
    %2474 = vmatpush2.bf16.msra.mxu0 0
    %2475 = vmatprep.subr.bf16.mxu0 0
    %2476 = vmatpush2.bf16.msra.mxu0 0
    %2477 = vmatprep.subr.bf16.mxu0 0
    %2478 = vmatpush2.bf16.msra.mxu0 0
    %2479 = vmatprep.mubr.bf16.mxu0 0
    %2480 = vmatmul.mubr.bf16.gmra.mxu0 %v2442
    %v2481 = vpop.f32.mrf.mxu0
    %v2482 = vadd.f32 0.0, %v2481
    %v2483 = vpop.f32.mrf.mxu0
    %v2484 = vpop.f32.mrf.mxu0
    %v2485 = vpop.f32.mrf.mxu0
    %2486 = vdwg.mxu0
    %2487 = vrot.lane.b32.xlu0 %v2157, 32
    %v2488 = vpop.permute.xlu0 %2487
    %2489 = vrot.lane.b32.xlu0 %v2158, 32
    %v2490 = vpop.permute.xlu0 %2489
    %v2492 = vsel %vm443, %v2488, 0
    %v2495 = vsel %vm443, %v2490, 0
    %2497 = vmatprep.subr.bf16.mxu0 0
    %2498 = vmatpush1.bf16.xpose.msra.mxu0 0
    %2499 = vmatprep.subr.bf16.mxu0 0
    %2500 = vmatpush1.bf16.xpose.msra.mxu0 0
    %2501 = vmatprep.subr.bf16.mxu0 0
    %2502 = vmatpush1.bf16.xpose.msra.mxu0 0
    %2503 = vmatprep.subr.bf16.mxu0 0
    %2504 = vmatpush1.bf16.xpose.msra.mxu0 0
    %2505 = vmatprep.subr.bf16.mxu0 0
    %2506 = vmatpush1.bf16.xpose.msra.mxu0 0
    %2507 = vmatprep.subr.bf16.mxu0 0
    %2508 = vmatpush1.bf16.xpose.msra.mxu0 0
    %2509 = vmatprep.subr.bf16.mxu0 0
    %2510 = vmatpush1.bf16.xpose.msra.mxu0 0
    %2511 = vmatprep.subr.bf16.mxu0 0
    %2512 = vmatpush1.bf16.xpose.msra.mxu0 %v2495
    %2513 = vmatprep.subr.bf16.mxu0 0
    %2514 = vmatpush2.bf16.xpose.msra.mxu0 0
    %2515 = vmatprep.subr.bf16.mxu0 0
    %2516 = vmatpush2.bf16.xpose.msra.mxu0 0
    %2517 = vmatprep.subr.bf16.mxu0 0
    %2518 = vmatpush2.bf16.xpose.msra.mxu0 0
    %2519 = vmatprep.subr.bf16.mxu0 0
    %2520 = vmatpush2.bf16.xpose.msra.mxu0 0
    %2521 = vmatprep.subr.bf16.mxu0 0
    %2522 = vmatpush2.bf16.xpose.msra.mxu0 0
    %2523 = vmatprep.subr.bf16.mxu0 0
    %2524 = vmatpush2.bf16.xpose.msra.mxu0 0
    %2525 = vmatprep.subr.bf16.mxu0 0
    %2526 = vmatpush2.bf16.xpose.msra.mxu0 0
    %2527 = vmatprep.subr.bf16.mxu0 0
    %2528 = vmatpush2.bf16.xpose.msra.mxu0 0
    %2529 = vmatprep.mubr.bf16.mxu0 0
    %2530 = vmatmul.mubr.bf16.gmra.mxu0 %v2492
    %v2531 = vpop.f32.mrf.mxu0
    %v2532 = vadd.f32 %v441, %v2531
    %v2533 = vpop.f32.mrf.mxu0
    %v2534 = vpop.f32.mrf.mxu0
    %v2535 = vpop.f32.mrf.mxu0
    %2536 = vdwg.mxu0
    %v2537 = vsel %vm490, %v2532, -inf
    %2538 = vmax.xlane.f32.xlu0 %v2537
    %v2539 = vpop.xlane.xlu0 %2538
    %v2540 = vsub.f32 %v2532, %v2539
    %v2541 = vmul.f32 %v2540, 1.442695
    %v2542 = vpow.pop %v2541
    %v2543 = vsel %vm490, %v2542, 0.0
    %2544 = vadd.xlane.f32.xlu0 %v2543
    %v2545 = vpop.xlane.xlu0 %2544
    %v2546 = vrcp.pop %v2545
    %v2547 = vmul.f32 %v2542, %v2546
    %v2548 = vpack.c.bf16 %v2547, %v2547
    %2549 = vrot.lane.b32.xlu0 %v2159, 32
    %v2550 = vpop.permute.xlu0 %2549
    %v2552 = vsel %vm490, %v2548, 0
    %v2555 = vsel %vm506, %v2550, 0
    %2557 = vmatprep.subr.bf16.mxu0 0
    %2558 = vmatpush1.bf16.msra.mxu0 0
    %2559 = vmatprep.subr.bf16.mxu0 0
    %2560 = vmatpush1.bf16.msra.mxu0 0
    %2561 = vmatprep.subr.bf16.mxu0 0
    %2562 = vmatpush1.bf16.msra.mxu0 0
    %2563 = vmatprep.subr.bf16.mxu0 0
    %2564 = vmatpush1.bf16.msra.mxu0 0
    %2565 = vmatprep.subr.bf16.mxu0 0
    %2566 = vmatpush1.bf16.msra.mxu0 0
    %2567 = vmatprep.subr.bf16.mxu0 0
    %2568 = vmatpush1.bf16.msra.mxu0 0
    %2569 = vmatprep.subr.bf16.mxu0 0
    %2570 = vmatpush1.bf16.msra.mxu0 0
    %2571 = vmatprep.subr.bf16.mxu0 0
    %2572 = vmatpush1.bf16.msra.mxu0 %v2555
    %2573 = vmatprep.subr.bf16.mxu0 0
    %2574 = vmatpush2.bf16.msra.mxu0 0
    %2575 = vmatprep.subr.bf16.mxu0 0
    %2576 = vmatpush2.bf16.msra.mxu0 0
    %2577 = vmatprep.subr.bf16.mxu0 0
    %2578 = vmatpush2.bf16.msra.mxu0 0
    %2579 = vmatprep.subr.bf16.mxu0 0
    %2580 = vmatpush2.bf16.msra.mxu0 0
    %2581 = vmatprep.subr.bf16.mxu0 0
    %2582 = vmatpush2.bf16.msra.mxu0 0
    %2583 = vmatprep.subr.bf16.mxu0 0
    %2584 = vmatpush2.bf16.msra.mxu0 0
    %2585 = vmatprep.subr.bf16.mxu0 0
    %2586 = vmatpush2.bf16.msra.mxu0 0
    %2587 = vmatprep.subr.bf16.mxu0 0
    %2588 = vmatpush2.bf16.msra.mxu0 0
    %2589 = vmatprep.mubr.bf16.mxu0 0
    %2590 = vmatmul.mubr.bf16.gmra.mxu0 %v2552
    %v2591 = vpop.f32.mrf.mxu0
    %v2592 = vadd.f32 0.0, %v2591
    %v2593 = vpop.f32.mrf.mxu0
    %v2594 = vpop.f32.mrf.mxu0
    %v2595 = vpop.f32.mrf.mxu0
    %2596 = vdwg.mxu0
    %2598 = vrot.lane.b32.xlu0 %v2372, 32
    %v2599 = vpop.permute.xlu0 %2598
    %2602 = vrot.lane.b32.xlu0 %v2482, 64
    %v2603 = vpop.permute.xlu0 %2602
    %2606 = vrot.lane.b32.xlu0 %v2592, 96
    %v2607 = vpop.permute.xlu0 %2606
    %v2609 = vsel %vm443, %v2259, %v2599
    %v2610 = vsel %vm896, %v2609, %v2603
    %v2611 = vsel %vm898, %v2610, %v2607
    %v2612 = vpack.c.bf16 %v2112, %v2112
    %v2613 = vpack.c.bf16 %v2114, %v2114
    %v2614 = vpack.c.bf16 %v2154, %v2154
    %v2616 = vsel %vm443, %v2612, 0
    %v2619 = vsel %vm443, %v2613, 0
    %2621 = vmatprep.subr.bf16.mxu0 0
    %2622 = vmatpush1.bf16.xpose.msra.mxu0 0
    %2623 = vmatprep.subr.bf16.mxu0 0
    %2624 = vmatpush1.bf16.xpose.msra.mxu0 0
    %2625 = vmatprep.subr.bf16.mxu0 0
    %2626 = vmatpush1.bf16.xpose.msra.mxu0 0
    %2627 = vmatprep.subr.bf16.mxu0 0
    %2628 = vmatpush1.bf16.xpose.msra.mxu0 0
    %2629 = vmatprep.subr.bf16.mxu0 0
    %2630 = vmatpush1.bf16.xpose.msra.mxu0 0
    %2631 = vmatprep.subr.bf16.mxu0 0
    %2632 = vmatpush1.bf16.xpose.msra.mxu0 0
    %2633 = vmatprep.subr.bf16.mxu0 0
    %2634 = vmatpush1.bf16.xpose.msra.mxu0 0
    %2635 = vmatprep.subr.bf16.mxu0 0
    %2636 = vmatpush1.bf16.xpose.msra.mxu0 %v2619
    %2637 = vmatprep.subr.bf16.mxu0 0
    %2638 = vmatpush2.bf16.xpose.msra.mxu0 0
    %2639 = vmatprep.subr.bf16.mxu0 0
    %2640 = vmatpush2.bf16.xpose.msra.mxu0 0
    %2641 = vmatprep.subr.bf16.mxu0 0
    %2642 = vmatpush2.bf16.xpose.msra.mxu0 0
    %2643 = vmatprep.subr.bf16.mxu0 0
    %2644 = vmatpush2.bf16.xpose.msra.mxu0 0
    %2645 = vmatprep.subr.bf16.mxu0 0
    %2646 = vmatpush2.bf16.xpose.msra.mxu0 0
    %2647 = vmatprep.subr.bf16.mxu0 0
    %2648 = vmatpush2.bf16.xpose.msra.mxu0 0
    %2649 = vmatprep.subr.bf16.mxu0 0
    %2650 = vmatpush2.bf16.xpose.msra.mxu0 0
    %2651 = vmatprep.subr.bf16.mxu0 0
    %2652 = vmatpush2.bf16.xpose.msra.mxu0 0
    %2653 = vmatprep.mubr.bf16.mxu0 0
    %2654 = vmatmul.mubr.bf16.gmra.mxu0 %v2616
    %v2655 = vpop.f32.mrf.mxu0
    %v2656 = vadd.f32 %v907, %v2655
    %v2657 = vpop.f32.mrf.mxu0
    %v2658 = vpop.f32.mrf.mxu0
    %v2659 = vpop.f32.mrf.mxu0
    %2660 = vdwg.mxu0
    %v2661 = vsel %vm490, %v2656, -inf
    %2662 = vmax.xlane.f32.xlu0 %v2661
    %v2663 = vpop.xlane.xlu0 %2662
    %v2664 = vsub.f32 %v2656, %v2663
    %v2665 = vmul.f32 %v2664, 1.442695
    %v2666 = vpow.pop %v2665
    %v2667 = vsel %vm490, %v2666, 0.0
    %2668 = vadd.xlane.f32.xlu0 %v2667
    %v2669 = vpop.xlane.xlu0 %2668
    %v2670 = vrcp.pop %v2669
    %v2671 = vmul.f32 %v2666, %v2670
    %v2672 = vpack.c.bf16 %v2671, %v2671
    %v2674 = vsel %vm490, %v2672, 0
    %v2677 = vsel %vm506, %v2614, 0
    %2679 = vmatprep.subr.bf16.mxu0 0
    %2680 = vmatpush1.bf16.msra.mxu0 0
    %2681 = vmatprep.subr.bf16.mxu0 0
    %2682 = vmatpush1.bf16.msra.mxu0 0
    %2683 = vmatprep.subr.bf16.mxu0 0
    %2684 = vmatpush1.bf16.msra.mxu0 0
    %2685 = vmatprep.subr.bf16.mxu0 0
    %2686 = vmatpush1.bf16.msra.mxu0 0
    %2687 = vmatprep.subr.bf16.mxu0 0
    %2688 = vmatpush1.bf16.msra.mxu0 0
    %2689 = vmatprep.subr.bf16.mxu0 0
    %2690 = vmatpush1.bf16.msra.mxu0 0
    %2691 = vmatprep.subr.bf16.mxu0 0
    %2692 = vmatpush1.bf16.msra.mxu0 0
    %2693 = vmatprep.subr.bf16.mxu0 0
    %2694 = vmatpush1.bf16.msra.mxu0 %v2677
    %2695 = vmatprep.subr.bf16.mxu0 0
    %2696 = vmatpush2.bf16.msra.mxu0 0
    %2697 = vmatprep.subr.bf16.mxu0 0
    %2698 = vmatpush2.bf16.msra.mxu0 0
    %2699 = vmatprep.subr.bf16.mxu0 0
    %2700 = vmatpush2.bf16.msra.mxu0 0
    %2701 = vmatprep.subr.bf16.mxu0 0
    %2702 = vmatpush2.bf16.msra.mxu0 0
    %2703 = vmatprep.subr.bf16.mxu0 0
    %2704 = vmatpush2.bf16.msra.mxu0 0
    %2705 = vmatprep.subr.bf16.mxu0 0
    %2706 = vmatpush2.bf16.msra.mxu0 0
    %2707 = vmatprep.subr.bf16.mxu0 0
    %2708 = vmatpush2.bf16.msra.mxu0 0
    %2709 = vmatprep.subr.bf16.mxu0 0
    %2710 = vmatpush2.bf16.msra.mxu0 0
    %2711 = vmatprep.mubr.bf16.mxu0 0
    %2712 = vmatmul.mubr.bf16.gmra.mxu0 %v2674
    %v2713 = vpop.f32.mrf.mxu0
    %v2714 = vadd.f32 0.0, %v2713
    %v2715 = vpop.f32.mrf.mxu0
    %v2716 = vpop.f32.mrf.mxu0
    %v2717 = vpop.f32.mrf.mxu0
    %2718 = vdwg.mxu0
    %2720 = vrot.lane.b32.xlu0 %v2612, 96
    %v2721 = vpop.permute.xlu0 %2720
    %2723 = vrot.lane.b32.xlu0 %v2613, 96
    %v2724 = vpop.permute.xlu0 %2723
    %v2726 = vsel %vm443, %v2721, 0
    %v2729 = vsel %vm443, %v2724, 0
    %2731 = vmatprep.subr.bf16.mxu0 0
    %2732 = vmatpush1.bf16.xpose.msra.mxu0 0
    %2733 = vmatprep.subr.bf16.mxu0 0
    %2734 = vmatpush1.bf16.xpose.msra.mxu0 0
    %2735 = vmatprep.subr.bf16.mxu0 0
    %2736 = vmatpush1.bf16.xpose.msra.mxu0 0
    %2737 = vmatprep.subr.bf16.mxu0 0
    %2738 = vmatpush1.bf16.xpose.msra.mxu0 0
    %2739 = vmatprep.subr.bf16.mxu0 0
    %2740 = vmatpush1.bf16.xpose.msra.mxu0 0
    %2741 = vmatprep.subr.bf16.mxu0 0
    %2742 = vmatpush1.bf16.xpose.msra.mxu0 0
    %2743 = vmatprep.subr.bf16.mxu0 0
    %2744 = vmatpush1.bf16.xpose.msra.mxu0 0
    %2745 = vmatprep.subr.bf16.mxu0 0
    %2746 = vmatpush1.bf16.xpose.msra.mxu0 %v2729
    %2747 = vmatprep.subr.bf16.mxu0 0
    %2748 = vmatpush2.bf16.xpose.msra.mxu0 0
    %2749 = vmatprep.subr.bf16.mxu0 0
    %2750 = vmatpush2.bf16.xpose.msra.mxu0 0
    %2751 = vmatprep.subr.bf16.mxu0 0
    %2752 = vmatpush2.bf16.xpose.msra.mxu0 0
    %2753 = vmatprep.subr.bf16.mxu0 0
    %2754 = vmatpush2.bf16.xpose.msra.mxu0 0
    %2755 = vmatprep.subr.bf16.mxu0 0
    %2756 = vmatpush2.bf16.xpose.msra.mxu0 0
    %2757 = vmatprep.subr.bf16.mxu0 0
    %2758 = vmatpush2.bf16.xpose.msra.mxu0 0
    %2759 = vmatprep.subr.bf16.mxu0 0
    %2760 = vmatpush2.bf16.xpose.msra.mxu0 0
    %2761 = vmatprep.subr.bf16.mxu0 0
    %2762 = vmatpush2.bf16.xpose.msra.mxu0 0
    %2763 = vmatprep.mubr.bf16.mxu0 0
    %2764 = vmatmul.mubr.bf16.gmra.mxu0 %v2726
    %v2765 = vpop.f32.mrf.mxu0
    %v2766 = vadd.f32 %v907, %v2765
    %v2767 = vpop.f32.mrf.mxu0
    %v2768 = vpop.f32.mrf.mxu0
    %v2769 = vpop.f32.mrf.mxu0
    %2770 = vdwg.mxu0
    %v2771 = vsel %vm490, %v2766, -inf
    %2772 = vmax.xlane.f32.xlu0 %v2771
    %v2773 = vpop.xlane.xlu0 %2772
    %v2774 = vsub.f32 %v2766, %v2773
    %v2775 = vmul.f32 %v2774, 1.442695
    %v2776 = vpow.pop %v2775
    %v2777 = vsel %vm490, %v2776, 0.0
    %2778 = vadd.xlane.f32.xlu0 %v2777
    %v2779 = vpop.xlane.xlu0 %2778
    %v2780 = vrcp.pop %v2779
    %v2781 = vmul.f32 %v2776, %v2780
    %v2782 = vpack.c.bf16 %v2781, %v2781
    %2784 = vrot.lane.b32.xlu0 %v2614, 96
    %v2785 = vpop.permute.xlu0 %2784
    %v2787 = vsel %vm490, %v2782, 0
    %v2790 = vsel %vm506, %v2785, 0
    %2792 = vmatprep.subr.bf16.mxu0 0
    %2793 = vmatpush1.bf16.msra.mxu0 0
    %2794 = vmatprep.subr.bf16.mxu0 0
    %2795 = vmatpush1.bf16.msra.mxu0 0
    %2796 = vmatprep.subr.bf16.mxu0 0
    %2797 = vmatpush1.bf16.msra.mxu0 0
    %2798 = vmatprep.subr.bf16.mxu0 0
    %2799 = vmatpush1.bf16.msra.mxu0 0
    %2800 = vmatprep.subr.bf16.mxu0 0
    %2801 = vmatpush1.bf16.msra.mxu0 0
    %2802 = vmatprep.subr.bf16.mxu0 0
    %2803 = vmatpush1.bf16.msra.mxu0 0
    %2804 = vmatprep.subr.bf16.mxu0 0
    %2805 = vmatpush1.bf16.msra.mxu0 0
    %2806 = vmatprep.subr.bf16.mxu0 0
    %2807 = vmatpush1.bf16.msra.mxu0 %v2790
    %2808 = vmatprep.subr.bf16.mxu0 0
    %2809 = vmatpush2.bf16.msra.mxu0 0
    %2810 = vmatprep.subr.bf16.mxu0 0
    %2811 = vmatpush2.bf16.msra.mxu0 0
    %2812 = vmatprep.subr.bf16.mxu0 0
    %2813 = vmatpush2.bf16.msra.mxu0 0
    %2814 = vmatprep.subr.bf16.mxu0 0
    %2815 = vmatpush2.bf16.msra.mxu0 0
    %2816 = vmatprep.subr.bf16.mxu0 0
    %2817 = vmatpush2.bf16.msra.mxu0 0
    %2818 = vmatprep.subr.bf16.mxu0 0
    %2819 = vmatpush2.bf16.msra.mxu0 0
    %2820 = vmatprep.subr.bf16.mxu0 0
    %2821 = vmatpush2.bf16.msra.mxu0 0
    %2822 = vmatprep.subr.bf16.mxu0 0
    %2823 = vmatpush2.bf16.msra.mxu0 0
    %2824 = vmatprep.mubr.bf16.mxu0 0
    %2825 = vmatmul.mubr.bf16.gmra.mxu0 %v2787
    %v2826 = vpop.f32.mrf.mxu0
    %v2827 = vadd.f32 0.0, %v2826
    %v2828 = vpop.f32.mrf.mxu0
    %v2829 = vpop.f32.mrf.mxu0
    %v2830 = vpop.f32.mrf.mxu0
    %2831 = vdwg.mxu0
    %2832 = vrot.lane.b32.xlu0 %v2612, 64
    %v2833 = vpop.permute.xlu0 %2832
    %2834 = vrot.lane.b32.xlu0 %v2613, 64
    %v2835 = vpop.permute.xlu0 %2834
    %v2837 = vsel %vm443, %v2833, 0
    %v2840 = vsel %vm443, %v2835, 0
    %2842 = vmatprep.subr.bf16.mxu0 0
    %2843 = vmatpush1.bf16.xpose.msra.mxu0 0
    %2844 = vmatprep.subr.bf16.mxu0 0
    %2845 = vmatpush1.bf16.xpose.msra.mxu0 0
    %2846 = vmatprep.subr.bf16.mxu0 0
    %2847 = vmatpush1.bf16.xpose.msra.mxu0 0
    %2848 = vmatprep.subr.bf16.mxu0 0
    %2849 = vmatpush1.bf16.xpose.msra.mxu0 0
    %2850 = vmatprep.subr.bf16.mxu0 0
    %2851 = vmatpush1.bf16.xpose.msra.mxu0 0
    %2852 = vmatprep.subr.bf16.mxu0 0
    %2853 = vmatpush1.bf16.xpose.msra.mxu0 0
    %2854 = vmatprep.subr.bf16.mxu0 0
    %2855 = vmatpush1.bf16.xpose.msra.mxu0 0
    %2856 = vmatprep.subr.bf16.mxu0 0
    %2857 = vmatpush1.bf16.xpose.msra.mxu0 %v2840
    %2858 = vmatprep.subr.bf16.mxu0 0
    %2859 = vmatpush2.bf16.xpose.msra.mxu0 0
    %2860 = vmatprep.subr.bf16.mxu0 0
    %2861 = vmatpush2.bf16.xpose.msra.mxu0 0
    %2862 = vmatprep.subr.bf16.mxu0 0
    %2863 = vmatpush2.bf16.xpose.msra.mxu0 0
    %2864 = vmatprep.subr.bf16.mxu0 0
    %2865 = vmatpush2.bf16.xpose.msra.mxu0 0
    %2866 = vmatprep.subr.bf16.mxu0 0
    %2867 = vmatpush2.bf16.xpose.msra.mxu0 0
    %2868 = vmatprep.subr.bf16.mxu0 0
    %2869 = vmatpush2.bf16.xpose.msra.mxu0 0
    %2870 = vmatprep.subr.bf16.mxu0 0
    %2871 = vmatpush2.bf16.xpose.msra.mxu0 0
    %2872 = vmatprep.subr.bf16.mxu0 0
    %2873 = vmatpush2.bf16.xpose.msra.mxu0 0
    %2874 = vmatprep.mubr.bf16.mxu0 0
    %2875 = vmatmul.mubr.bf16.gmra.mxu0 %v2837
    %v2876 = vpop.f32.mrf.mxu0
    %v2877 = vadd.f32 %v907, %v2876
    %v2878 = vpop.f32.mrf.mxu0
    %v2879 = vpop.f32.mrf.mxu0
    %v2880 = vpop.f32.mrf.mxu0
    %2881 = vdwg.mxu0
    %v2882 = vsel %vm490, %v2877, -inf
    %2883 = vmax.xlane.f32.xlu0 %v2882
    %v2884 = vpop.xlane.xlu0 %2883
    %v2885 = vsub.f32 %v2877, %v2884
    %v2886 = vmul.f32 %v2885, 1.442695
    %v2887 = vpow.pop %v2886
    %v2888 = vsel %vm490, %v2887, 0.0
    %2889 = vadd.xlane.f32.xlu0 %v2888
    %v2890 = vpop.xlane.xlu0 %2889
    %v2891 = vrcp.pop %v2890
    %v2892 = vmul.f32 %v2887, %v2891
    %v2893 = vpack.c.bf16 %v2892, %v2892
    %2894 = vrot.lane.b32.xlu0 %v2614, 64
    %v2895 = vpop.permute.xlu0 %2894
    %v2897 = vsel %vm490, %v2893, 0
    %v2900 = vsel %vm506, %v2895, 0
    %2902 = vmatprep.subr.bf16.mxu0 0
    %2903 = vmatpush1.bf16.msra.mxu0 0
    %2904 = vmatprep.subr.bf16.mxu0 0
    %2905 = vmatpush1.bf16.msra.mxu0 0
    %2906 = vmatprep.subr.bf16.mxu0 0
    %2907 = vmatpush1.bf16.msra.mxu0 0
    %2908 = vmatprep.subr.bf16.mxu0 0
    %2909 = vmatpush1.bf16.msra.mxu0 0
    %2910 = vmatprep.subr.bf16.mxu0 0
    %2911 = vmatpush1.bf16.msra.mxu0 0
    %2912 = vmatprep.subr.bf16.mxu0 0
    %2913 = vmatpush1.bf16.msra.mxu0 0
    %2914 = vmatprep.subr.bf16.mxu0 0
    %2915 = vmatpush1.bf16.msra.mxu0 0
    %2916 = vmatprep.subr.bf16.mxu0 0
    %2917 = vmatpush1.bf16.msra.mxu0 %v2900
    %2918 = vmatprep.subr.bf16.mxu0 0
    %2919 = vmatpush2.bf16.msra.mxu0 0
    %2920 = vmatprep.subr.bf16.mxu0 0
    %2921 = vmatpush2.bf16.msra.mxu0 0
    %2922 = vmatprep.subr.bf16.mxu0 0
    %2923 = vmatpush2.bf16.msra.mxu0 0
    %2924 = vmatprep.subr.bf16.mxu0 0
    %2925 = vmatpush2.bf16.msra.mxu0 0
    %2926 = vmatprep.subr.bf16.mxu0 0
    %2927 = vmatpush2.bf16.msra.mxu0 0
    %2928 = vmatprep.subr.bf16.mxu0 0
    %2929 = vmatpush2.bf16.msra.mxu0 0
    %2930 = vmatprep.subr.bf16.mxu0 0
    %2931 = vmatpush2.bf16.msra.mxu0 0
    %2932 = vmatprep.subr.bf16.mxu0 0
    %2933 = vmatpush2.bf16.msra.mxu0 0
    %2934 = vmatprep.mubr.bf16.mxu0 0
    %2935 = vmatmul.mubr.bf16.gmra.mxu0 %v2897
    %v2936 = vpop.f32.mrf.mxu0
    %v2937 = vadd.f32 0.0, %v2936
    %v2938 = vpop.f32.mrf.mxu0
    %v2939 = vpop.f32.mrf.mxu0
    %v2940 = vpop.f32.mrf.mxu0
    %2941 = vdwg.mxu0
    %2942 = vrot.lane.b32.xlu0 %v2612, 32
    %v2943 = vpop.permute.xlu0 %2942
    %2944 = vrot.lane.b32.xlu0 %v2613, 32
    %v2945 = vpop.permute.xlu0 %2944
    %v2947 = vsel %vm443, %v2943, 0
    %v2950 = vsel %vm443, %v2945, 0
    %2952 = vmatprep.subr.bf16.mxu0 0
    %2953 = vmatpush1.bf16.xpose.msra.mxu0 0
    %2954 = vmatprep.subr.bf16.mxu0 0
    %2955 = vmatpush1.bf16.xpose.msra.mxu0 0
    %2956 = vmatprep.subr.bf16.mxu0 0
    %2957 = vmatpush1.bf16.xpose.msra.mxu0 0
    %2958 = vmatprep.subr.bf16.mxu0 0
    %2959 = vmatpush1.bf16.xpose.msra.mxu0 0
    %2960 = vmatprep.subr.bf16.mxu0 0
    %2961 = vmatpush1.bf16.xpose.msra.mxu0 0
    %2962 = vmatprep.subr.bf16.mxu0 0
    %2963 = vmatpush1.bf16.xpose.msra.mxu0 0
    %2964 = vmatprep.subr.bf16.mxu0 0
    %2965 = vmatpush1.bf16.xpose.msra.mxu0 0
    %2966 = vmatprep.subr.bf16.mxu0 0
    %2967 = vmatpush1.bf16.xpose.msra.mxu0 %v2950
    %2968 = vmatprep.subr.bf16.mxu0 0
    %2969 = vmatpush2.bf16.xpose.msra.mxu0 0
    %2970 = vmatprep.subr.bf16.mxu0 0
    %2971 = vmatpush2.bf16.xpose.msra.mxu0 0
    %2972 = vmatprep.subr.bf16.mxu0 0
    %2973 = vmatpush2.bf16.xpose.msra.mxu0 0
    %2974 = vmatprep.subr.bf16.mxu0 0
    %2975 = vmatpush2.bf16.xpose.msra.mxu0 0
    %2976 = vmatprep.subr.bf16.mxu0 0
    %2977 = vmatpush2.bf16.xpose.msra.mxu0 0
    %2978 = vmatprep.subr.bf16.mxu0 0
    %2979 = vmatpush2.bf16.xpose.msra.mxu0 0
    %2980 = vmatprep.subr.bf16.mxu0 0
    %2981 = vmatpush2.bf16.xpose.msra.mxu0 0
    %2982 = vmatprep.subr.bf16.mxu0 0
    %2983 = vmatpush2.bf16.xpose.msra.mxu0 0
    %2984 = vmatprep.mubr.bf16.mxu0 0
    %2985 = vmatmul.mubr.bf16.gmra.mxu0 %v2947
    %v2986 = vpop.f32.mrf.mxu0
    %v2987 = vadd.f32 %v907, %v2986
    %v2988 = vpop.f32.mrf.mxu0
    %v2989 = vpop.f32.mrf.mxu0
    %v2990 = vpop.f32.mrf.mxu0
    %2991 = vdwg.mxu0
    %v2992 = vsel %vm490, %v2987, -inf
    %2993 = vmax.xlane.f32.xlu0 %v2992
    %v2994 = vpop.xlane.xlu0 %2993
    %v2995 = vsub.f32 %v2987, %v2994
    %v2996 = vmul.f32 %v2995, 1.442695
    %v2997 = vpow.pop %v2996
    %v2998 = vsel %vm490, %v2997, 0.0
    %2999 = vadd.xlane.f32.xlu0 %v2998
    %v3000 = vpop.xlane.xlu0 %2999
    %v3001 = vrcp.pop %v3000
    %v3002 = vmul.f32 %v2997, %v3001
    %v3003 = vpack.c.bf16 %v3002, %v3002
    %3004 = vrot.lane.b32.xlu0 %v2614, 32
    %v3005 = vpop.permute.xlu0 %3004
    %v3007 = vsel %vm490, %v3003, 0
    %v3010 = vsel %vm506, %v3005, 0
    %3012 = vmatprep.subr.bf16.mxu0 0
    %3013 = vmatpush1.bf16.msra.mxu0 0
    %3014 = vmatprep.subr.bf16.mxu0 0
    %3015 = vmatpush1.bf16.msra.mxu0 0
    %3016 = vmatprep.subr.bf16.mxu0 0
    %3017 = vmatpush1.bf16.msra.mxu0 0
    %3018 = vmatprep.subr.bf16.mxu0 0
    %3019 = vmatpush1.bf16.msra.mxu0 0
    %3020 = vmatprep.subr.bf16.mxu0 0
    %3021 = vmatpush1.bf16.msra.mxu0 0
    %3022 = vmatprep.subr.bf16.mxu0 0
    %3023 = vmatpush1.bf16.msra.mxu0 0
    %3024 = vmatprep.subr.bf16.mxu0 0
    %3025 = vmatpush1.bf16.msra.mxu0 0
    %3026 = vmatprep.subr.bf16.mxu0 0
    %3027 = vmatpush1.bf16.msra.mxu0 %v3010
    %3028 = vmatprep.subr.bf16.mxu0 0
    %3029 = vmatpush2.bf16.msra.mxu0 0
    %3030 = vmatprep.subr.bf16.mxu0 0
    %3031 = vmatpush2.bf16.msra.mxu0 0
    %3032 = vmatprep.subr.bf16.mxu0 0
    %3033 = vmatpush2.bf16.msra.mxu0 0
    %3034 = vmatprep.subr.bf16.mxu0 0
    %3035 = vmatpush2.bf16.msra.mxu0 0
    %3036 = vmatprep.subr.bf16.mxu0 0
    %3037 = vmatpush2.bf16.msra.mxu0 0
    %3038 = vmatprep.subr.bf16.mxu0 0
    %3039 = vmatpush2.bf16.msra.mxu0 0
    %3040 = vmatprep.subr.bf16.mxu0 0
    %3041 = vmatpush2.bf16.msra.mxu0 0
    %3042 = vmatprep.subr.bf16.mxu0 0
    %3043 = vmatpush2.bf16.msra.mxu0 0
    %3044 = vmatprep.mubr.bf16.mxu0 0
    %3045 = vmatmul.mubr.bf16.gmra.mxu0 %v3007
    %v3046 = vpop.f32.mrf.mxu0
    %v3047 = vadd.f32 0.0, %v3046
    %v3048 = vpop.f32.mrf.mxu0
    %v3049 = vpop.f32.mrf.mxu0
    %v3050 = vpop.f32.mrf.mxu0
    %3051 = vdwg.mxu0
    %3053 = vrot.lane.b32.xlu0 %v2827, 32
    %v3054 = vpop.permute.xlu0 %3053
    %3057 = vrot.lane.b32.xlu0 %v2937, 64
    %v3058 = vpop.permute.xlu0 %3057
    %3061 = vrot.lane.b32.xlu0 %v3047, 96
    %v3062 = vpop.permute.xlu0 %3061
    %v3064 = vsel %vm443, %v2714, %v3054
    %v3065 = vsel %vm896, %v3064, %v3058
    %v3066 = vsel %vm898, %v3065, %v3062
    %v3067 = vpack.c.bf16 %v3066, %v2611
    %s3068 = scalar_lea.vmem [#allocation10], 64
    %v3069 = vld [vmem:[%s3068] sm:$0xf]
    %v3070 = vld [vmem:[%s3068 + $0x4] sm:$0xf]
    %v3071 = vld [vmem:[%s3068 + $0x8] sm:$0xf]
    %v3072 = vld [vmem:[%s3068 + $0xc] sm:$0xf]
    %v3073 = vld [vmem:[%s3068 + $0x10] sm:$0xf]
    %v3074 = vld [vmem:[%s3068 + $0x14] sm:$0xf]
    %v3075 = vld [vmem:[%s3068 + $0x18] sm:$0xf]
    %v3076 = vld [vmem:[%s3068 + $0x1c] sm:$0xf]
    %v3077 = vld [vmem:[%s3068 + $0x20] sm:$0xf]
    %v3078 = vld [vmem:[%s3068 + $0x24] sm:$0xf]
    %v3079 = vld [vmem:[%s3068 + $0x28] sm:$0xf]
    %v3080 = vld [vmem:[%s3068 + $0x2c] sm:$0xf]
    %v3081 = vld [vmem:[%s3068 + $0x30] sm:$0xf]
    %v3082 = vld [vmem:[%s3068 + $0x34] sm:$0xf]
    %v3083 = vld [vmem:[%s3068 + $0x38] sm:$0xf]
    %v3084 = vld [vmem:[%s3068 + $0x3c] sm:$0xf]
    %s3085 = scalar_lea.vmem %s5, 1
    %v3086 = vld [vmem:[%s3085] sm:$0x1]
    %v3088 = vlaneseq
    %v3089 = vshrl.u32 %v3088, 7
    %v3090 = vsub.s32 0, %v3089
    %v3091 = vrot.slane %v3086, %v3090
    %v3109 = vunpack.c.l.b16 %v3069
    %v3110 = vunpack.c.l.b16 %v3070
    %v3111 = vunpack.c.l.b16 %v3071
    %v3112 = vunpack.c.l.b16 %v3072
    %v3113 = vunpack.c.l.b16 %v3073
    %v3114 = vunpack.c.l.b16 %v3074
    %v3115 = vunpack.c.l.b16 %v3075
    %v3116 = vunpack.c.l.b16 %v3076
    %v3117 = vunpack.c.l.b16 %v3077
    %v3118 = vunpack.c.l.b16 %v3078
    %v3119 = vunpack.c.l.b16 %v3079
    %v3120 = vunpack.c.l.b16 %v3080
    %v3121 = vunpack.c.l.b16 %v3081
    %v3122 = vunpack.c.l.b16 %v3082
    %v3123 = vunpack.c.l.b16 %v3083
    %v3124 = vunpack.c.l.b16 %v3084
    %v3125 = vpack.c.b16 %v3110, %v3109
    %v3126 = vpack.c.b16 %v3112, %v3111
    %v3127 = vpack.c.b16 %v3114, %v3113
    %v3128 = vpack.c.b16 %v3116, %v3115
    %v3129 = vpack.c.b16 %v3118, %v3117
    %v3130 = vpack.c.b16 %v3120, %v3119
    %v3131 = vpack.c.b16 %v3122, %v3121
    %v3132 = vpack.c.b16 %v3124, %v3123
    %3141 = vmatprep.subr.bf16.mxu0 0
    %3142 = vmatpush1.bf16.msra.mxu0 %v3132
    %3143 = vmatprep.subr.bf16.mxu0 0
    %3144 = vmatpush1.bf16.msra.mxu0 %v3131
    %3145 = vmatprep.subr.bf16.mxu0 0
    %3146 = vmatpush1.bf16.msra.mxu0 %v3130
    %3147 = vmatprep.subr.bf16.mxu0 0
    %3148 = vmatpush1.bf16.msra.mxu0 %v3129
    %3149 = vmatprep.subr.bf16.mxu0 0
    %3150 = vmatpush1.bf16.msra.mxu0 %v3128
    %3151 = vmatprep.subr.bf16.mxu0 0
    %3152 = vmatpush1.bf16.msra.mxu0 %v3127
    %3153 = vmatprep.subr.bf16.mxu0 0
    %3154 = vmatpush1.bf16.msra.mxu0 %v3126
    %3155 = vmatprep.subr.bf16.mxu0 0
    %3156 = vmatpush1.bf16.msra.mxu0 %v3125
    %3157 = vmatprep.subr.bf16.mxu0 0
    %3158 = vmatpush2.bf16.msra.mxu0 0
    %3159 = vmatprep.subr.bf16.mxu0 0
    %3160 = vmatpush2.bf16.msra.mxu0 0
    %3161 = vmatprep.subr.bf16.mxu0 0
    %3162 = vmatpush2.bf16.msra.mxu0 0
    %3163 = vmatprep.subr.bf16.mxu0 0
    %3164 = vmatpush2.bf16.msra.mxu0 0
    %3165 = vmatprep.subr.bf16.mxu0 0
    %3166 = vmatpush2.bf16.msra.mxu0 0
    %3167 = vmatprep.subr.bf16.mxu0 0
    %3168 = vmatpush2.bf16.msra.mxu0 0
    %3169 = vmatprep.subr.bf16.mxu0 0
    %3170 = vmatpush2.bf16.msra.mxu0 0
    %3171 = vmatprep.subr.bf16.mxu0 0
    %3172 = vmatpush2.bf16.msra.mxu0 0
    %3173 = vmatprep.mubr.bf16.mxu0 0
    %3174 = vmatmul.mubr.bf16.gmra.mxu0 %v3067
    %v3175 = vpop.f32.mrf.mxu0
    %v3176 = vadd.f32 %v3091, %v3175
    %v3177 = vpop.f32.mrf.mxu0
    %v3178 = vpop.f32.mrf.mxu0
    %v3179 = vadd.f32 %v3091, %v3178
    %v3180 = vpop.f32.mrf.mxu0
    %3181 = vdwg.mxu0
    %v3182 = vadd.f32 %v1891, %v3176
    %v3183 = vadd.f32 %v1892, %v3179
    %s3184 = scalar_lea.vmem %s6, 1
    %v3185 = vld [vmem:[%s3184] sm:$0x1]
    %s3186 = scalar_lea.vmem %s7, 1
    %v3187 = vld [vmem:[%s3186] sm:$0x1]
    %3188 = vadd.xlane.f32.xlu0 %v3182
    %v3189 = vpop.xlane.xlu0 %3188
    %3190 = vadd.xlane.f32.xlu0 %v3183
    %v3191 = vpop.xlane.xlu0 %3190
    %v3192 = vmul.f32 %v3189, %v1482
    %v3193 = vmul.f32 %v3191, %v1482
    %v3194 = vsub.f32 %v3182, %v3192
    %v3195 = vsub.f32 %v3183, %v3193
    %v3196 = vmul.f32 %v3194, %v3194
    %v3197 = vmul.f32 %v3195, %v3195
    %3198 = vadd.xlane.f32.xlu0 %v3196
    %v3199 = vpop.xlane.xlu0 %3198
    %3200 = vadd.xlane.f32.xlu0 %v3197
    %v3201 = vpop.xlane.xlu0 %3200
    %v3202 = vmul.f32 %v3199, %v1482
    %v3203 = vmul.f32 %v3201, %v1482
    %v3204 = vadd.f32 %v3202, 1e-05
    %v3205 = vadd.f32 %v3203, 1e-05
    %v3206 = vrsqrt.pop %v3204
    %v3207 = vrsqrt.pop %v3205
    %v3208 = vmul.f32 %v3194, %v3206
    %v3209 = vmul.f32 %v3195, %v3207
    %v3211 = vlaneseq
    %v3212 = vshrl.u32 %v3211, 7
    %v3213 = vsub.s32 0, %v3212
    %v3214 = vrot.slane %v3185, %v3213
    %v3216 = vmul.f32 %v3208, %v3214
    %v3217 = vmul.f32 %v3209, %v3214
    %v3219 = vlaneseq
    %v3220 = vshrl.u32 %v3219, 7
    %v3221 = vsub.s32 0, %v3220
    %v3222 = vrot.slane %v3187, %v3221
    %v3224 = vadd.f32 %v3216, %v3222
    %v3225 = vadd.f32 %v3217, %v3222
    %v3226 = vpack.c.bf16 %v3225, %v3224
    %s3227 = scalar_lea.vmem [#allocation11], 128
    %v3228 = vld [vmem:[%s3227] sm:$0xff]
    %v3229 = vld [vmem:[%s3227 + $0x8] sm:$0xff]
    %v3230 = vld [vmem:[%s3227 + $0x10] sm:$0xff]
    %v3231 = vld [vmem:[%s3227 + $0x18] sm:$0xff]
    %v3232 = vld [vmem:[%s3227 + $0x20] sm:$0xff]
    %v3233 = vld [vmem:[%s3227 + $0x28] sm:$0xff]
    %v3234 = vld [vmem:[%s3227 + $0x30] sm:$0xff]
    %v3235 = vld [vmem:[%s3227 + $0x38] sm:$0xff]
    %v3236 = vld [vmem:[%s3227 + $0x40] sm:$0xff]
    %v3237 = vld [vmem:[%s3227 + $0x48] sm:$0xff]
    %v3238 = vld [vmem:[%s3227 + $0x50] sm:$0xff]
    %v3239 = vld [vmem:[%s3227 + $0x58] sm:$0xff]
    %v3240 = vld [vmem:[%s3227 + $0x60] sm:$0xff]
    %v3241 = vld [vmem:[%s3227 + $0x68] sm:$0xff]
    %v3242 = vld [vmem:[%s3227 + $0x70] sm:$0xff]
    %v3243 = vld [vmem:[%s3227 + $0x78] sm:$0xff]
    %s3244 = scalar_lea.vmem %s9, 2
    %v3245 = vld [vmem:[%s3244] sm:$0x3]
    %v3247 = vlaneseq
    %v3248 = vshrl.u32 %v3247, 7
    %v3249 = vsub.s32 0, %v3248
    %v3250 = vrot.slane %v3245, %v3249
    %v3251 = vlaneseq
    %v3252 = vshrl.u32 %v3251, 7
    %v3253 = vsub.s32 1, %v3252
    %v3254 = vrot.slane %v3245, %v3253
    %v3273 = vunpack.c.l.b16 %v3228
    %v3274 = vunpack.c.h.b16 %v3228
    %v3275 = vunpack.c.l.b16 %v3229
    %v3276 = vunpack.c.h.b16 %v3229
    %v3277 = vunpack.c.l.b16 %v3230
    %v3278 = vunpack.c.h.b16 %v3230
    %v3279 = vunpack.c.l.b16 %v3231
    %v3280 = vunpack.c.h.b16 %v3231
    %v3281 = vunpack.c.l.b16 %v3232
    %v3282 = vunpack.c.h.b16 %v3232
    %v3283 = vunpack.c.l.b16 %v3233
    %v3284 = vunpack.c.h.b16 %v3233
    %v3285 = vunpack.c.l.b16 %v3234
    %v3286 = vunpack.c.h.b16 %v3234
    %v3287 = vunpack.c.l.b16 %v3235
    %v3288 = vunpack.c.h.b16 %v3235
    %v3289 = vunpack.c.l.b16 %v3236
    %v3290 = vunpack.c.h.b16 %v3236
    %v3291 = vunpack.c.l.b16 %v3237
    %v3292 = vunpack.c.h.b16 %v3237
    %v3293 = vunpack.c.l.b16 %v3238
    %v3294 = vunpack.c.h.b16 %v3238
    %v3295 = vunpack.c.l.b16 %v3239
    %v3296 = vunpack.c.h.b16 %v3239
    %v3297 = vunpack.c.l.b16 %v3240
    %v3298 = vunpack.c.h.b16 %v3240
    %v3299 = vunpack.c.l.b16 %v3241
    %v3300 = vunpack.c.h.b16 %v3241
    %v3301 = vunpack.c.l.b16 %v3242
    %v3302 = vunpack.c.h.b16 %v3242
    %v3303 = vunpack.c.l.b16 %v3243
    %v3304 = vunpack.c.h.b16 %v3243
    %v3305 = vpack.c.b16 %v3275, %v3273
    %v3306 = vpack.c.b16 %v3276, %v3274
    %v3307 = vpack.c.b16 %v3279, %v3277
    %v3308 = vpack.c.b16 %v3280, %v3278
    %v3309 = vpack.c.b16 %v3283, %v3281
    %v3310 = vpack.c.b16 %v3284, %v3282
    %v3311 = vpack.c.b16 %v3287, %v3285
    %v3312 = vpack.c.b16 %v3288, %v3286
    %v3313 = vpack.c.b16 %v3291, %v3289
    %v3314 = vpack.c.b16 %v3292, %v3290
    %v3315 = vpack.c.b16 %v3295, %v3293
    %v3316 = vpack.c.b16 %v3296, %v3294
    %v3317 = vpack.c.b16 %v3299, %v3297
    %v3318 = vpack.c.b16 %v3300, %v3298
    %v3319 = vpack.c.b16 %v3303, %v3301
    %v3320 = vpack.c.b16 %v3304, %v3302
    %3337 = vmatprep.subr.bf16.mxu0 %v3320
    %3338 = vmatpush1.bf16.msra.mxu0 %v3319
    %3339 = vmatprep.subr.bf16.mxu0 %v3318
    %3340 = vmatpush1.bf16.msra.mxu0 %v3317
    %3341 = vmatprep.subr.bf16.mxu0 %v3316
    %3342 = vmatpush1.bf16.msra.mxu0 %v3315
    %3343 = vmatprep.subr.bf16.mxu0 %v3314
    %3344 = vmatpush1.bf16.msra.mxu0 %v3313
    %3345 = vmatprep.subr.bf16.mxu0 %v3312
    %3346 = vmatpush1.bf16.msra.mxu0 %v3311
    %3347 = vmatprep.subr.bf16.mxu0 %v3310
    %3348 = vmatpush1.bf16.msra.mxu0 %v3309
    %3349 = vmatprep.subr.bf16.mxu0 %v3308
    %3350 = vmatpush1.bf16.msra.mxu0 %v3307
    %3351 = vmatprep.subr.bf16.mxu0 %v3306
    %3352 = vmatpush1.bf16.msra.mxu0 %v3305
    %3353 = vmatprep.subr.bf16.mxu0 0
    %3354 = vmatpush2.bf16.msra.mxu0 0
    %3355 = vmatprep.subr.bf16.mxu0 0
    %3356 = vmatpush2.bf16.msra.mxu0 0
    %3357 = vmatprep.subr.bf16.mxu0 0
    %3358 = vmatpush2.bf16.msra.mxu0 0
    %3359 = vmatprep.subr.bf16.mxu0 0
    %3360 = vmatpush2.bf16.msra.mxu0 0
    %3361 = vmatprep.subr.bf16.mxu0 0
    %3362 = vmatpush2.bf16.msra.mxu0 0
    %3363 = vmatprep.subr.bf16.mxu0 0
    %3364 = vmatpush2.bf16.msra.mxu0 0
    %3365 = vmatprep.subr.bf16.mxu0 0
    %3366 = vmatpush2.bf16.msra.mxu0 0
    %3367 = vmatprep.subr.bf16.mxu0 0
    %3368 = vmatpush2.bf16.msra.mxu0 0
    %3369 = vmatprep.mubr.bf16.mxu0 0
    %3370 = vmatmul.mubr.bf16.gmra.mxu0 %v3226
    %v3371 = vpop.f32.mrf.mxu0
    %v3372 = vadd.f32 %v3250, %v3371
    %v3373 = vpop.f32.mrf.mxu0
    %v3374 = vadd.f32 %v3254, %v3373
    %v3375 = vpop.f32.mrf.mxu0
    %v3376 = vadd.f32 %v3250, %v3375
    %v3377 = vpop.f32.mrf.mxu0
    %v3378 = vadd.f32 %v3254, %v3377
    %3379 = vdwg.mxu0
    %v3380 = vmax.f32 %v3372, 0.0
    %v3381 = vmax.f32 %v3374, 0.0
    %v3382 = vmax.f32 %v3376, 0.0
    %v3383 = vmax.f32 %v3378, 0.0
    %v3384 = vpack.c.bf16 %v3382, %v3380
    %v3385 = vpack.c.bf16 %v3383, %v3381
    %s3386 = scalar_lea.vmem [#allocation13], 128
    %v3387 = vld [vmem:[%s3386] sm:$0xf]
    %v3388 = vld [vmem:[%s3386 + $0x4] sm:$0xf]
    %v3389 = vld [vmem:[%s3386 + $0x8] sm:$0xf]
    %v3390 = vld [vmem:[%s3386 + $0xc] sm:$0xf]
    %v3391 = vld [vmem:[%s3386 + $0x10] sm:$0xf]
    %v3392 = vld [vmem:[%s3386 + $0x14] sm:$0xf]
    %v3393 = vld [vmem:[%s3386 + $0x18] sm:$0xf]
    %v3394 = vld [vmem:[%s3386 + $0x1c] sm:$0xf]
    %v3395 = vld [vmem:[%s3386 + $0x20] sm:$0xf]
    %v3396 = vld [vmem:[%s3386 + $0x24] sm:$0xf]
    %v3397 = vld [vmem:[%s3386 + $0x28] sm:$0xf]
    %v3398 = vld [vmem:[%s3386 + $0x2c] sm:$0xf]
    %v3399 = vld [vmem:[%s3386 + $0x30] sm:$0xf]
    %v3400 = vld [vmem:[%s3386 + $0x34] sm:$0xf]
    %v3401 = vld [vmem:[%s3386 + $0x38] sm:$0xf]
    %v3402 = vld [vmem:[%s3386 + $0x3c] sm:$0xf]
    %v3403 = vld [vmem:[%s3386 + $0x40] sm:$0xf]
    %v3404 = vld [vmem:[%s3386 + $0x44] sm:$0xf]
    %v3405 = vld [vmem:[%s3386 + $0x48] sm:$0xf]
    %v3406 = vld [vmem:[%s3386 + $0x4c] sm:$0xf]
    %v3407 = vld [vmem:[%s3386 + $0x50] sm:$0xf]
    %v3408 = vld [vmem:[%s3386 + $0x54] sm:$0xf]
    %v3409 = vld [vmem:[%s3386 + $0x58] sm:$0xf]
    %v3410 = vld [vmem:[%s3386 + $0x5c] sm:$0xf]
    %v3411 = vld [vmem:[%s3386 + $0x60] sm:$0xf]
    %v3412 = vld [vmem:[%s3386 + $0x64] sm:$0xf]
    %v3413 = vld [vmem:[%s3386 + $0x68] sm:$0xf]
    %v3414 = vld [vmem:[%s3386 + $0x6c] sm:$0xf]
    %v3415 = vld [vmem:[%s3386 + $0x70] sm:$0xf]
    %v3416 = vld [vmem:[%s3386 + $0x74] sm:$0xf]
    %v3417 = vld [vmem:[%s3386 + $0x78] sm:$0xf]
    %v3418 = vld [vmem:[%s3386 + $0x7c] sm:$0xf]
    %s3419 = scalar_lea.vmem %s11, 1
    %v3420 = vld [vmem:[%s3419] sm:$0x1]
    %v3422 = vlaneseq
    %v3423 = vshrl.u32 %v3422, 7
    %v3424 = vsub.s32 0, %v3423
    %v3425 = vrot.slane %v3420, %v3424
    %v3459 = vunpack.c.l.b16 %v3387
    %v3460 = vunpack.c.l.b16 %v3388
    %v3461 = vunpack.c.l.b16 %v3389
    %v3462 = vunpack.c.l.b16 %v3390
    %v3463 = vunpack.c.l.b16 %v3391
    %v3464 = vunpack.c.l.b16 %v3392
    %v3465 = vunpack.c.l.b16 %v3393
    %v3466 = vunpack.c.l.b16 %v3394
    %v3467 = vunpack.c.l.b16 %v3395
    %v3468 = vunpack.c.l.b16 %v3396
    %v3469 = vunpack.c.l.b16 %v3397
    %v3470 = vunpack.c.l.b16 %v3398
    %v3471 = vunpack.c.l.b16 %v3399
    %v3472 = vunpack.c.l.b16 %v3400
    %v3473 = vunpack.c.l.b16 %v3401
    %v3474 = vunpack.c.l.b16 %v3402
    %v3475 = vunpack.c.l.b16 %v3403
    %v3476 = vunpack.c.l.b16 %v3404
    %v3477 = vunpack.c.l.b16 %v3405
    %v3478 = vunpack.c.l.b16 %v3406
    %v3479 = vunpack.c.l.b16 %v3407
    %v3480 = vunpack.c.l.b16 %v3408
    %v3481 = vunpack.c.l.b16 %v3409
    %v3482 = vunpack.c.l.b16 %v3410
    %v3483 = vunpack.c.l.b16 %v3411
    %v3484 = vunpack.c.l.b16 %v3412
    %v3485 = vunpack.c.l.b16 %v3413
    %v3486 = vunpack.c.l.b16 %v3414
    %v3487 = vunpack.c.l.b16 %v3415
    %v3488 = vunpack.c.l.b16 %v3416
    %v3489 = vunpack.c.l.b16 %v3417
    %v3490 = vunpack.c.l.b16 %v3418
    %v3491 = vpack.c.b16 %v3460, %v3459
    %v3492 = vpack.c.b16 %v3462, %v3461
    %v3493 = vpack.c.b16 %v3464, %v3463
    %v3494 = vpack.c.b16 %v3466, %v3465
    %v3495 = vpack.c.b16 %v3468, %v3467
    %v3496 = vpack.c.b16 %v3470, %v3469
    %v3497 = vpack.c.b16 %v3472, %v3471
    %v3498 = vpack.c.b16 %v3474, %v3473
    %v3499 = vpack.c.b16 %v3476, %v3475
    %v3500 = vpack.c.b16 %v3478, %v3477
    %v3501 = vpack.c.b16 %v3480, %v3479
    %v3502 = vpack.c.b16 %v3482, %v3481
    %v3503 = vpack.c.b16 %v3484, %v3483
    %v3504 = vpack.c.b16 %v3486, %v3485
    %v3505 = vpack.c.b16 %v3488, %v3487
    %v3506 = vpack.c.b16 %v3490, %v3489
    %3523 = vmatprep.subr.bf16.mxu0 0
    %3524 = vmatpush1.bf16.msra.mxu0 %v3498
    %3525 = vmatprep.subr.bf16.mxu0 0
    %3526 = vmatpush1.bf16.msra.mxu0 %v3497
    %3527 = vmatprep.subr.bf16.mxu0 0
    %3528 = vmatpush1.bf16.msra.mxu0 %v3496
    %3529 = vmatprep.subr.bf16.mxu0 0
    %3530 = vmatpush1.bf16.msra.mxu0 %v3495
    %3531 = vmatprep.subr.bf16.mxu0 0
    %3532 = vmatpush1.bf16.msra.mxu0 %v3494
    %3533 = vmatprep.subr.bf16.mxu0 0
    %3534 = vmatpush1.bf16.msra.mxu0 %v3493
    %3535 = vmatprep.subr.bf16.mxu0 0
    %3536 = vmatpush1.bf16.msra.mxu0 %v3492
    %3537 = vmatprep.subr.bf16.mxu0 0
    %3538 = vmatpush1.bf16.msra.mxu0 %v3491
    %3539 = vmatprep.subr.bf16.mxu0 0
    %3540 = vmatpush2.bf16.msra.mxu0 %v3506
    %3541 = vmatprep.subr.bf16.mxu0 0
    %3542 = vmatpush2.bf16.msra.mxu0 %v3505
    %3543 = vmatprep.subr.bf16.mxu0 0
    %3544 = vmatpush2.bf16.msra.mxu0 %v3504
    %3545 = vmatprep.subr.bf16.mxu0 0
    %3546 = vmatpush2.bf16.msra.mxu0 %v3503
    %3547 = vmatprep.subr.bf16.mxu0 0
    %3548 = vmatpush2.bf16.msra.mxu0 %v3502
    %3549 = vmatprep.subr.bf16.mxu0 0
    %3550 = vmatpush2.bf16.msra.mxu0 %v3501
    %3551 = vmatprep.subr.bf16.mxu0 0
    %3552 = vmatpush2.bf16.msra.mxu0 %v3500
    %3553 = vmatprep.subr.bf16.mxu0 0
    %3554 = vmatpush2.bf16.msra.mxu0 %v3499
    %3555 = vmatprep.mubr.bf16.mxu0 %v3385
    %3556 = vmatmul.mubr.bf16.gmra.mxu0 %v3384
    %v3557 = vpop.f32.mrf.mxu0
    %v3558 = vadd.f32 %v3425, %v3557
    %v3559 = vpop.f32.mrf.mxu0
    %v3560 = vpop.f32.mrf.mxu0
    %v3561 = vadd.f32 %v3425, %v3560
    %v3562 = vpop.f32.mrf.mxu0
    %3563 = vdwg.mxu0
    %v3564 = vadd.f32 %v3224, %v3558
    %v3565 = vadd.f32 %v3225, %v3561
    %s3566 = scalar_lea.vmem %s12, 1
    %v3567 = vld [vmem:[%s3566] sm:$0x1]
    %s3568 = scalar_lea.vmem %s13, 1
    %v3569 = vld [vmem:[%s3568] sm:$0x1]
    %3570 = vadd.xlane.f32.xlu0 %v3564
    %v3571 = vpop.xlane.xlu0 %3570
    %3572 = vadd.xlane.f32.xlu0 %v3565
    %v3573 = vpop.xlane.xlu0 %3572
    %v3574 = vmul.f32 %v3571, %v1482
    %v3575 = vmul.f32 %v3573, %v1482
    %v3576 = vsub.f32 %v3564, %v3574
    %v3577 = vsub.f32 %v3565, %v3575
    %v3578 = vmul.f32 %v3576, %v3576
    %v3579 = vmul.f32 %v3577, %v3577
    %3580 = vadd.xlane.f32.xlu0 %v3578
    %v3581 = vpop.xlane.xlu0 %3580
    %3582 = vadd.xlane.f32.xlu0 %v3579
    %v3583 = vpop.xlane.xlu0 %3582
    %v3584 = vmul.f32 %v3581, %v1482
    %v3585 = vmul.f32 %v3583, %v1482
    %v3586 = vadd.f32 %v3584, 1e-05
    %v3587 = vadd.f32 %v3585, 1e-05
    %v3588 = vrsqrt.pop %v3586
    %v3589 = vrsqrt.pop %v3587
    %v3590 = vmul.f32 %v3576, %v3588
    %v3591 = vmul.f32 %v3577, %v3589
    %v3593 = vlaneseq
    %v3594 = vshrl.u32 %v3593, 7
    %v3595 = vsub.s32 0, %v3594
    %v3596 = vrot.slane %v3567, %v3595
    %v3598 = vmul.f32 %v3590, %v3596
    %v3599 = vmul.f32 %v3591, %v3596
    %v3601 = vlaneseq
    %v3602 = vshrl.u32 %v3601, 7
    %v3603 = vsub.s32 0, %v3602
    %v3604 = vrot.slane %v3569, %v3603
    %v3606 = vadd.f32 %v3598, %v3604
    %v3607 = vadd.f32 %v3599, %v3604
    %v3609 = vsel %vm490, %v166, 0
    %3611 = vmatprep.subr.mxu0 0.0
    %3612 = vmatpush1.msra.mxu0 0.0
    %3613 = vmatprep.subr.mxu0 0.0
    %3614 = vmatpush1.msra.mxu0 0.0
    %3615 = vmatprep.subr.mxu0 0.0
    %3616 = vmatpush1.msra.mxu0 0.0
    %3617 = vmatprep.subr.mxu0 0.0
    %3618 = vmatpush1.msra.mxu0 0.0
    %3619 = vmatprep.subr.mxu0 0.0
    %3620 = vmatpush1.msra.mxu0 0.0
    %3621 = vmatprep.subr.mxu0 0.0
    %3622 = vmatpush1.msra.mxu0 0.0
    %3623 = vmatprep.subr.mxu0 0.0
    %3624 = vmatpush1.msra.mxu0 0.0
    %3625 = vmatprep.subr.mxu0 0.0
    %3626 = vmatpush1.msra.mxu0 0.0
    %3627 = vmatprep.subr.mxu0 0.0
    %3628 = vmatpush1.msra.mxu0 0.0
    %3629 = vmatprep.subr.mxu0 0.0
    %3630 = vmatpush1.msra.mxu0 0.0
    %3631 = vmatprep.subr.mxu0 0.0
    %3632 = vmatpush1.msra.mxu0 0.0
    %3633 = vmatprep.subr.mxu0 0.0
    %3634 = vmatpush1.msra.mxu0 0.0
    %3635 = vmatprep.subr.mxu0 0.0
    %3636 = vmatpush1.msra.mxu0 0.0
    %3637 = vmatprep.subr.mxu0 0.0
    %3638 = vmatpush1.msra.mxu0 0.0
    %3639 = vmatprep.subr.mxu0 0.0
    %3640 = vmatpush1.msra.mxu0 0.0
    %3641 = vmatprep.subr.mxu0 0.0
    %3642 = vmatpush1.msra.mxu0 %v3606
    %3643 = vmatprep.subr.mxu0 0.0
    %3644 = vmatpush2.msra.mxu0 0.0
    %3645 = vmatprep.subr.mxu0 0.0
    %3646 = vmatpush2.msra.mxu0 0.0
    %3647 = vmatprep.subr.mxu0 0.0
    %3648 = vmatpush2.msra.mxu0 0.0
    %3649 = vmatprep.subr.mxu0 0.0
    %3650 = vmatpush2.msra.mxu0 0.0
    %3651 = vmatprep.subr.mxu0 0.0
    %3652 = vmatpush2.msra.mxu0 0.0
    %3653 = vmatprep.subr.mxu0 0.0
    %3654 = vmatpush2.msra.mxu0 0.0
    %3655 = vmatprep.subr.mxu0 0.0
    %3656 = vmatpush2.msra.mxu0 0.0
    %3657 = vmatprep.subr.mxu0 0.0
    %3658 = vmatpush2.msra.mxu0 0.0
    %3659 = vmatprep.subr.mxu0 0.0
    %3660 = vmatpush2.msra.mxu0 0.0
    %3661 = vmatprep.subr.mxu0 0.0
    %3662 = vmatpush2.msra.mxu0 0.0
    %3663 = vmatprep.subr.mxu0 0.0
    %3664 = vmatpush2.msra.mxu0 0.0
    %3665 = vmatprep.subr.mxu0 0.0
    %3666 = vmatpush2.msra.mxu0 0.0
    %3667 = vmatprep.subr.mxu0 0.0
    %3668 = vmatpush2.msra.mxu0 0.0
    %3669 = vmatprep.subr.mxu0 0.0
    %3670 = vmatpush2.msra.mxu0 0.0
    %3671 = vmatprep.subr.mxu0 0.0
    %3672 = vmatpush2.msra.mxu0 0.0
    %3673 = vmatprep.subr.mxu0 0.0
    %3674 = vmatpush2.msra.mxu0 0.0
    %3675 = vmatprep.mubr.f32.mxu0 0.0
    %3676 = vmatmul.mubr.f32.gmra.mxu0 %v3609
    %v3677 = vpop.f32.mrf.mxu0
    %v3678 = vadd.f32 0.0, %v3677
    %v3679 = vpop.f32.mrf.mxu0
    %3680 = vdwg.mxu0
    %vm3681 = vcmask 57344
    %v3682 = vsel %vm3681, %v166, 0.0
    %3683 = vadd.xlane.f32.xlu0 %v3682
    %v3684 = vpop.xlane.xlu0 %3683
    %v3685 = vmax.f32 %v3684, 1.0
    %v3686 = vrcp.pop %v3685
    %v3687 = vmul.f32 %v3678, %v3686
    %v3689 = vsel %vm490, %v167, 0
    %3691 = vmatprep.subr.mxu0 0.0
    %3692 = vmatpush1.msra.mxu0 0.0
    %3693 = vmatprep.subr.mxu0 0.0
    %3694 = vmatpush1.msra.mxu0 0.0
    %3695 = vmatprep.subr.mxu0 0.0
    %3696 = vmatpush1.msra.mxu0 0.0
    %3697 = vmatprep.subr.mxu0 0.0
    %3698 = vmatpush1.msra.mxu0 0.0
    %3699 = vmatprep.subr.mxu0 0.0
    %3700 = vmatpush1.msra.mxu0 0.0
    %3701 = vmatprep.subr.mxu0 0.0
    %3702 = vmatpush1.msra.mxu0 0.0
    %3703 = vmatprep.subr.mxu0 0.0
    %3704 = vmatpush1.msra.mxu0 0.0
    %3705 = vmatprep.subr.mxu0 0.0
    %3706 = vmatpush1.msra.mxu0 0.0
    %3707 = vmatprep.subr.mxu0 0.0
    %3708 = vmatpush1.msra.mxu0 0.0
    %3709 = vmatprep.subr.mxu0 0.0
    %3710 = vmatpush1.msra.mxu0 0.0
    %3711 = vmatprep.subr.mxu0 0.0
    %3712 = vmatpush1.msra.mxu0 0.0
    %3713 = vmatprep.subr.mxu0 0.0
    %3714 = vmatpush1.msra.mxu0 0.0
    %3715 = vmatprep.subr.mxu0 0.0
    %3716 = vmatpush1.msra.mxu0 0.0
    %3717 = vmatprep.subr.mxu0 0.0
    %3718 = vmatpush1.msra.mxu0 0.0
    %3719 = vmatprep.subr.mxu0 0.0
    %3720 = vmatpush1.msra.mxu0 0.0
    %3721 = vmatprep.subr.mxu0 0.0
    %3722 = vmatpush1.msra.mxu0 %v3607
    %3723 = vmatprep.subr.mxu0 0.0
    %3724 = vmatpush2.msra.mxu0 0.0
    %3725 = vmatprep.subr.mxu0 0.0
    %3726 = vmatpush2.msra.mxu0 0.0
    %3727 = vmatprep.subr.mxu0 0.0
    %3728 = vmatpush2.msra.mxu0 0.0
    %3729 = vmatprep.subr.mxu0 0.0
    %3730 = vmatpush2.msra.mxu0 0.0
    %3731 = vmatprep.subr.mxu0 0.0
    %3732 = vmatpush2.msra.mxu0 0.0
    %3733 = vmatprep.subr.mxu0 0.0
    %3734 = vmatpush2.msra.mxu0 0.0
    %3735 = vmatprep.subr.mxu0 0.0
    %3736 = vmatpush2.msra.mxu0 0.0
    %3737 = vmatprep.subr.mxu0 0.0
    %3738 = vmatpush2.msra.mxu0 0.0
    %3739 = vmatprep.subr.mxu0 0.0
    %3740 = vmatpush2.msra.mxu0 0.0
    %3741 = vmatprep.subr.mxu0 0.0
    %3742 = vmatpush2.msra.mxu0 0.0
    %3743 = vmatprep.subr.mxu0 0.0
    %3744 = vmatpush2.msra.mxu0 0.0
    %3745 = vmatprep.subr.mxu0 0.0
    %3746 = vmatpush2.msra.mxu0 0.0
    %3747 = vmatprep.subr.mxu0 0.0
    %3748 = vmatpush2.msra.mxu0 0.0
    %3749 = vmatprep.subr.mxu0 0.0
    %3750 = vmatpush2.msra.mxu0 0.0
    %3751 = vmatprep.subr.mxu0 0.0
    %3752 = vmatpush2.msra.mxu0 0.0
    %3753 = vmatprep.subr.mxu0 0.0
    %3754 = vmatpush2.msra.mxu0 0.0
    %3755 = vmatprep.mubr.f32.mxu0 0.0
    %3756 = vmatmul.mubr.f32.gmra.mxu0 %v3689
    %v3757 = vpop.f32.mrf.mxu0
    %v3758 = vadd.f32 0.0, %v3757
    %v3759 = vpop.f32.mrf.mxu0
    %3760 = vdwg.mxu0
    %v3761 = vsel %vm3681, %v167, 0.0
    %3762 = vadd.xlane.f32.xlu0 %v3761
    %v3763 = vpop.xlane.xlu0 %3762
    %v3764 = vmax.f32 %v3763, 1.0
    %v3765 = vrcp.pop %v3764
    %v3766 = vmul.f32 %v3758, %v3765
    %v3768 = vrot.slane %v3766, 7
    %vm3770 = vcmask 1040384
    %v3771 = vsel %vm3770, %v3687, %v3768
    %v3772 = vpack.c.bf16 %v3771, %v3771
    %v3773 = vld [vmem:[#allocation14] sm:$0xf]
    %v3774 = vld [vmem:[#allocation14 + $0x4] sm:$0xf]
    %v3775 = vld [vmem:[#allocation14 + $0x8] sm:$0xf]
    %v3776 = vld [vmem:[#allocation14 + $0xc] sm:$0xf]
    %v3777 = vld [vmem:[#allocation14 + $0x10] sm:$0xf]
    %v3778 = vld [vmem:[#allocation14 + $0x14] sm:$0xf]
    %v3779 = vld [vmem:[#allocation14 + $0x18] sm:$0xf]
    %v3780 = vld [vmem:[#allocation14 + $0x1c] sm:$0xf]
    %v3781 = vld [vmem:[#allocation14 + $0x20] sm:$0xf]
    %v3782 = vld [vmem:[#allocation14 + $0x24] sm:$0xf]
    %v3783 = vld [vmem:[#allocation14 + $0x28] sm:$0xf]
    %v3784 = vld [vmem:[#allocation14 + $0x2c] sm:$0xf]
    %v3785 = vld [vmem:[#allocation14 + $0x30] sm:$0xf]
    %v3786 = vld [vmem:[#allocation14 + $0x34] sm:$0xf]
    %v3787 = vld [vmem:[#allocation14 + $0x38] sm:$0xf]
    %v3788 = vld [vmem:[#allocation14 + $0x3c] sm:$0xf]
    %v3789 = vld [vmem:[%s15] sm:$0x1]
    %v3791 = vlaneseq
    %v3792 = vshrl.u32 %v3791, 7
    %v3793 = vsub.s32 0, %v3792
    %v3794 = vrot.slane %v3789, %v3793
    %v3812 = vunpack.c.l.b16 %v3773
    %v3813 = vunpack.c.l.b16 %v3774
    %v3814 = vunpack.c.l.b16 %v3775
    %v3815 = vunpack.c.l.b16 %v3776
    %v3816 = vunpack.c.l.b16 %v3777
    %v3817 = vunpack.c.l.b16 %v3778
    %v3818 = vunpack.c.l.b16 %v3779
    %v3819 = vunpack.c.l.b16 %v3780
    %v3820 = vunpack.c.l.b16 %v3781
    %v3821 = vunpack.c.l.b16 %v3782
    %v3822 = vunpack.c.l.b16 %v3783
    %v3823 = vunpack.c.l.b16 %v3784
    %v3824 = vunpack.c.l.b16 %v3785
    %v3825 = vunpack.c.l.b16 %v3786
    %v3826 = vunpack.c.l.b16 %v3787
    %v3827 = vunpack.c.l.b16 %v3788
    %v3828 = vpack.c.b16 %v3813, %v3812
    %v3829 = vpack.c.b16 %v3815, %v3814
    %v3830 = vpack.c.b16 %v3817, %v3816
    %v3831 = vpack.c.b16 %v3819, %v3818
    %v3832 = vpack.c.b16 %v3821, %v3820
    %v3833 = vpack.c.b16 %v3823, %v3822
    %v3834 = vpack.c.b16 %v3825, %v3824
    %v3835 = vpack.c.b16 %v3827, %v3826
    %3844 = vmatprep.subr.bf16.mxu0 0
    %3845 = vmatpush1.bf16.msra.mxu0 %v3835
    %3846 = vmatprep.subr.bf16.mxu0 0
    %3847 = vmatpush1.bf16.msra.mxu0 %v3834
    %3848 = vmatprep.subr.bf16.mxu0 0
    %3849 = vmatpush1.bf16.msra.mxu0 %v3833
    %3850 = vmatprep.subr.bf16.mxu0 0
    %3851 = vmatpush1.bf16.msra.mxu0 %v3832
    %3852 = vmatprep.subr.bf16.mxu0 0
    %3853 = vmatpush1.bf16.msra.mxu0 %v3831
    %3854 = vmatprep.subr.bf16.mxu0 0
    %3855 = vmatpush1.bf16.msra.mxu0 %v3830
    %3856 = vmatprep.subr.bf16.mxu0 0
    %3857 = vmatpush1.bf16.msra.mxu0 %v3829
    %3858 = vmatprep.subr.bf16.mxu0 0
    %3859 = vmatpush1.bf16.msra.mxu0 %v3828
    %3860 = vmatprep.subr.bf16.mxu0 0
    %3861 = vmatpush2.bf16.msra.mxu0 0
    %3862 = vmatprep.subr.bf16.mxu0 0
    %3863 = vmatpush2.bf16.msra.mxu0 0
    %3864 = vmatprep.subr.bf16.mxu0 0
    %3865 = vmatpush2.bf16.msra.mxu0 0
    %3866 = vmatprep.subr.bf16.mxu0 0
    %3867 = vmatpush2.bf16.msra.mxu0 0
    %3868 = vmatprep.subr.bf16.mxu0 0
    %3869 = vmatpush2.bf16.msra.mxu0 0
    %3870 = vmatprep.subr.bf16.mxu0 0
    %3871 = vmatpush2.bf16.msra.mxu0 0
    %3872 = vmatprep.subr.bf16.mxu0 0
    %3873 = vmatpush2.bf16.msra.mxu0 0
    %3874 = vmatprep.subr.bf16.mxu0 0
    %3875 = vmatpush2.bf16.msra.mxu0 0
    %3876 = vmatprep.mubr.bf16.mxu0 0
    %3877 = vmatmul.mubr.bf16.gmra.mxu0 %v3772
    %v3878 = vpop.f32.mrf.mxu0
    %v3879 = vadd.f32 %v3794, %v3878
    %v3880 = vpop.f32.mrf.mxu0
    %v3881 = vpop.f32.mrf.mxu0
    %v3882 = vpop.f32.mrf.mxu0
    %3883 = vdwg.mxu0
    %v3886 = vunpack.c.l.s4 1966171168
    %v3887 = vunpack.c.0.s8 %v3886
    %v3888 = vlaneseq
    %v3889 = vshrl.u32 %v3888, 7
    %v3890 = vsub.s32 %v3887, %v3889
    %v3891 = vrot.slane %v3879, %v3890
    %v3892 = vcombine.high %v3891, %v3891
    %v3894 = vunpack.c.l.s4 1966171168
    %v3895 = vunpack.c.0.s8 %v3894
    %v3896 = vlaneseq
    %v3897 = vshrl.u32 %v3896, 7
    %v3898 = vsub.s32 %v3895, %v3897
    %v3899 = vrot.slane %v3891, %v3898
    %v3901 = vunpack.c.l.s4 1966171168
    %v3902 = vunpack.c.0.s8 %v3901
    %v3903 = vlaneseq
    %v3904 = vshrl.u32 %v3903, 7
    %v3905 = vsub.s32 %v3902, %v3904
    %v3906 = vrot.slane %v3892, %v3905
    %3909 = vst [vmem:[#allocation16] sm:$0x1] %v3899
    %3910 = vst [vmem:[#allocation16 + $0x1] sm:$0x1] %v3906
    // Predicated region
    $region98: #{tpu_custom_call.1} parent=1 // pred_check
      _
    $region99: #{tpu_custom_call.1} parent=1 // pred_check_branch
      %3912 = sbr.rel (0) target = $region101
    $region100: #{tpu_custom_call.1} parent=1 // pred_region
      %s3914 = ssub.s32 32, 32
      %3915 = vsyncadd [#allocation4], %s3914
      %s3916 = sshll.u32 [#allocation16], 4
      %s3917 = int_to_ptr.vmem [resolvable:$true] %s3916
      %3922 = dma.vmem_to_hbm [thread:$0]  %s3917, 32, %s16, [#allocation4], 16, 16, 1
    $region101: #{tpu_custom_call.1} parent=1 // pred_fallthru
      _
    // Predicated region
    $region102: #{tpu_custom_call.1} parent=1 // pred_check
      _
    $region103: #{tpu_custom_call.1} parent=1 // pred_check_branch
      %3924 = sbr.rel (0) target = $region105
    $region104: #{tpu_custom_call.1} parent=1 // pred_region
      %3925 = dma.done [#allocation4], 32
    $region105: #{tpu_custom_call.1} parent=1 // pred_fallthru
      _
    %3926 = vsyncpa [#allocation3], 1
    %3927 = vsyncpa [#allocation6], 1
    %3928 = vsyncpa [#allocation9], 1
    %3929 = vsyncpa [#allocation12], 1
    %3930 = vsyncpa [#allocation15], 1
    %3931 = vsyncpa [#allocation4], 1

</llo_original>
